<compile_context>
chip_gen: v7x
topology: tpu7x:2x2x1
jax: 0.10.0
libtpu: 0.0.40
codegen_flags: <defaults>
</compile_context>

<pallas_src>
import numpy as np
import jax
import jax.numpy as jnp
from jax.experimental import pallas as pl
from jax.experimental.pallas import tpu as pltpu


# ----------------------------------------------------------------------------
# Parameter construction (mirrors GaussianRBF_PhysNet.__init__)
# ----------------------------------------------------------------------------
def _softplus_inverse(x):
    # log(exp(x) - 1), numerically fine for the large values used here
    return np.log(np.expm1(x))


def _softplus(x):
    # stable softplus: log(1 + exp(x))
    return np.logaddexp(0.0, x)


def make_physnet_rbf_params(rbf_n_basis: int,
                            rbf_center_start: float,
                            rbf_center_end: float,
                            dtype=jnp.float32):
    # centers = linspace(start, exp(-end), n_basis)
    centers = np.linspace(rbf_center_start,
                          np.exp(-rbf_center_end),
                          rbf_n_basis).astype(np.float64)
    # width_val = softplus_inverse((0.5 / ((1 - exp(-end)) / n))**2)
    width_val = _softplus_inverse(
        (0.5 / ((1.0 - np.exp(-rbf_center_end)) / rbf_n_basis)) ** 2)
    # widths = full(n, softplus(width_val * n))
    widths = np.full((rbf_n_basis,),
                     _softplus(width_val * rbf_n_basis),
                     dtype=np.float64)
    # TODO(synk): reference buffers are float64; TPU Pallas has no native f64,
    # so parameters are materialized in float32.
    return (jnp.asarray(centers, dtype=dtype),
            jnp.asarray(widths, dtype=dtype))


# ----------------------------------------------------------------------------
# Pallas kernel: rbf = exp(-widths * (exp(-d) - centers)**2)
# ----------------------------------------------------------------------------
def _rbf_kernel(d_ref, params_ref, out_ref):
    # d_ref:      (TM, 1)  distances tile (sublane column)
    # params_ref: (2, K)   row 0 = centers, row 1 = -widths (negation folded)
    # out_ref:    (TM, K)
    x = d_ref[...]                       # (TM, 1)
    p = params_ref[...]                  # (2, K)
    c = p[0:1, :]                        # (1, K)
    neg_w = p[1:2, :]                    # (1, K)
    diff = jnp.exp(-x) - c               # broadcast -> (TM, K)
    out_ref[...] = jnp.exp(neg_w * diff * diff).astype(out_ref.dtype)


def _round_up(x: int, m: int) -> int:
    return ((x + m - 1) // m) * m


def gaussian_rbf_physnet(d, centers, widths, *, tile_m=8192):
    """d: (N,) distances -> (N, K) RBF expansion. Handles ragged N."""
    n = d.shape[0]
    k = centers.shape[0]
    assert tile_m % 8 == 0, "tile_m must be a multiple of 8 (sublane)"

    # Balanced tiling: g grid steps, tile rows each (multiple of 8, <= tile_m).
    n8 = _round_up(max(n, 1), 8)
    g = pl.cdiv(n8, tile_m)
    tile = _round_up(-(-n8 // g), 8)          # ceil(n8/g) rounded up to 8
    n_pad = g * tile                          # waste <= ~8 rows per grid step
    d_in = jnp.pad(d, (0, n_pad - n)) if n_pad != n else d

    d2 = d_in.reshape(n_pad, 1)
    # Pack centers and -widths into one resident (2, K) block.
    params = jnp.stack([centers, -widths]).astype(d.dtype)

    itemsize = jnp.dtype(d.dtype).itemsize
    cost = pl.CostEstimate(
        flops=3 * n_pad * k,
        transcendentals=n_pad * k + n_pad,
        bytes_accessed=n_pad * k * itemsize + n_pad * itemsize + 2 * k * itemsize,
    )

    out = pl.pallas_call(
        _rbf_kernel,
        out_shape=jax.ShapeDtypeStruct((n_pad, k), d.dtype),
        grid_spec=pltpu.PrefetchScalarGridSpec(
            num_scalar_prefetch=0,
            grid=(g,),
            in_specs=[
                pl.BlockSpec((tile, 1), lambda i: (i, 0)),   # d tile (column)
                pl.BlockSpec((2, k), lambda i: (0, 0)),      # packed params (resident)
            ],
            out_specs=pl.BlockSpec((tile, k), lambda i: (i, 0)),
        ),
        compiler_params=pltpu.CompilerParams(
            dimension_semantics=("parallel",),        # split grid across TCs on v7x
            vmem_limit_bytes=32 * 1024 * 1024,        # big tiles viable on v5e too
        ),
        cost_estimate=cost,
    )(d2, params)

    if n_pad != n:
        out = out[:n]
    return out


# ----------------------------------------------------------------------------
# Reference (plain JAX) for sanity checking
# ----------------------------------------------------------------------------
def gaussian_rbf_physnet_ref(d, centers, widths):
    x = d[..., None]
    return jnp.exp(-widths * (jnp.exp(-x) - centers) ** 2)


if __name__ == "__main__":
    # Module config: PhysNet-style, 128 Gaussian basis functions, cutoff 8.0
    rbf_n_basis = 128
    rbf_center_start = 1.0
    rbf_center_end = 8.0

    centers, widths = make_physnet_rbf_params(
        rbf_n_basis, rbf_center_start, rbf_center_end, dtype=jnp.float32)

    # Deterministic example input: 2500 pairwise distances in (0, 8].
    # N is deliberately ragged (not a tile multiple) to exercise the balanced
    # tiling / padding path.
    key = jax.random.PRNGKey(0)
    n = 2500
    d = jax.random.uniform(key, (n,), dtype=jnp.float32,
                           minval=0.1, maxval=8.0)

    out = gaussian_rbf_physnet(d, centers, widths)
    out = jax.block_until_ready(out)
    assert out.shape == (n, rbf_n_basis)

    ref = gaussian_rbf_physnet_ref(d, centers, widths)
    np.testing.assert_allclose(np.asarray(out), np.asarray(ref),
                               rtol=1e-5, atol=1e-6)

    print("KERNEL_OK")
</pallas_src>

<mosaic_0001>
module attributes {stable_mosaic.version = 11 : i64} {
  func.func @_rbf_kernel(%arg0: i32, %arg1: memref<2504x1xf32, #tpu.memory_space<vmem>>, %arg2: memref<2x128xf32, #tpu.memory_space<vmem>>, %arg3: memref<2504x128xf32, #tpu.memory_space<vmem>>) attributes {dimension_semantics = [#tpu.dimension_semantics<parallel>], iteration_bounds = array<i64: 1>, scalar_prefetch = 0 : i64, scratch_operands = 0 : i64, tpu.core_type = #tpu.core_type<tc>, window_params = [{transform_indices = @transform_0, window_bounds = array<i64: 2504, 1>}, {pipeline_mode = #tpu.pipeline_mode<synchronous>, transform_indices = @transform_1, window_bounds = array<i64: 2, 128>}, {transform_indices = @transform_2, window_bounds = array<i64: 2504, 128>}]} {
    %c0 = arith.constant 0 : index
    %c0_0 = arith.constant 0 : index
    %0 = vector.load %arg1[%c0, %c0_0] : memref<2504x1xf32, #tpu.memory_space<vmem>>, vector<2504x1xf32>
    %c0_1 = arith.constant 0 : index
    %c0_2 = arith.constant 0 : index
    %1 = vector.load %arg2[%c0_1, %c0_2] : memref<2x128xf32, #tpu.memory_space<vmem>>, vector<2x128xf32>
    %2 = vector.extract_strided_slice %1 {offsets = [0, 0], sizes = [1, 128], strides = [1, 1]} : vector<2x128xf32> to vector<1x128xf32>
    %3 = vector.extract_strided_slice %1 {offsets = [1, 0], sizes = [1, 128], strides = [1, 1]} : vector<2x128xf32> to vector<1x128xf32>
    %cst = arith.constant 0.000000e+00 : f32
    %4 = vector.broadcast %cst : f32 to vector<2504x1xf32>
    %5 = arith.subf %4, %0 : vector<2504x1xf32>
    %6 = math.exp %5 : vector<2504x1xf32>
    %7 = vector.broadcast %6 : vector<2504x1xf32> to vector<2504x128xf32>
    %8 = vector.broadcast %2 : vector<1x128xf32> to vector<2504x128xf32>
    %9 = arith.subf %7, %8 : vector<2504x128xf32>
    %10 = vector.broadcast %3 : vector<1x128xf32> to vector<2504x128xf32>
    %11 = arith.mulf %10, %9 : vector<2504x128xf32>
    %12 = arith.mulf %11, %9 : vector<2504x128xf32>
    %13 = math.exp %12 : vector<2504x128xf32>
    %c0_3 = arith.constant 0 : index
    %c0_4 = arith.constant 0 : index
    %14 = vector.load %arg3[%c0_3, %c0_4] : memref<2504x128xf32, #tpu.memory_space<vmem>>, vector<2504x128xf32>
    tpu.vector_store %arg3[%c0_3, %c0_4], %13 {strides = array<i32>} : memref<2504x128xf32, #tpu.memory_space<vmem>>, vector<2504x128xf32>,
    return
  }
  func.func @transform_0(%arg0: i32) -> (i32, i32) {
    %c0_i32 = arith.constant 0 : i32
    %c0_i32_0 = arith.constant 0 : i32
    return %arg0, %c0_i32 : i32, i32
  }
  func.func @transform_1(%arg0: i32) -> (i32, i32) {
    %c0_i32 = arith.constant 0 : i32
    %c0_i32_0 = arith.constant 0 : i32
    %c0_i32_1 = arith.constant 0 : i32
    return %c0_i32, %c0_i32_0 : i32, i32
  }
  func.func @transform_2(%arg0: i32) -> (i32, i32) {
    %c0_i32 = arith.constant 0 : i32
    %c0_i32_0 = arith.constant 0 : i32
    return %arg0, %c0_i32 : i32, i32
  }
}

</mosaic_0001>

<llo_original>
// kernel: tpu_custom_call.1
$region0: #{tpu_custom_call.1}
  #allocation0 [shape = 'u32[]', space=smem, size = 0x4, offset = 0x4, fixed_abs, tag = 'smem constant byte address 0x4 - core index']
  #allocation1 [shape = 'u32[144,128]{1,0:T(1,128)}', space=vmem, size = 0x12000, scoped, tag = 'internal scratch']
  %s0 = inlined_call_operand.vmem [shape: f32[2504,1], index: 0, kind: input, shape index: {}]
  %s1 = inlined_call_operand.vmem [shape: f32[2,128], index: 1, kind: input, shape index: {}]
  %s2 = inlined_call_operand.hbm [shape: f32[2504,128], index: 2, kind: output, shape index: {}]
  %s3 = sld [smem:[#allocation0]]
  $region18: #{tpu_custom_call.1} parent=0
    _
  %s5 = ssub.s32 1, %s3
  %s6 = scalar_select 0, %s5, %s3
  $region1: #{tpu_custom_call.1} parent=0
    #allocation2 [shape = 'u8[1282048]{0}', space=vmem, size = 0x139000, scoped, tag = 'output window, operand 0, single buffered']
    #allocation3 [shape = 's32[1]{0}', space=sflag, size = 0x4, scoped, tag = 'scoped memory for tpu_custom_call.1']
    %7 = vsyncpa [#allocation3], 0
    // Predicated region
    $region2: #{tpu_custom_call.1} parent=1 // pred_check
      _
    $region3: #{tpu_custom_call.1} parent=1 // pred_check_branch
      %9 = sbr.rel (0) target = $region5
    $region4: #{tpu_custom_call.1} parent=1 // pred_region
      _
    $region5: #{tpu_custom_call.1} parent=1 // pred_fallthru
      _
    // Predicated region
    $region6: #{tpu_custom_call.1} parent=1 // pred_check
      _
    $region7: #{tpu_custom_call.1} parent=1 // pred_check_branch
      %11 = sbr.rel (0) target = $region9
    $region8: #{tpu_custom_call.1} parent=1 // pred_region
      _
    $region9: #{tpu_custom_call.1} parent=1 // pred_fallthru
      _
    %v12 = vld [vmem:[%s0] sm:$0xff]
    %v13 = vld [vmem:[%s0 + $0x8] sm:$0xff]
    %v14 = vld [vmem:[%s0 + $0x10] sm:$0xff]
    %v15 = vld [vmem:[%s0 + $0x18] sm:$0xff]
    %v16 = vld [vmem:[%s0 + $0x20] sm:$0xff]
    %v17 = vld [vmem:[%s0 + $0x28] sm:$0xff]
    %v18 = vld [vmem:[%s0 + $0x30] sm:$0xff]
    %v19 = vld [vmem:[%s0 + $0x38] sm:$0xff]
    %v20 = vld [vmem:[%s0 + $0x40] sm:$0xff]
    %v21 = vld [vmem:[%s0 + $0x48] sm:$0xff]
    %v22 = vld [vmem:[%s0 + $0x50] sm:$0xff]
    %v23 = vld [vmem:[%s0 + $0x58] sm:$0xff]
    %v24 = vld [vmem:[%s0 + $0x60] sm:$0xff]
    %v25 = vld [vmem:[%s0 + $0x68] sm:$0xff]
    %v26 = vld [vmem:[%s0 + $0x70] sm:$0xff]
    %v27 = vld [vmem:[%s0 + $0x78] sm:$0xff]
    %v28 = vld [vmem:[%s0 + $0x80] sm:$0xff]
    %v29 = vld [vmem:[%s0 + $0x88] sm:$0xff]
    %v30 = vld [vmem:[%s0 + $0x90] sm:$0xff]
    %v31 = vld [vmem:[%s0 + $0x98] sm:$0xff]
    %v32 = vld [vmem:[%s0 + $0xa0] sm:$0xff]
    %v33 = vld [vmem:[%s0 + $0xa8] sm:$0xff]
    %v34 = vld [vmem:[%s0 + $0xb0] sm:$0xff]
    %v35 = vld [vmem:[%s0 + $0xb8] sm:$0xff]
    %v36 = vld [vmem:[%s0 + $0xc0] sm:$0xff]
    %v37 = vld [vmem:[%s0 + $0xc8] sm:$0xff]
    %v38 = vld [vmem:[%s0 + $0xd0] sm:$0xff]
    %v39 = vld [vmem:[%s0 + $0xd8] sm:$0xff]
    %v40 = vld [vmem:[%s0 + $0xe0] sm:$0xff]
    %v41 = vld [vmem:[%s0 + $0xe8] sm:$0xff]
    %v42 = vld [vmem:[%s0 + $0xf0] sm:$0xff]
    %v43 = vld [vmem:[%s0 + $0xf8] sm:$0xff]
    %v44 = vld [vmem:[%s0 + $0x100] sm:$0xff]
    %v45 = vld [vmem:[%s0 + $0x108] sm:$0xff]
    %v46 = vld [vmem:[%s0 + $0x110] sm:$0xff]
    %v47 = vld [vmem:[%s0 + $0x118] sm:$0xff]
    %v48 = vld [vmem:[%s0 + $0x120] sm:$0xff]
    %v49 = vld [vmem:[%s0 + $0x128] sm:$0xff]
    %v50 = vld [vmem:[%s0 + $0x130] sm:$0xff]
    %v51 = vld [vmem:[%s0 + $0x138] sm:$0xff]
    %v52 = vld [vmem:[%s0 + $0x140] sm:$0xff]
    %v53 = vld [vmem:[%s0 + $0x148] sm:$0xff]
    %v54 = vld [vmem:[%s0 + $0x150] sm:$0xff]
    %v55 = vld [vmem:[%s0 + $0x158] sm:$0xff]
    %v56 = vld [vmem:[%s0 + $0x160] sm:$0xff]
    %v57 = vld [vmem:[%s0 + $0x168] sm:$0xff]
    %v58 = vld [vmem:[%s0 + $0x170] sm:$0xff]
    %v59 = vld [vmem:[%s0 + $0x178] sm:$0xff]
    %v60 = vld [vmem:[%s0 + $0x180] sm:$0xff]
    %v61 = vld [vmem:[%s0 + $0x188] sm:$0xff]
    %v62 = vld [vmem:[%s0 + $0x190] sm:$0xff]
    %v63 = vld [vmem:[%s0 + $0x198] sm:$0xff]
    %v64 = vld [vmem:[%s0 + $0x1a0] sm:$0xff]
    %v65 = vld [vmem:[%s0 + $0x1a8] sm:$0xff]
    %v66 = vld [vmem:[%s0 + $0x1b0] sm:$0xff]
    %v67 = vld [vmem:[%s0 + $0x1b8] sm:$0xff]
    %v68 = vld [vmem:[%s0 + $0x1c0] sm:$0xff]
    %v69 = vld [vmem:[%s0 + $0x1c8] sm:$0xff]
    %v70 = vld [vmem:[%s0 + $0x1d0] sm:$0xff]
    %v71 = vld [vmem:[%s0 + $0x1d8] sm:$0xff]
    %v72 = vld [vmem:[%s0 + $0x1e0] sm:$0xff]
    %v73 = vld [vmem:[%s0 + $0x1e8] sm:$0xff]
    %v74 = vld [vmem:[%s0 + $0x1f0] sm:$0xff]
    %v75 = vld [vmem:[%s0 + $0x1f8] sm:$0xff]
    %v76 = vld [vmem:[%s0 + $0x200] sm:$0xff]
    %v77 = vld [vmem:[%s0 + $0x208] sm:$0xff]
    %v78 = vld [vmem:[%s0 + $0x210] sm:$0xff]
    %v79 = vld [vmem:[%s0 + $0x218] sm:$0xff]
    %v80 = vld [vmem:[%s0 + $0x220] sm:$0xff]
    %v81 = vld [vmem:[%s0 + $0x228] sm:$0xff]
    %v82 = vld [vmem:[%s0 + $0x230] sm:$0xff]
    %v83 = vld [vmem:[%s0 + $0x238] sm:$0xff]
    %v84 = vld [vmem:[%s0 + $0x240] sm:$0xff]
    %v85 = vld [vmem:[%s0 + $0x248] sm:$0xff]
    %v86 = vld [vmem:[%s0 + $0x250] sm:$0xff]
    %v87 = vld [vmem:[%s0 + $0x258] sm:$0xff]
    %v88 = vld [vmem:[%s0 + $0x260] sm:$0xff]
    %v89 = vld [vmem:[%s0 + $0x268] sm:$0xff]
    %v90 = vld [vmem:[%s0 + $0x270] sm:$0xff]
    %v91 = vld [vmem:[%s0 + $0x278] sm:$0xff]
    %v92 = vld [vmem:[%s0 + $0x280] sm:$0xff]
    %v93 = vld [vmem:[%s0 + $0x288] sm:$0xff]
    %v94 = vld [vmem:[%s0 + $0x290] sm:$0xff]
    %v95 = vld [vmem:[%s0 + $0x298] sm:$0xff]
    %v96 = vld [vmem:[%s0 + $0x2a0] sm:$0xff]
    %v97 = vld [vmem:[%s0 + $0x2a8] sm:$0xff]
    %v98 = vld [vmem:[%s0 + $0x2b0] sm:$0xff]
    %v99 = vld [vmem:[%s0 + $0x2b8] sm:$0xff]
    %v100 = vld [vmem:[%s0 + $0x2c0] sm:$0xff]
    %v101 = vld [vmem:[%s0 + $0x2c8] sm:$0xff]
    %v102 = vld [vmem:[%s0 + $0x2d0] sm:$0xff]
    %v103 = vld [vmem:[%s0 + $0x2d8] sm:$0xff]
    %v104 = vld [vmem:[%s0 + $0x2e0] sm:$0xff]
    %v105 = vld [vmem:[%s0 + $0x2e8] sm:$0xff]
    %v106 = vld [vmem:[%s0 + $0x2f0] sm:$0xff]
    %v107 = vld [vmem:[%s0 + $0x2f8] sm:$0xff]
    %v108 = vld [vmem:[%s0 + $0x300] sm:$0xff]
    %v109 = vld [vmem:[%s0 + $0x308] sm:$0xff]
    %v110 = vld [vmem:[%s0 + $0x310] sm:$0xff]
    %v111 = vld [vmem:[%s0 + $0x318] sm:$0xff]
    %v112 = vld [vmem:[%s0 + $0x320] sm:$0xff]
    %v113 = vld [vmem:[%s0 + $0x328] sm:$0xff]
    %v114 = vld [vmem:[%s0 + $0x330] sm:$0xff]
    %v115 = vld [vmem:[%s0 + $0x338] sm:$0xff]
    %v116 = vld [vmem:[%s0 + $0x340] sm:$0xff]
    %v117 = vld [vmem:[%s0 + $0x348] sm:$0xff]
    %v118 = vld [vmem:[%s0 + $0x350] sm:$0xff]
    %v119 = vld [vmem:[%s0 + $0x358] sm:$0xff]
    %v120 = vld [vmem:[%s0 + $0x360] sm:$0xff]
    %v121 = vld [vmem:[%s0 + $0x368] sm:$0xff]
    %v122 = vld [vmem:[%s0 + $0x370] sm:$0xff]
    %v123 = vld [vmem:[%s0 + $0x378] sm:$0xff]
    %v124 = vld [vmem:[%s0 + $0x380] sm:$0xff]
    %v125 = vld [vmem:[%s0 + $0x388] sm:$0xff]
    %v126 = vld [vmem:[%s0 + $0x390] sm:$0xff]
    %v127 = vld [vmem:[%s0 + $0x398] sm:$0xff]
    %v128 = vld [vmem:[%s0 + $0x3a0] sm:$0xff]
    %v129 = vld [vmem:[%s0 + $0x3a8] sm:$0xff]
    %v130 = vld [vmem:[%s0 + $0x3b0] sm:$0xff]
    %v131 = vld [vmem:[%s0 + $0x3b8] sm:$0xff]
    %v132 = vld [vmem:[%s0 + $0x3c0] sm:$0xff]
    %v133 = vld [vmem:[%s0 + $0x3c8] sm:$0xff]
    %v134 = vld [vmem:[%s0 + $0x3d0] sm:$0xff]
    %v135 = vld [vmem:[%s0 + $0x3d8] sm:$0xff]
    %v136 = vld [vmem:[%s0 + $0x3e0] sm:$0xff]
    %v137 = vld [vmem:[%s0 + $0x3e8] sm:$0xff]
    %v138 = vld [vmem:[%s0 + $0x3f0] sm:$0xff]
    %v139 = vld [vmem:[%s0 + $0x3f8] sm:$0xff]
    %v140 = vld [vmem:[%s0 + $0x400] sm:$0xff]
    %v141 = vld [vmem:[%s0 + $0x408] sm:$0xff]
    %v142 = vld [vmem:[%s0 + $0x410] sm:$0xff]
    %v143 = vld [vmem:[%s0 + $0x418] sm:$0xff]
    %v144 = vld [vmem:[%s0 + $0x420] sm:$0xff]
    %v145 = vld [vmem:[%s0 + $0x428] sm:$0xff]
    %v146 = vld [vmem:[%s0 + $0x430] sm:$0xff]
    %v147 = vld [vmem:[%s0 + $0x438] sm:$0xff]
    %v148 = vld [vmem:[%s0 + $0x440] sm:$0xff]
    %v149 = vld [vmem:[%s0 + $0x448] sm:$0xff]
    %v150 = vld [vmem:[%s0 + $0x450] sm:$0xff]
    %v151 = vld [vmem:[%s0 + $0x458] sm:$0xff]
    %v152 = vld [vmem:[%s0 + $0x460] sm:$0xff]
    %v153 = vld [vmem:[%s0 + $0x468] sm:$0xff]
    %v154 = vld [vmem:[%s0 + $0x470] sm:$0xff]
    %v155 = vld [vmem:[%s0 + $0x478] sm:$0xff]
    %v156 = vld [vmem:[%s0 + $0x480] sm:$0xff]
    %v157 = vld [vmem:[%s0 + $0x488] sm:$0xff]
    %v158 = vld [vmem:[%s0 + $0x490] sm:$0xff]
    %v159 = vld [vmem:[%s0 + $0x498] sm:$0xff]
    %v160 = vld [vmem:[%s0 + $0x4a0] sm:$0xff]
    %v161 = vld [vmem:[%s0 + $0x4a8] sm:$0xff]
    %v162 = vld [vmem:[%s0 + $0x4b0] sm:$0xff]
    %v163 = vld [vmem:[%s0 + $0x4b8] sm:$0xff]
    %v164 = vld [vmem:[%s0 + $0x4c0] sm:$0xff]
    %v165 = vld [vmem:[%s0 + $0x4c8] sm:$0xff]
    %v166 = vld [vmem:[%s0 + $0x4d0] sm:$0xff]
    %v167 = vld [vmem:[%s0 + $0x4d8] sm:$0xff]
    %v168 = vld [vmem:[%s0 + $0x4e0] sm:$0xff]
    %v169 = vld [vmem:[%s0 + $0x4e8] sm:$0xff]
    %v170 = vld [vmem:[%s0 + $0x4f0] sm:$0xff]
    %v171 = vld [vmem:[%s0 + $0x4f8] sm:$0xff]
    %v172 = vld [vmem:[%s0 + $0x500] sm:$0xff]
    %v173 = vld [vmem:[%s0 + $0x508] sm:$0xff]
    %v174 = vld [vmem:[%s0 + $0x510] sm:$0xff]
    %v175 = vld [vmem:[%s0 + $0x518] sm:$0xff]
    %v176 = vld [vmem:[%s0 + $0x520] sm:$0xff]
    %v177 = vld [vmem:[%s0 + $0x528] sm:$0xff]
    %v178 = vld [vmem:[%s0 + $0x530] sm:$0xff]
    %v179 = vld [vmem:[%s0 + $0x538] sm:$0xff]
    %v180 = vld [vmem:[%s0 + $0x540] sm:$0xff]
    %v181 = vld [vmem:[%s0 + $0x548] sm:$0xff]
    %v182 = vld [vmem:[%s0 + $0x550] sm:$0xff]
    %v183 = vld [vmem:[%s0 + $0x558] sm:$0xff]
    %v184 = vld [vmem:[%s0 + $0x560] sm:$0xff]
    %v185 = vld [vmem:[%s0 + $0x568] sm:$0xff]
    %v186 = vld [vmem:[%s0 + $0x570] sm:$0xff]
    %v187 = vld [vmem:[%s0 + $0x578] sm:$0xff]
    %v188 = vld [vmem:[%s0 + $0x580] sm:$0xff]
    %v189 = vld [vmem:[%s0 + $0x588] sm:$0xff]
    %v190 = vld [vmem:[%s0 + $0x590] sm:$0xff]
    %v191 = vld [vmem:[%s0 + $0x598] sm:$0xff]
    %v192 = vld [vmem:[%s0 + $0x5a0] sm:$0xff]
    %v193 = vld [vmem:[%s0 + $0x5a8] sm:$0xff]
    %v194 = vld [vmem:[%s0 + $0x5b0] sm:$0xff]
    %v195 = vld [vmem:[%s0 + $0x5b8] sm:$0xff]
    %v196 = vld [vmem:[%s0 + $0x5c0] sm:$0xff]
    %v197 = vld [vmem:[%s0 + $0x5c8] sm:$0xff]
    %v198 = vld [vmem:[%s0 + $0x5d0] sm:$0xff]
    %v199 = vld [vmem:[%s0 + $0x5d8] sm:$0xff]
    %v200 = vld [vmem:[%s0 + $0x5e0] sm:$0xff]
    %v201 = vld [vmem:[%s0 + $0x5e8] sm:$0xff]
    %v202 = vld [vmem:[%s0 + $0x5f0] sm:$0xff]
    %v203 = vld [vmem:[%s0 + $0x5f8] sm:$0xff]
    %v204 = vld [vmem:[%s0 + $0x600] sm:$0xff]
    %v205 = vld [vmem:[%s0 + $0x608] sm:$0xff]
    %v206 = vld [vmem:[%s0 + $0x610] sm:$0xff]
    %v207 = vld [vmem:[%s0 + $0x618] sm:$0xff]
    %v208 = vld [vmem:[%s0 + $0x620] sm:$0xff]
    %v209 = vld [vmem:[%s0 + $0x628] sm:$0xff]
    %v210 = vld [vmem:[%s0 + $0x630] sm:$0xff]
    %v211 = vld [vmem:[%s0 + $0x638] sm:$0xff]
    %v212 = vld [vmem:[%s0 + $0x640] sm:$0xff]
    %v213 = vld [vmem:[%s0 + $0x648] sm:$0xff]
    %v214 = vld [vmem:[%s0 + $0x650] sm:$0xff]
    %v215 = vld [vmem:[%s0 + $0x658] sm:$0xff]
    %v216 = vld [vmem:[%s0 + $0x660] sm:$0xff]
    %v217 = vld [vmem:[%s0 + $0x668] sm:$0xff]
    %v218 = vld [vmem:[%s0 + $0x670] sm:$0xff]
    %v219 = vld [vmem:[%s0 + $0x678] sm:$0xff]
    %v220 = vld [vmem:[%s0 + $0x680] sm:$0xff]
    %v221 = vld [vmem:[%s0 + $0x688] sm:$0xff]
    %v222 = vld [vmem:[%s0 + $0x690] sm:$0xff]
    %v223 = vld [vmem:[%s0 + $0x698] sm:$0xff]
    %v224 = vld [vmem:[%s0 + $0x6a0] sm:$0xff]
    %v225 = vld [vmem:[%s0 + $0x6a8] sm:$0xff]
    %v226 = vld [vmem:[%s0 + $0x6b0] sm:$0xff]
    %v227 = vld [vmem:[%s0 + $0x6b8] sm:$0xff]
    %v228 = vld [vmem:[%s0 + $0x6c0] sm:$0xff]
    %v229 = vld [vmem:[%s0 + $0x6c8] sm:$0xff]
    %v230 = vld [vmem:[%s0 + $0x6d0] sm:$0xff]
    %v231 = vld [vmem:[%s0 + $0x6d8] sm:$0xff]
    %v232 = vld [vmem:[%s0 + $0x6e0] sm:$0xff]
    %v233 = vld [vmem:[%s0 + $0x6e8] sm:$0xff]
    %v234 = vld [vmem:[%s0 + $0x6f0] sm:$0xff]
    %v235 = vld [vmem:[%s0 + $0x6f8] sm:$0xff]
    %v236 = vld [vmem:[%s0 + $0x700] sm:$0xff]
    %v237 = vld [vmem:[%s0 + $0x708] sm:$0xff]
    %v238 = vld [vmem:[%s0 + $0x710] sm:$0xff]
    %v239 = vld [vmem:[%s0 + $0x718] sm:$0xff]
    %v240 = vld [vmem:[%s0 + $0x720] sm:$0xff]
    %v241 = vld [vmem:[%s0 + $0x728] sm:$0xff]
    %v242 = vld [vmem:[%s0 + $0x730] sm:$0xff]
    %v243 = vld [vmem:[%s0 + $0x738] sm:$0xff]
    %v244 = vld [vmem:[%s0 + $0x740] sm:$0xff]
    %v245 = vld [vmem:[%s0 + $0x748] sm:$0xff]
    %v246 = vld [vmem:[%s0 + $0x750] sm:$0xff]
    %v247 = vld [vmem:[%s0 + $0x758] sm:$0xff]
    %v248 = vld [vmem:[%s0 + $0x760] sm:$0xff]
    %v249 = vld [vmem:[%s0 + $0x768] sm:$0xff]
    %v250 = vld [vmem:[%s0 + $0x770] sm:$0xff]
    %v251 = vld [vmem:[%s0 + $0x778] sm:$0xff]
    %v252 = vld [vmem:[%s0 + $0x780] sm:$0xff]
    %v253 = vld [vmem:[%s0 + $0x788] sm:$0xff]
    %v254 = vld [vmem:[%s0 + $0x790] sm:$0xff]
    %v255 = vld [vmem:[%s0 + $0x798] sm:$0xff]
    %v256 = vld [vmem:[%s0 + $0x7a0] sm:$0xff]
    %v257 = vld [vmem:[%s0 + $0x7a8] sm:$0xff]
    %v258 = vld [vmem:[%s0 + $0x7b0] sm:$0xff]
    %v259 = vld [vmem:[%s0 + $0x7b8] sm:$0xff]
    %v260 = vld [vmem:[%s0 + $0x7c0] sm:$0xff]
    %v261 = vld [vmem:[%s0 + $0x7c8] sm:$0xff]
    %v262 = vld [vmem:[%s0 + $0x7d0] sm:$0xff]
    %v263 = vld [vmem:[%s0 + $0x7d8] sm:$0xff]
    %v264 = vld [vmem:[%s0 + $0x7e0] sm:$0xff]
    %v265 = vld [vmem:[%s0 + $0x7e8] sm:$0xff]
    %v266 = vld [vmem:[%s0 + $0x7f0] sm:$0xff]
    %v267 = vld [vmem:[%s0 + $0x7f8] sm:$0xff]
    %v268 = vld [vmem:[%s0 + $0x800] sm:$0xff]
    %v269 = vld [vmem:[%s0 + $0x808] sm:$0xff]
    %v270 = vld [vmem:[%s0 + $0x810] sm:$0xff]
    %v271 = vld [vmem:[%s0 + $0x818] sm:$0xff]
    %v272 = vld [vmem:[%s0 + $0x820] sm:$0xff]
    %v273 = vld [vmem:[%s0 + $0x828] sm:$0xff]
    %v274 = vld [vmem:[%s0 + $0x830] sm:$0xff]
    %v275 = vld [vmem:[%s0 + $0x838] sm:$0xff]
    %v276 = vld [vmem:[%s0 + $0x840] sm:$0xff]
    %v277 = vld [vmem:[%s0 + $0x848] sm:$0xff]
    %v278 = vld [vmem:[%s0 + $0x850] sm:$0xff]
    %v279 = vld [vmem:[%s0 + $0x858] sm:$0xff]
    %v280 = vld [vmem:[%s0 + $0x860] sm:$0xff]
    %v281 = vld [vmem:[%s0 + $0x868] sm:$0xff]
    %v282 = vld [vmem:[%s0 + $0x870] sm:$0xff]
    %v283 = vld [vmem:[%s0 + $0x878] sm:$0xff]
    %v284 = vld [vmem:[%s0 + $0x880] sm:$0xff]
    %v285 = vld [vmem:[%s0 + $0x888] sm:$0xff]
    %v286 = vld [vmem:[%s0 + $0x890] sm:$0xff]
    %v287 = vld [vmem:[%s0 + $0x898] sm:$0xff]
    %v288 = vld [vmem:[%s0 + $0x8a0] sm:$0xff]
    %v289 = vld [vmem:[%s0 + $0x8a8] sm:$0xff]
    %v290 = vld [vmem:[%s0 + $0x8b0] sm:$0xff]
    %v291 = vld [vmem:[%s0 + $0x8b8] sm:$0xff]
    %v292 = vld [vmem:[%s0 + $0x8c0] sm:$0xff]
    %v293 = vld [vmem:[%s0 + $0x8c8] sm:$0xff]
    %v294 = vld [vmem:[%s0 + $0x8d0] sm:$0xff]
    %v295 = vld [vmem:[%s0 + $0x8d8] sm:$0xff]
    %v296 = vld [vmem:[%s0 + $0x8e0] sm:$0xff]
    %v297 = vld [vmem:[%s0 + $0x8e8] sm:$0xff]
    %v298 = vld [vmem:[%s0 + $0x8f0] sm:$0xff]
    %v299 = vld [vmem:[%s0 + $0x8f8] sm:$0xff]
    %v300 = vld [vmem:[%s0 + $0x900] sm:$0xff]
    %v301 = vld [vmem:[%s0 + $0x908] sm:$0xff]
    %v302 = vld [vmem:[%s0 + $0x910] sm:$0xff]
    %v303 = vld [vmem:[%s0 + $0x918] sm:$0xff]
    %v304 = vld [vmem:[%s0 + $0x920] sm:$0xff]
    %v305 = vld [vmem:[%s0 + $0x928] sm:$0xff]
    %v306 = vld [vmem:[%s0 + $0x930] sm:$0xff]
    %v307 = vld [vmem:[%s0 + $0x938] sm:$0xff]
    %v308 = vld [vmem:[%s0 + $0x940] sm:$0xff]
    %v309 = vld [vmem:[%s0 + $0x948] sm:$0xff]
    %v310 = vld [vmem:[%s0 + $0x950] sm:$0xff]
    %v311 = vld [vmem:[%s0 + $0x958] sm:$0xff]
    %v312 = vld [vmem:[%s0 + $0x960] sm:$0xff]
    %v313 = vld [vmem:[%s0 + $0x968] sm:$0xff]
    %v314 = vld [vmem:[%s0 + $0x970] sm:$0xff]
    %v315 = vld [vmem:[%s0 + $0x978] sm:$0xff]
    %v316 = vld [vmem:[%s0 + $0x980] sm:$0xff]
    %v317 = vld [vmem:[%s0 + $0x988] sm:$0xff]
    %v318 = vld [vmem:[%s0 + $0x990] sm:$0xff]
    %v319 = vld [vmem:[%s0 + $0x998] sm:$0xff]
    %v320 = vld [vmem:[%s0 + $0x9a0] sm:$0xff]
    %v321 = vld [vmem:[%s0 + $0x9a8] sm:$0xff]
    %v322 = vld [vmem:[%s0 + $0x9b0] sm:$0xff]
    %v323 = vld [vmem:[%s0 + $0x9b8] sm:$0xff]
    %v324 = vld [vmem:[%s0 + $0x9c0] sm:$0xff]
    %v325 = vld [vmem:[%s1] sm:$0x3]
    %v326 = vsub.f32 0.0, %v12
    %v327 = vsub.f32 0.0, %v13
    %v328 = vsub.f32 0.0, %v14
    %v329 = vsub.f32 0.0, %v15
    %v330 = vsub.f32 0.0, %v16
    %v331 = vsub.f32 0.0, %v17
    %v332 = vsub.f32 0.0, %v18
    %v333 = vsub.f32 0.0, %v19
    %v334 = vsub.f32 0.0, %v20
    %v335 = vsub.f32 0.0, %v21
    %v336 = vsub.f32 0.0, %v22
    %v337 = vsub.f32 0.0, %v23
    %v338 = vsub.f32 0.0, %v24
    %v339 = vsub.f32 0.0, %v25
    %v340 = vsub.f32 0.0, %v26
    %v341 = vsub.f32 0.0, %v27
    %v342 = vsub.f32 0.0, %v28
    %v343 = vsub.f32 0.0, %v29
    %v344 = vsub.f32 0.0, %v30
    %v345 = vsub.f32 0.0, %v31
    %v346 = vsub.f32 0.0, %v32
    %v347 = vsub.f32 0.0, %v33
    %v348 = vsub.f32 0.0, %v34
    %v349 = vsub.f32 0.0, %v35
    %v350 = vsub.f32 0.0, %v36
    %v351 = vsub.f32 0.0, %v37
    %v352 = vsub.f32 0.0, %v38
    %v353 = vsub.f32 0.0, %v39
    %v354 = vsub.f32 0.0, %v40
    %v355 = vsub.f32 0.0, %v41
    %v356 = vsub.f32 0.0, %v42
    %v357 = vsub.f32 0.0, %v43
    %v358 = vsub.f32 0.0, %v44
    %v359 = vsub.f32 0.0, %v45
    %v360 = vsub.f32 0.0, %v46
    %v361 = vsub.f32 0.0, %v47
    %v362 = vsub.f32 0.0, %v48
    %v363 = vsub.f32 0.0, %v49
    %v364 = vsub.f32 0.0, %v50
    %v365 = vsub.f32 0.0, %v51
    %v366 = vsub.f32 0.0, %v52
    %v367 = vsub.f32 0.0, %v53
    %v368 = vsub.f32 0.0, %v54
    %v369 = vsub.f32 0.0, %v55
    %v370 = vsub.f32 0.0, %v56
    %v371 = vsub.f32 0.0, %v57
    %v372 = vsub.f32 0.0, %v58
    %v373 = vsub.f32 0.0, %v59
    %v374 = vsub.f32 0.0, %v60
    %v375 = vsub.f32 0.0, %v61
    %v376 = vsub.f32 0.0, %v62
    %v377 = vsub.f32 0.0, %v63
    %v378 = vsub.f32 0.0, %v64
    %v379 = vsub.f32 0.0, %v65
    %v380 = vsub.f32 0.0, %v66
    %v381 = vsub.f32 0.0, %v67
    %v382 = vsub.f32 0.0, %v68
    %v383 = vsub.f32 0.0, %v69
    %v384 = vsub.f32 0.0, %v70
    %v385 = vsub.f32 0.0, %v71
    %v386 = vsub.f32 0.0, %v72
    %v387 = vsub.f32 0.0, %v73
    %v388 = vsub.f32 0.0, %v74
    %v389 = vsub.f32 0.0, %v75
    %v390 = vsub.f32 0.0, %v76
    %v391 = vsub.f32 0.0, %v77
    %v392 = vsub.f32 0.0, %v78
    %v393 = vsub.f32 0.0, %v79
    %v394 = vsub.f32 0.0, %v80
    %v395 = vsub.f32 0.0, %v81
    %v396 = vsub.f32 0.0, %v82
    %v397 = vsub.f32 0.0, %v83
    %v398 = vsub.f32 0.0, %v84
    %v399 = vsub.f32 0.0, %v85
    %v400 = vsub.f32 0.0, %v86
    %v401 = vsub.f32 0.0, %v87
    %v402 = vsub.f32 0.0, %v88
    %v403 = vsub.f32 0.0, %v89
    %v404 = vsub.f32 0.0, %v90
    %v405 = vsub.f32 0.0, %v91
    %v406 = vsub.f32 0.0, %v92
    %v407 = vsub.f32 0.0, %v93
    %v408 = vsub.f32 0.0, %v94
    %v409 = vsub.f32 0.0, %v95
    %v410 = vsub.f32 0.0, %v96
    %v411 = vsub.f32 0.0, %v97
    %v412 = vsub.f32 0.0, %v98
    %v413 = vsub.f32 0.0, %v99
    %v414 = vsub.f32 0.0, %v100
    %v415 = vsub.f32 0.0, %v101
    %v416 = vsub.f32 0.0, %v102
    %v417 = vsub.f32 0.0, %v103
    %v418 = vsub.f32 0.0, %v104
    %v419 = vsub.f32 0.0, %v105
    %v420 = vsub.f32 0.0, %v106
    %v421 = vsub.f32 0.0, %v107
    %v422 = vsub.f32 0.0, %v108
    %v423 = vsub.f32 0.0, %v109
    %v424 = vsub.f32 0.0, %v110
    %v425 = vsub.f32 0.0, %v111
    %v426 = vsub.f32 0.0, %v112
    %v427 = vsub.f32 0.0, %v113
    %v428 = vsub.f32 0.0, %v114
    %v429 = vsub.f32 0.0, %v115
    %v430 = vsub.f32 0.0, %v116
    %v431 = vsub.f32 0.0, %v117
    %v432 = vsub.f32 0.0, %v118
    %v433 = vsub.f32 0.0, %v119
    %v434 = vsub.f32 0.0, %v120
    %v435 = vsub.f32 0.0, %v121
    %v436 = vsub.f32 0.0, %v122
    %v437 = vsub.f32 0.0, %v123
    %v438 = vsub.f32 0.0, %v124
    %v439 = vsub.f32 0.0, %v125
    %v440 = vsub.f32 0.0, %v126
    %v441 = vsub.f32 0.0, %v127
    %v442 = vsub.f32 0.0, %v128
    %v443 = vsub.f32 0.0, %v129
    %v444 = vsub.f32 0.0, %v130
    %v445 = vsub.f32 0.0, %v131
    %v446 = vsub.f32 0.0, %v132
    %v447 = vsub.f32 0.0, %v133
    %v448 = vsub.f32 0.0, %v134
    %v449 = vsub.f32 0.0, %v135
    %v450 = vsub.f32 0.0, %v136
    %v451 = vsub.f32 0.0, %v137
    %v452 = vsub.f32 0.0, %v138
    %v453 = vsub.f32 0.0, %v139
    %v454 = vsub.f32 0.0, %v140
    %v455 = vsub.f32 0.0, %v141
    %v456 = vsub.f32 0.0, %v142
    %v457 = vsub.f32 0.0, %v143
    %v458 = vsub.f32 0.0, %v144
    %v459 = vsub.f32 0.0, %v145
    %v460 = vsub.f32 0.0, %v146
    %v461 = vsub.f32 0.0, %v147
    %v462 = vsub.f32 0.0, %v148
    %v463 = vsub.f32 0.0, %v149
    %v464 = vsub.f32 0.0, %v150
    %v465 = vsub.f32 0.0, %v151
    %v466 = vsub.f32 0.0, %v152
    %v467 = vsub.f32 0.0, %v153
    %v468 = vsub.f32 0.0, %v154
    %v469 = vsub.f32 0.0, %v155
    %v470 = vsub.f32 0.0, %v156
    %v471 = vsub.f32 0.0, %v157
    %v472 = vsub.f32 0.0, %v158
    %v473 = vsub.f32 0.0, %v159
    %v474 = vsub.f32 0.0, %v160
    %v475 = vsub.f32 0.0, %v161
    %v476 = vsub.f32 0.0, %v162
    %v477 = vsub.f32 0.0, %v163
    %v478 = vsub.f32 0.0, %v164
    %v479 = vsub.f32 0.0, %v165
    %v480 = vsub.f32 0.0, %v166
    %v481 = vsub.f32 0.0, %v167
    %v482 = vsub.f32 0.0, %v168
    %v483 = vsub.f32 0.0, %v169
    %v484 = vsub.f32 0.0, %v170
    %v485 = vsub.f32 0.0, %v171
    %v486 = vsub.f32 0.0, %v172
    %v487 = vsub.f32 0.0, %v173
    %v488 = vsub.f32 0.0, %v174
    %v489 = vsub.f32 0.0, %v175
    %v490 = vsub.f32 0.0, %v176
    %v491 = vsub.f32 0.0, %v177
    %v492 = vsub.f32 0.0, %v178
    %v493 = vsub.f32 0.0, %v179
    %v494 = vsub.f32 0.0, %v180
    %v495 = vsub.f32 0.0, %v181
    %v496 = vsub.f32 0.0, %v182
    %v497 = vsub.f32 0.0, %v183
    %v498 = vsub.f32 0.0, %v184
    %v499 = vsub.f32 0.0, %v185
    %v500 = vsub.f32 0.0, %v186
    %v501 = vsub.f32 0.0, %v187
    %v502 = vsub.f32 0.0, %v188
    %v503 = vsub.f32 0.0, %v189
    %v504 = vsub.f32 0.0, %v190
    %v505 = vsub.f32 0.0, %v191
    %v506 = vsub.f32 0.0, %v192
    %v507 = vsub.f32 0.0, %v193
    %v508 = vsub.f32 0.0, %v194
    %v509 = vsub.f32 0.0, %v195
    %v510 = vsub.f32 0.0, %v196
    %v511 = vsub.f32 0.0, %v197
    %v512 = vsub.f32 0.0, %v198
    %v513 = vsub.f32 0.0, %v199
    %v514 = vsub.f32 0.0, %v200
    %v515 = vsub.f32 0.0, %v201
    %v516 = vsub.f32 0.0, %v202
    %v517 = vsub.f32 0.0, %v203
    %v518 = vsub.f32 0.0, %v204
    %v519 = vsub.f32 0.0, %v205
    %v520 = vsub.f32 0.0, %v206
    %v521 = vsub.f32 0.0, %v207
    %v522 = vsub.f32 0.0, %v208
    %v523 = vsub.f32 0.0, %v209
    %v524 = vsub.f32 0.0, %v210
    %v525 = vsub.f32 0.0, %v211
    %v526 = vsub.f32 0.0, %v212
    %v527 = vsub.f32 0.0, %v213
    %v528 = vsub.f32 0.0, %v214
    %v529 = vsub.f32 0.0, %v215
    %v530 = vsub.f32 0.0, %v216
    %v531 = vsub.f32 0.0, %v217
    %v532 = vsub.f32 0.0, %v218
    %v533 = vsub.f32 0.0, %v219
    %v534 = vsub.f32 0.0, %v220
    %v535 = vsub.f32 0.0, %v221
    %v536 = vsub.f32 0.0, %v222
    %v537 = vsub.f32 0.0, %v223
    %v538 = vsub.f32 0.0, %v224
    %v539 = vsub.f32 0.0, %v225
    %v540 = vsub.f32 0.0, %v226
    %v541 = vsub.f32 0.0, %v227
    %v542 = vsub.f32 0.0, %v228
    %v543 = vsub.f32 0.0, %v229
    %v544 = vsub.f32 0.0, %v230
    %v545 = vsub.f32 0.0, %v231
    %v546 = vsub.f32 0.0, %v232
    %v547 = vsub.f32 0.0, %v233
    %v548 = vsub.f32 0.0, %v234
    %v549 = vsub.f32 0.0, %v235
    %v550 = vsub.f32 0.0, %v236
    %v551 = vsub.f32 0.0, %v237
    %v552 = vsub.f32 0.0, %v238
    %v553 = vsub.f32 0.0, %v239
    %v554 = vsub.f32 0.0, %v240
    %v555 = vsub.f32 0.0, %v241
    %v556 = vsub.f32 0.0, %v242
    %v557 = vsub.f32 0.0, %v243
    %v558 = vsub.f32 0.0, %v244
    %v559 = vsub.f32 0.0, %v245
    %v560 = vsub.f32 0.0, %v246
    %v561 = vsub.f32 0.0, %v247
    %v562 = vsub.f32 0.0, %v248
    %v563 = vsub.f32 0.0, %v249
    %v564 = vsub.f32 0.0, %v250
    %v565 = vsub.f32 0.0, %v251
    %v566 = vsub.f32 0.0, %v252
    %v567 = vsub.f32 0.0, %v253
    %v568 = vsub.f32 0.0, %v254
    %v569 = vsub.f32 0.0, %v255
    %v570 = vsub.f32 0.0, %v256
    %v571 = vsub.f32 0.0, %v257
    %v572 = vsub.f32 0.0, %v258
    %v573 = vsub.f32 0.0, %v259
    %v574 = vsub.f32 0.0, %v260
    %v575 = vsub.f32 0.0, %v261
    %v576 = vsub.f32 0.0, %v262
    %v577 = vsub.f32 0.0, %v263
    %v578 = vsub.f32 0.0, %v264
    %v579 = vsub.f32 0.0, %v265
    %v580 = vsub.f32 0.0, %v266
    %v581 = vsub.f32 0.0, %v267
    %v582 = vsub.f32 0.0, %v268
    %v583 = vsub.f32 0.0, %v269
    %v584 = vsub.f32 0.0, %v270
    %v585 = vsub.f32 0.0, %v271
    %v586 = vsub.f32 0.0, %v272
    %v587 = vsub.f32 0.0, %v273
    %v588 = vsub.f32 0.0, %v274
    %v589 = vsub.f32 0.0, %v275
    %v590 = vsub.f32 0.0, %v276
    %v591 = vsub.f32 0.0, %v277
    %v592 = vsub.f32 0.0, %v278
    %v593 = vsub.f32 0.0, %v279
    %v594 = vsub.f32 0.0, %v280
    %v595 = vsub.f32 0.0, %v281
    %v596 = vsub.f32 0.0, %v282
    %v597 = vsub.f32 0.0, %v283
    %v598 = vsub.f32 0.0, %v284
    %v599 = vsub.f32 0.0, %v285
    %v600 = vsub.f32 0.0, %v286
    %v601 = vsub.f32 0.0, %v287
    %v602 = vsub.f32 0.0, %v288
    %v603 = vsub.f32 0.0, %v289
    %v604 = vsub.f32 0.0, %v290
    %v605 = vsub.f32 0.0, %v291
    %v606 = vsub.f32 0.0, %v292
    %v607 = vsub.f32 0.0, %v293
    %v608 = vsub.f32 0.0, %v294
    %v609 = vsub.f32 0.0, %v295
    %v610 = vsub.f32 0.0, %v296
    %v611 = vsub.f32 0.0, %v297
    %v612 = vsub.f32 0.0, %v298
    %v613 = vsub.f32 0.0, %v299
    %v614 = vsub.f32 0.0, %v300
    %v615 = vsub.f32 0.0, %v301
    %v616 = vsub.f32 0.0, %v302
    %v617 = vsub.f32 0.0, %v303
    %v618 = vsub.f32 0.0, %v304
    %v619 = vsub.f32 0.0, %v305
    %v620 = vsub.f32 0.0, %v306
    %v621 = vsub.f32 0.0, %v307
    %v622 = vsub.f32 0.0, %v308
    %v623 = vsub.f32 0.0, %v309
    %v624 = vsub.f32 0.0, %v310
    %v625 = vsub.f32 0.0, %v311
    %v626 = vsub.f32 0.0, %v312
    %v627 = vsub.f32 0.0, %v313
    %v628 = vsub.f32 0.0, %v314
    %v629 = vsub.f32 0.0, %v315
    %v630 = vsub.f32 0.0, %v316
    %v631 = vsub.f32 0.0, %v317
    %v632 = vsub.f32 0.0, %v318
    %v633 = vsub.f32 0.0, %v319
    %v634 = vsub.f32 0.0, %v320
    %v635 = vsub.f32 0.0, %v321
    %v636 = vsub.f32 0.0, %v322
    %v637 = vsub.f32 0.0, %v323
    %v638 = vsub.f32 0.0, %v324
    %v639 = vmul.f32 %v326, 1.442695
    %v640 = vpow.pop %v639
    %v641 = vmul.f32 %v327, 1.442695
    %v642 = vpow.pop %v641
    %v643 = vmul.f32 %v328, 1.442695
    %v644 = vpow.pop %v643
    %v645 = vmul.f32 %v329, 1.442695
    %v646 = vpow.pop %v645
    %v647 = vmul.f32 %v330, 1.442695
    %v648 = vpow.pop %v647
    %v649 = vmul.f32 %v331, 1.442695
    %v650 = vpow.pop %v649
    %v651 = vmul.f32 %v332, 1.442695
    %v652 = vpow.pop %v651
    %v653 = vmul.f32 %v333, 1.442695
    %v654 = vpow.pop %v653
    %v655 = vmul.f32 %v334, 1.442695
    %v656 = vpow.pop %v655
    %v657 = vmul.f32 %v335, 1.442695
    %v658 = vpow.pop %v657
    %v659 = vmul.f32 %v336, 1.442695
    %v660 = vpow.pop %v659
    %v661 = vmul.f32 %v337, 1.442695
    %v662 = vpow.pop %v661
    %v663 = vmul.f32 %v338, 1.442695
    %v664 = vpow.pop %v663
    %v665 = vmul.f32 %v339, 1.442695
    %v666 = vpow.pop %v665
    %v667 = vmul.f32 %v340, 1.442695
    %v668 = vpow.pop %v667
    %v669 = vmul.f32 %v341, 1.442695
    %v670 = vpow.pop %v669
    %v671 = vmul.f32 %v342, 1.442695
    %v672 = vpow.pop %v671
    %v673 = vmul.f32 %v343, 1.442695
    %v674 = vpow.pop %v673
    %v675 = vmul.f32 %v344, 1.442695
    %v676 = vpow.pop %v675
    %v677 = vmul.f32 %v345, 1.442695
    %v678 = vpow.pop %v677
    %v679 = vmul.f32 %v346, 1.442695
    %v680 = vpow.pop %v679
    %v681 = vmul.f32 %v347, 1.442695
    %v682 = vpow.pop %v681
    %v683 = vmul.f32 %v348, 1.442695
    %v684 = vpow.pop %v683
    %v685 = vmul.f32 %v349, 1.442695
    %v686 = vpow.pop %v685
    %v687 = vmul.f32 %v350, 1.442695
    %v688 = vpow.pop %v687
    %v689 = vmul.f32 %v351, 1.442695
    %v690 = vpow.pop %v689
    %v691 = vmul.f32 %v352, 1.442695
    %v692 = vpow.pop %v691
    %v693 = vmul.f32 %v353, 1.442695
    %v694 = vpow.pop %v693
    %v695 = vmul.f32 %v354, 1.442695
    %v696 = vpow.pop %v695
    %v697 = vmul.f32 %v355, 1.442695
    %v698 = vpow.pop %v697
    %v699 = vmul.f32 %v356, 1.442695
    %v700 = vpow.pop %v699
    %v701 = vmul.f32 %v357, 1.442695
    %v702 = vpow.pop %v701
    %v703 = vmul.f32 %v358, 1.442695
    %v704 = vpow.pop %v703
    %v705 = vmul.f32 %v359, 1.442695
    %v706 = vpow.pop %v705
    %v707 = vmul.f32 %v360, 1.442695
    %v708 = vpow.pop %v707
    %v709 = vmul.f32 %v361, 1.442695
    %v710 = vpow.pop %v709
    %v711 = vmul.f32 %v362, 1.442695
    %v712 = vpow.pop %v711
    %v713 = vmul.f32 %v363, 1.442695
    %v714 = vpow.pop %v713
    %v715 = vmul.f32 %v364, 1.442695
    %v716 = vpow.pop %v715
    %v717 = vmul.f32 %v365, 1.442695
    %v718 = vpow.pop %v717
    %v719 = vmul.f32 %v366, 1.442695
    %v720 = vpow.pop %v719
    %v721 = vmul.f32 %v367, 1.442695
    %v722 = vpow.pop %v721
    %v723 = vmul.f32 %v368, 1.442695
    %v724 = vpow.pop %v723
    %v725 = vmul.f32 %v369, 1.442695
    %v726 = vpow.pop %v725
    %v727 = vmul.f32 %v370, 1.442695
    %v728 = vpow.pop %v727
    %v729 = vmul.f32 %v371, 1.442695
    %v730 = vpow.pop %v729
    %v731 = vmul.f32 %v372, 1.442695
    %v732 = vpow.pop %v731
    %v733 = vmul.f32 %v373, 1.442695
    %v734 = vpow.pop %v733
    %v735 = vmul.f32 %v374, 1.442695
    %v736 = vpow.pop %v735
    %v737 = vmul.f32 %v375, 1.442695
    %v738 = vpow.pop %v737
    %v739 = vmul.f32 %v376, 1.442695
    %v740 = vpow.pop %v739
    %v741 = vmul.f32 %v377, 1.442695
    %v742 = vpow.pop %v741
    %v743 = vmul.f32 %v378, 1.442695
    %v744 = vpow.pop %v743
    %v745 = vmul.f32 %v379, 1.442695
    %v746 = vpow.pop %v745
    %v747 = vmul.f32 %v380, 1.442695
    %v748 = vpow.pop %v747
    %v749 = vmul.f32 %v381, 1.442695
    %v750 = vpow.pop %v749
    %v751 = vmul.f32 %v382, 1.442695
    %v752 = vpow.pop %v751
    %v753 = vmul.f32 %v383, 1.442695
    %v754 = vpow.pop %v753
    %v755 = vmul.f32 %v384, 1.442695
    %v756 = vpow.pop %v755
    %v757 = vmul.f32 %v385, 1.442695
    %v758 = vpow.pop %v757
    %v759 = vmul.f32 %v386, 1.442695
    %v760 = vpow.pop %v759
    %v761 = vmul.f32 %v387, 1.442695
    %v762 = vpow.pop %v761
    %v763 = vmul.f32 %v388, 1.442695
    %v764 = vpow.pop %v763
    %v765 = vmul.f32 %v389, 1.442695
    %v766 = vpow.pop %v765
    %v767 = vmul.f32 %v390, 1.442695
    %v768 = vpow.pop %v767
    %v769 = vmul.f32 %v391, 1.442695
    %v770 = vpow.pop %v769
    %v771 = vmul.f32 %v392, 1.442695
    %v772 = vpow.pop %v771
    %v773 = vmul.f32 %v393, 1.442695
    %v774 = vpow.pop %v773
    %v775 = vmul.f32 %v394, 1.442695
    %v776 = vpow.pop %v775
    %v777 = vmul.f32 %v395, 1.442695
    %v778 = vpow.pop %v777
    %v779 = vmul.f32 %v396, 1.442695
    %v780 = vpow.pop %v779
    %v781 = vmul.f32 %v397, 1.442695
    %v782 = vpow.pop %v781
    %v783 = vmul.f32 %v398, 1.442695
    %v784 = vpow.pop %v783
    %v785 = vmul.f32 %v399, 1.442695
    %v786 = vpow.pop %v785
    %v787 = vmul.f32 %v400, 1.442695
    %v788 = vpow.pop %v787
    %v789 = vmul.f32 %v401, 1.442695
    %v790 = vpow.pop %v789
    %v791 = vmul.f32 %v402, 1.442695
    %v792 = vpow.pop %v791
    %v793 = vmul.f32 %v403, 1.442695
    %v794 = vpow.pop %v793
    %v795 = vmul.f32 %v404, 1.442695
    %v796 = vpow.pop %v795
    %v797 = vmul.f32 %v405, 1.442695
    %v798 = vpow.pop %v797
    %v799 = vmul.f32 %v406, 1.442695
    %v800 = vpow.pop %v799
    %v801 = vmul.f32 %v407, 1.442695
    %v802 = vpow.pop %v801
    %v803 = vmul.f32 %v408, 1.442695
    %v804 = vpow.pop %v803
    %v805 = vmul.f32 %v409, 1.442695
    %v806 = vpow.pop %v805
    %v807 = vmul.f32 %v410, 1.442695
    %v808 = vpow.pop %v807
    %v809 = vmul.f32 %v411, 1.442695
    %v810 = vpow.pop %v809
    %v811 = vmul.f32 %v412, 1.442695
    %v812 = vpow.pop %v811
    %v813 = vmul.f32 %v413, 1.442695
    %v814 = vpow.pop %v813
    %v815 = vmul.f32 %v414, 1.442695
    %v816 = vpow.pop %v815
    %v817 = vmul.f32 %v415, 1.442695
    %v818 = vpow.pop %v817
    %v819 = vmul.f32 %v416, 1.442695
    %v820 = vpow.pop %v819
    %v821 = vmul.f32 %v417, 1.442695
    %v822 = vpow.pop %v821
    %v823 = vmul.f32 %v418, 1.442695
    %v824 = vpow.pop %v823
    %v825 = vmul.f32 %v419, 1.442695
    %v826 = vpow.pop %v825
    %v827 = vmul.f32 %v420, 1.442695
    %v828 = vpow.pop %v827
    %v829 = vmul.f32 %v421, 1.442695
    %v830 = vpow.pop %v829
    %v831 = vmul.f32 %v422, 1.442695
    %v832 = vpow.pop %v831
    %v833 = vmul.f32 %v423, 1.442695
    %v834 = vpow.pop %v833
    %v835 = vmul.f32 %v424, 1.442695
    %v836 = vpow.pop %v835
    %v837 = vmul.f32 %v425, 1.442695
    %v838 = vpow.pop %v837
    %v839 = vmul.f32 %v426, 1.442695
    %v840 = vpow.pop %v839
    %v841 = vmul.f32 %v427, 1.442695
    %v842 = vpow.pop %v841
    %v843 = vmul.f32 %v428, 1.442695
    %v844 = vpow.pop %v843
    %v845 = vmul.f32 %v429, 1.442695
    %v846 = vpow.pop %v845
    %v847 = vmul.f32 %v430, 1.442695
    %v848 = vpow.pop %v847
    %v849 = vmul.f32 %v431, 1.442695
    %v850 = vpow.pop %v849
    %v851 = vmul.f32 %v432, 1.442695
    %v852 = vpow.pop %v851
    %v853 = vmul.f32 %v433, 1.442695
    %v854 = vpow.pop %v853
    %v855 = vmul.f32 %v434, 1.442695
    %v856 = vpow.pop %v855
    %v857 = vmul.f32 %v435, 1.442695
    %v858 = vpow.pop %v857
    %v859 = vmul.f32 %v436, 1.442695
    %v860 = vpow.pop %v859
    %v861 = vmul.f32 %v437, 1.442695
    %v862 = vpow.pop %v861
    %v863 = vmul.f32 %v438, 1.442695
    %v864 = vpow.pop %v863
    %v865 = vmul.f32 %v439, 1.442695
    %v866 = vpow.pop %v865
    %v867 = vmul.f32 %v440, 1.442695
    %v868 = vpow.pop %v867
    %v869 = vmul.f32 %v441, 1.442695
    %v870 = vpow.pop %v869
    %v871 = vmul.f32 %v442, 1.442695
    %v872 = vpow.pop %v871
    %v873 = vmul.f32 %v443, 1.442695
    %v874 = vpow.pop %v873
    %v875 = vmul.f32 %v444, 1.442695
    %v876 = vpow.pop %v875
    %v877 = vmul.f32 %v445, 1.442695
    %v878 = vpow.pop %v877
    %v879 = vmul.f32 %v446, 1.442695
    %v880 = vpow.pop %v879
    %v881 = vmul.f32 %v447, 1.442695
    %v882 = vpow.pop %v881
    %v883 = vmul.f32 %v448, 1.442695
    %v884 = vpow.pop %v883
    %v885 = vmul.f32 %v449, 1.442695
    %v886 = vpow.pop %v885
    %v887 = vmul.f32 %v450, 1.442695
    %v888 = vpow.pop %v887
    %v889 = vmul.f32 %v451, 1.442695
    %v890 = vpow.pop %v889
    %v891 = vmul.f32 %v452, 1.442695
    %v892 = vpow.pop %v891
    %v893 = vmul.f32 %v453, 1.442695
    %v894 = vpow.pop %v893
    %v895 = vmul.f32 %v454, 1.442695
    %v896 = vpow.pop %v895
    %v897 = vmul.f32 %v455, 1.442695
    %v898 = vpow.pop %v897
    %v899 = vmul.f32 %v456, 1.442695
    %v900 = vpow.pop %v899
    %v901 = vmul.f32 %v457, 1.442695
    %v902 = vpow.pop %v901
    %v903 = vmul.f32 %v458, 1.442695
    %v904 = vpow.pop %v903
    %v905 = vmul.f32 %v459, 1.442695
    %v906 = vpow.pop %v905
    %v907 = vmul.f32 %v460, 1.442695
    %v908 = vpow.pop %v907
    %v909 = vmul.f32 %v461, 1.442695
    %v910 = vpow.pop %v909
    %v911 = vmul.f32 %v462, 1.442695
    %v912 = vpow.pop %v911
    %v913 = vmul.f32 %v463, 1.442695
    %v914 = vpow.pop %v913
    %v915 = vmul.f32 %v464, 1.442695
    %v916 = vpow.pop %v915
    %v917 = vmul.f32 %v465, 1.442695
    %v918 = vpow.pop %v917
    %v919 = vmul.f32 %v466, 1.442695
    %v920 = vpow.pop %v919
    %v921 = vmul.f32 %v467, 1.442695
    %v922 = vpow.pop %v921
    %v923 = vmul.f32 %v468, 1.442695
    %v924 = vpow.pop %v923
    %v925 = vmul.f32 %v469, 1.442695
    %v926 = vpow.pop %v925
    %v927 = vmul.f32 %v470, 1.442695
    %v928 = vpow.pop %v927
    %v929 = vmul.f32 %v471, 1.442695
    %v930 = vpow.pop %v929
    %v931 = vmul.f32 %v472, 1.442695
    %v932 = vpow.pop %v931
    %v933 = vmul.f32 %v473, 1.442695
    %v934 = vpow.pop %v933
    %v935 = vmul.f32 %v474, 1.442695
    %v936 = vpow.pop %v935
    %v937 = vmul.f32 %v475, 1.442695
    %v938 = vpow.pop %v937
    %v939 = vmul.f32 %v476, 1.442695
    %v940 = vpow.pop %v939
    %v941 = vmul.f32 %v477, 1.442695
    %v942 = vpow.pop %v941
    %v943 = vmul.f32 %v478, 1.442695
    %v944 = vpow.pop %v943
    %v945 = vmul.f32 %v479, 1.442695
    %v946 = vpow.pop %v945
    %v947 = vmul.f32 %v480, 1.442695
    %v948 = vpow.pop %v947
    %v949 = vmul.f32 %v481, 1.442695
    %v950 = vpow.pop %v949
    %v951 = vmul.f32 %v482, 1.442695
    %v952 = vpow.pop %v951
    %v953 = vmul.f32 %v483, 1.442695
    %v954 = vpow.pop %v953
    %v955 = vmul.f32 %v484, 1.442695
    %v956 = vpow.pop %v955
    %v957 = vmul.f32 %v485, 1.442695
    %v958 = vpow.pop %v957
    %v959 = vmul.f32 %v486, 1.442695
    %v960 = vpow.pop %v959
    %v961 = vmul.f32 %v487, 1.442695
    %v962 = vpow.pop %v961
    %v963 = vmul.f32 %v488, 1.442695
    %v964 = vpow.pop %v963
    %v965 = vmul.f32 %v489, 1.442695
    %v966 = vpow.pop %v965
    %v967 = vmul.f32 %v490, 1.442695
    %v968 = vpow.pop %v967
    %v969 = vmul.f32 %v491, 1.442695
    %v970 = vpow.pop %v969
    %v971 = vmul.f32 %v492, 1.442695
    %v972 = vpow.pop %v971
    %v973 = vmul.f32 %v493, 1.442695
    %v974 = vpow.pop %v973
    %v975 = vmul.f32 %v494, 1.442695
    %v976 = vpow.pop %v975
    %v977 = vmul.f32 %v495, 1.442695
    %v978 = vpow.pop %v977
    %v979 = vmul.f32 %v496, 1.442695
    %v980 = vpow.pop %v979
    %v981 = vmul.f32 %v497, 1.442695
    %v982 = vpow.pop %v981
    %v983 = vmul.f32 %v498, 1.442695
    %v984 = vpow.pop %v983
    %v985 = vmul.f32 %v499, 1.442695
    %v986 = vpow.pop %v985
    %v987 = vmul.f32 %v500, 1.442695
    %v988 = vpow.pop %v987
    %v989 = vmul.f32 %v501, 1.442695
    %v990 = vpow.pop %v989
    %v991 = vmul.f32 %v502, 1.442695
    %v992 = vpow.pop %v991
    %v993 = vmul.f32 %v503, 1.442695
    %v994 = vpow.pop %v993
    %v995 = vmul.f32 %v504, 1.442695
    %v996 = vpow.pop %v995
    %v997 = vmul.f32 %v505, 1.442695
    %v998 = vpow.pop %v997
    %v999 = vmul.f32 %v506, 1.442695
    %v1000 = vpow.pop %v999
    %v1001 = vmul.f32 %v507, 1.442695
    %v1002 = vpow.pop %v1001
    %v1003 = vmul.f32 %v508, 1.442695
    %v1004 = vpow.pop %v1003
    %v1005 = vmul.f32 %v509, 1.442695
    %v1006 = vpow.pop %v1005
    %v1007 = vmul.f32 %v510, 1.442695
    %v1008 = vpow.pop %v1007
    %v1009 = vmul.f32 %v511, 1.442695
    %v1010 = vpow.pop %v1009
    %v1011 = vmul.f32 %v512, 1.442695
    %v1012 = vpow.pop %v1011
    %v1013 = vmul.f32 %v513, 1.442695
    %v1014 = vpow.pop %v1013
    %v1015 = vmul.f32 %v514, 1.442695
    %v1016 = vpow.pop %v1015
    %v1017 = vmul.f32 %v515, 1.442695
    %v1018 = vpow.pop %v1017
    %v1019 = vmul.f32 %v516, 1.442695
    %v1020 = vpow.pop %v1019
    %v1021 = vmul.f32 %v517, 1.442695
    %v1022 = vpow.pop %v1021
    %v1023 = vmul.f32 %v518, 1.442695
    %v1024 = vpow.pop %v1023
    %v1025 = vmul.f32 %v519, 1.442695
    %v1026 = vpow.pop %v1025
    %v1027 = vmul.f32 %v520, 1.442695
    %v1028 = vpow.pop %v1027
    %v1029 = vmul.f32 %v521, 1.442695
    %v1030 = vpow.pop %v1029
    %v1031 = vmul.f32 %v522, 1.442695
    %v1032 = vpow.pop %v1031
    %v1033 = vmul.f32 %v523, 1.442695
    %v1034 = vpow.pop %v1033
    %v1035 = vmul.f32 %v524, 1.442695
    %v1036 = vpow.pop %v1035
    %v1037 = vmul.f32 %v525, 1.442695
    %v1038 = vpow.pop %v1037
    %v1039 = vmul.f32 %v526, 1.442695
    %v1040 = vpow.pop %v1039
    %v1041 = vmul.f32 %v527, 1.442695
    %v1042 = vpow.pop %v1041
    %v1043 = vmul.f32 %v528, 1.442695
    %v1044 = vpow.pop %v1043
    %v1045 = vmul.f32 %v529, 1.442695
    %v1046 = vpow.pop %v1045
    %v1047 = vmul.f32 %v530, 1.442695
    %v1048 = vpow.pop %v1047
    %v1049 = vmul.f32 %v531, 1.442695
    %v1050 = vpow.pop %v1049
    %v1051 = vmul.f32 %v532, 1.442695
    %v1052 = vpow.pop %v1051
    %v1053 = vmul.f32 %v533, 1.442695
    %v1054 = vpow.pop %v1053
    %v1055 = vmul.f32 %v534, 1.442695
    %v1056 = vpow.pop %v1055
    %v1057 = vmul.f32 %v535, 1.442695
    %v1058 = vpow.pop %v1057
    %v1059 = vmul.f32 %v536, 1.442695
    %v1060 = vpow.pop %v1059
    %v1061 = vmul.f32 %v537, 1.442695
    %v1062 = vpow.pop %v1061
    %v1063 = vmul.f32 %v538, 1.442695
    %v1064 = vpow.pop %v1063
    %v1065 = vmul.f32 %v539, 1.442695
    %v1066 = vpow.pop %v1065
    %v1067 = vmul.f32 %v540, 1.442695
    %v1068 = vpow.pop %v1067
    %v1069 = vmul.f32 %v541, 1.442695
    %v1070 = vpow.pop %v1069
    %v1071 = vmul.f32 %v542, 1.442695
    %v1072 = vpow.pop %v1071
    %v1073 = vmul.f32 %v543, 1.442695
    %v1074 = vpow.pop %v1073
    %v1075 = vmul.f32 %v544, 1.442695
    %v1076 = vpow.pop %v1075
    %v1077 = vmul.f32 %v545, 1.442695
    %v1078 = vpow.pop %v1077
    %v1079 = vmul.f32 %v546, 1.442695
    %v1080 = vpow.pop %v1079
    %v1081 = vmul.f32 %v547, 1.442695
    %v1082 = vpow.pop %v1081
    %v1083 = vmul.f32 %v548, 1.442695
    %v1084 = vpow.pop %v1083
    %v1085 = vmul.f32 %v549, 1.442695
    %v1086 = vpow.pop %v1085
    %v1087 = vmul.f32 %v550, 1.442695
    %v1088 = vpow.pop %v1087
    %v1089 = vmul.f32 %v551, 1.442695
    %v1090 = vpow.pop %v1089
    %v1091 = vmul.f32 %v552, 1.442695
    %v1092 = vpow.pop %v1091
    %v1093 = vmul.f32 %v553, 1.442695
    %v1094 = vpow.pop %v1093
    %v1095 = vmul.f32 %v554, 1.442695
    %v1096 = vpow.pop %v1095
    %v1097 = vmul.f32 %v555, 1.442695
    %v1098 = vpow.pop %v1097
    %v1099 = vmul.f32 %v556, 1.442695
    %v1100 = vpow.pop %v1099
    %v1101 = vmul.f32 %v557, 1.442695
    %v1102 = vpow.pop %v1101
    %v1103 = vmul.f32 %v558, 1.442695
    %v1104 = vpow.pop %v1103
    %v1105 = vmul.f32 %v559, 1.442695
    %v1106 = vpow.pop %v1105
    %v1107 = vmul.f32 %v560, 1.442695
    %v1108 = vpow.pop %v1107
    %v1109 = vmul.f32 %v561, 1.442695
    %v1110 = vpow.pop %v1109
    %v1111 = vmul.f32 %v562, 1.442695
    %v1112 = vpow.pop %v1111
    %v1113 = vmul.f32 %v563, 1.442695
    %v1114 = vpow.pop %v1113
    %v1115 = vmul.f32 %v564, 1.442695
    %v1116 = vpow.pop %v1115
    %v1117 = vmul.f32 %v565, 1.442695
    %v1118 = vpow.pop %v1117
    %v1119 = vmul.f32 %v566, 1.442695
    %v1120 = vpow.pop %v1119
    %v1121 = vmul.f32 %v567, 1.442695
    %v1122 = vpow.pop %v1121
    %v1123 = vmul.f32 %v568, 1.442695
    %v1124 = vpow.pop %v1123
    %v1125 = vmul.f32 %v569, 1.442695
    %v1126 = vpow.pop %v1125
    %v1127 = vmul.f32 %v570, 1.442695
    %v1128 = vpow.pop %v1127
    %v1129 = vmul.f32 %v571, 1.442695
    %v1130 = vpow.pop %v1129
    %v1131 = vmul.f32 %v572, 1.442695
    %v1132 = vpow.pop %v1131
    %v1133 = vmul.f32 %v573, 1.442695
    %v1134 = vpow.pop %v1133
    %v1135 = vmul.f32 %v574, 1.442695
    %v1136 = vpow.pop %v1135
    %v1137 = vmul.f32 %v575, 1.442695
    %v1138 = vpow.pop %v1137
    %v1139 = vmul.f32 %v576, 1.442695
    %v1140 = vpow.pop %v1139
    %v1141 = vmul.f32 %v577, 1.442695
    %v1142 = vpow.pop %v1141
    %v1143 = vmul.f32 %v578, 1.442695
    %v1144 = vpow.pop %v1143
    %v1145 = vmul.f32 %v579, 1.442695
    %v1146 = vpow.pop %v1145
    %v1147 = vmul.f32 %v580, 1.442695
    %v1148 = vpow.pop %v1147
    %v1149 = vmul.f32 %v581, 1.442695
    %v1150 = vpow.pop %v1149
    %v1151 = vmul.f32 %v582, 1.442695
    %v1152 = vpow.pop %v1151
    %v1153 = vmul.f32 %v583, 1.442695
    %v1154 = vpow.pop %v1153
    %v1155 = vmul.f32 %v584, 1.442695
    %v1156 = vpow.pop %v1155
    %v1157 = vmul.f32 %v585, 1.442695
    %v1158 = vpow.pop %v1157
    %v1159 = vmul.f32 %v586, 1.442695
    %v1160 = vpow.pop %v1159
    %v1161 = vmul.f32 %v587, 1.442695
    %v1162 = vpow.pop %v1161
    %v1163 = vmul.f32 %v588, 1.442695
    %v1164 = vpow.pop %v1163
    %v1165 = vmul.f32 %v589, 1.442695
    %v1166 = vpow.pop %v1165
    %v1167 = vmul.f32 %v590, 1.442695
    %v1168 = vpow.pop %v1167
    %v1169 = vmul.f32 %v591, 1.442695
    %v1170 = vpow.pop %v1169
    %v1171 = vmul.f32 %v592, 1.442695
    %v1172 = vpow.pop %v1171
    %v1173 = vmul.f32 %v593, 1.442695
    %v1174 = vpow.pop %v1173
    %v1175 = vmul.f32 %v594, 1.442695
    %v1176 = vpow.pop %v1175
    %v1177 = vmul.f32 %v595, 1.442695
    %v1178 = vpow.pop %v1177
    %v1179 = vmul.f32 %v596, 1.442695
    %v1180 = vpow.pop %v1179
    %v1181 = vmul.f32 %v597, 1.442695
    %v1182 = vpow.pop %v1181
    %v1183 = vmul.f32 %v598, 1.442695
    %v1184 = vpow.pop %v1183
    %v1185 = vmul.f32 %v599, 1.442695
    %v1186 = vpow.pop %v1185
    %v1187 = vmul.f32 %v600, 1.442695
    %v1188 = vpow.pop %v1187
    %v1189 = vmul.f32 %v601, 1.442695
    %v1190 = vpow.pop %v1189
    %v1191 = vmul.f32 %v602, 1.442695
    %v1192 = vpow.pop %v1191
    %v1193 = vmul.f32 %v603, 1.442695
    %v1194 = vpow.pop %v1193
    %v1195 = vmul.f32 %v604, 1.442695
    %v1196 = vpow.pop %v1195
    %v1197 = vmul.f32 %v605, 1.442695
    %v1198 = vpow.pop %v1197
    %v1199 = vmul.f32 %v606, 1.442695
    %v1200 = vpow.pop %v1199
    %v1201 = vmul.f32 %v607, 1.442695
    %v1202 = vpow.pop %v1201
    %v1203 = vmul.f32 %v608, 1.442695
    %v1204 = vpow.pop %v1203
    %v1205 = vmul.f32 %v609, 1.442695
    %v1206 = vpow.pop %v1205
    %v1207 = vmul.f32 %v610, 1.442695
    %v1208 = vpow.pop %v1207
    %v1209 = vmul.f32 %v611, 1.442695
    %v1210 = vpow.pop %v1209
    %v1211 = vmul.f32 %v612, 1.442695
    %v1212 = vpow.pop %v1211
    %v1213 = vmul.f32 %v613, 1.442695
    %v1214 = vpow.pop %v1213
    %v1215 = vmul.f32 %v614, 1.442695
    %v1216 = vpow.pop %v1215
    %v1217 = vmul.f32 %v615, 1.442695
    %v1218 = vpow.pop %v1217
    %v1219 = vmul.f32 %v616, 1.442695
    %v1220 = vpow.pop %v1219
    %v1221 = vmul.f32 %v617, 1.442695
    %v1222 = vpow.pop %v1221
    %v1223 = vmul.f32 %v618, 1.442695
    %v1224 = vpow.pop %v1223
    %v1225 = vmul.f32 %v619, 1.442695
    %v1226 = vpow.pop %v1225
    %v1227 = vmul.f32 %v620, 1.442695
    %v1228 = vpow.pop %v1227
    %v1229 = vmul.f32 %v621, 1.442695
    %v1230 = vpow.pop %v1229
    %v1231 = vmul.f32 %v622, 1.442695
    %v1232 = vpow.pop %v1231
    %v1233 = vmul.f32 %v623, 1.442695
    %v1234 = vpow.pop %v1233
    %v1235 = vmul.f32 %v624, 1.442695
    %v1236 = vpow.pop %v1235
    %v1237 = vmul.f32 %v625, 1.442695
    %v1238 = vpow.pop %v1237
    %v1239 = vmul.f32 %v626, 1.442695
    %v1240 = vpow.pop %v1239
    %v1241 = vmul.f32 %v627, 1.442695
    %v1242 = vpow.pop %v1241
    %v1243 = vmul.f32 %v628, 1.442695
    %v1244 = vpow.pop %v1243
    %v1245 = vmul.f32 %v629, 1.442695
    %v1246 = vpow.pop %v1245
    %v1247 = vmul.f32 %v630, 1.442695
    %v1248 = vpow.pop %v1247
    %v1249 = vmul.f32 %v631, 1.442695
    %v1250 = vpow.pop %v1249
    %v1251 = vmul.f32 %v632, 1.442695
    %v1252 = vpow.pop %v1251
    %v1253 = vmul.f32 %v633, 1.442695
    %v1254 = vpow.pop %v1253
    %v1255 = vmul.f32 %v634, 1.442695
    %v1256 = vpow.pop %v1255
    %v1257 = vmul.f32 %v635, 1.442695
    %v1258 = vpow.pop %v1257
    %v1259 = vmul.f32 %v636, 1.442695
    %v1260 = vpow.pop %v1259
    %v1261 = vmul.f32 %v637, 1.442695
    %v1262 = vpow.pop %v1261
    %v1263 = vmul.f32 %v638, 1.442695
    %v1264 = vpow.pop %v1263
    %1266 = vset.pattern.permute.xlu0 0
    %1267 = vperm.xlu0 %1266, %v640
    %v1268 = vpop.permute.xlu0 %1267
    %1271 = vset.pattern.permute.xlu0 0
    %1272 = vperm.xlu0 %1271, %v642
    %v1273 = vpop.permute.xlu0 %1272
    %1276 = vset.pattern.permute.xlu0 0
    %1277 = vperm.xlu0 %1276, %v644
    %v1278 = vpop.permute.xlu0 %1277
    %1281 = vset.pattern.permute.xlu0 0
    %1282 = vperm.xlu0 %1281, %v646
    %v1283 = vpop.permute.xlu0 %1282
    %1286 = vset.pattern.permute.xlu0 0
    %1287 = vperm.xlu0 %1286, %v648
    %v1288 = vpop.permute.xlu0 %1287
    %1291 = vset.pattern.permute.xlu0 0
    %1292 = vperm.xlu0 %1291, %v650
    %v1293 = vpop.permute.xlu0 %1292
    %1296 = vset.pattern.permute.xlu0 0
    %1297 = vperm.xlu0 %1296, %v652
    %v1298 = vpop.permute.xlu0 %1297
    %1301 = vset.pattern.permute.xlu0 0
    %1302 = vperm.xlu0 %1301, %v654
    %v1303 = vpop.permute.xlu0 %1302
    %1306 = vset.pattern.permute.xlu0 0
    %1307 = vperm.xlu0 %1306, %v656
    %v1308 = vpop.permute.xlu0 %1307
    %1311 = vset.pattern.permute.xlu0 0
    %1312 = vperm.xlu0 %1311, %v658
    %v1313 = vpop.permute.xlu0 %1312
    %1316 = vset.pattern.permute.xlu0 0
    %1317 = vperm.xlu0 %1316, %v660
    %v1318 = vpop.permute.xlu0 %1317
    %1321 = vset.pattern.permute.xlu0 0
    %1322 = vperm.xlu0 %1321, %v662
    %v1323 = vpop.permute.xlu0 %1322
    %1326 = vset.pattern.permute.xlu0 0
    %1327 = vperm.xlu0 %1326, %v664
    %v1328 = vpop.permute.xlu0 %1327
    %1331 = vset.pattern.permute.xlu0 0
    %1332 = vperm.xlu0 %1331, %v666
    %v1333 = vpop.permute.xlu0 %1332
    %1336 = vset.pattern.permute.xlu0 0
    %1337 = vperm.xlu0 %1336, %v668
    %v1338 = vpop.permute.xlu0 %1337
    %1341 = vset.pattern.permute.xlu0 0
    %1342 = vperm.xlu0 %1341, %v670
    %v1343 = vpop.permute.xlu0 %1342
    %1346 = vset.pattern.permute.xlu0 0
    %1347 = vperm.xlu0 %1346, %v672
    %v1348 = vpop.permute.xlu0 %1347
    %1351 = vset.pattern.permute.xlu0 0
    %1352 = vperm.xlu0 %1351, %v674
    %v1353 = vpop.permute.xlu0 %1352
    %1356 = vset.pattern.permute.xlu0 0
    %1357 = vperm.xlu0 %1356, %v676
    %v1358 = vpop.permute.xlu0 %1357
    %1361 = vset.pattern.permute.xlu0 0
    %1362 = vperm.xlu0 %1361, %v678
    %v1363 = vpop.permute.xlu0 %1362
    %1366 = vset.pattern.permute.xlu0 0
    %1367 = vperm.xlu0 %1366, %v680
    %v1368 = vpop.permute.xlu0 %1367
    %1371 = vset.pattern.permute.xlu0 0
    %1372 = vperm.xlu0 %1371, %v682
    %v1373 = vpop.permute.xlu0 %1372
    %1376 = vset.pattern.permute.xlu0 0
    %1377 = vperm.xlu0 %1376, %v684
    %v1378 = vpop.permute.xlu0 %1377
    %1381 = vset.pattern.permute.xlu0 0
    %1382 = vperm.xlu0 %1381, %v686
    %v1383 = vpop.permute.xlu0 %1382
    %1386 = vset.pattern.permute.xlu0 0
    %1387 = vperm.xlu0 %1386, %v688
    %v1388 = vpop.permute.xlu0 %1387
    %1391 = vset.pattern.permute.xlu0 0
    %1392 = vperm.xlu0 %1391, %v690
    %v1393 = vpop.permute.xlu0 %1392
    %1396 = vset.pattern.permute.xlu0 0
    %1397 = vperm.xlu0 %1396, %v692
    %v1398 = vpop.permute.xlu0 %1397
    %1401 = vset.pattern.permute.xlu0 0
    %1402 = vperm.xlu0 %1401, %v694
    %v1403 = vpop.permute.xlu0 %1402
    %1406 = vset.pattern.permute.xlu0 0
    %1407 = vperm.xlu0 %1406, %v696
    %v1408 = vpop.permute.xlu0 %1407
    %1411 = vset.pattern.permute.xlu0 0
    %1412 = vperm.xlu0 %1411, %v698
    %v1413 = vpop.permute.xlu0 %1412
    %1416 = vset.pattern.permute.xlu0 0
    %1417 = vperm.xlu0 %1416, %v700
    %v1418 = vpop.permute.xlu0 %1417
    %1421 = vset.pattern.permute.xlu0 0
    %1422 = vperm.xlu0 %1421, %v702
    %v1423 = vpop.permute.xlu0 %1422
    %1426 = vset.pattern.permute.xlu0 0
    %1427 = vperm.xlu0 %1426, %v704
    %v1428 = vpop.permute.xlu0 %1427
    %1431 = vset.pattern.permute.xlu0 0
    %1432 = vperm.xlu0 %1431, %v706
    %v1433 = vpop.permute.xlu0 %1432
    %1436 = vset.pattern.permute.xlu0 0
    %1437 = vperm.xlu0 %1436, %v708
    %v1438 = vpop.permute.xlu0 %1437
    %1441 = vset.pattern.permute.xlu0 0
    %1442 = vperm.xlu0 %1441, %v710
    %v1443 = vpop.permute.xlu0 %1442
    %1446 = vset.pattern.permute.xlu0 0
    %1447 = vperm.xlu0 %1446, %v712
    %v1448 = vpop.permute.xlu0 %1447
    %1451 = vset.pattern.permute.xlu0 0
    %1452 = vperm.xlu0 %1451, %v714
    %v1453 = vpop.permute.xlu0 %1452
    %1456 = vset.pattern.permute.xlu0 0
    %1457 = vperm.xlu0 %1456, %v716
    %v1458 = vpop.permute.xlu0 %1457
    %1461 = vset.pattern.permute.xlu0 0
    %1462 = vperm.xlu0 %1461, %v718
    %v1463 = vpop.permute.xlu0 %1462
    %1466 = vset.pattern.permute.xlu0 0
    %1467 = vperm.xlu0 %1466, %v720
    %v1468 = vpop.permute.xlu0 %1467
    %1471 = vset.pattern.permute.xlu0 0
    %1472 = vperm.xlu0 %1471, %v722
    %v1473 = vpop.permute.xlu0 %1472
    %1476 = vset.pattern.permute.xlu0 0
    %1477 = vperm.xlu0 %1476, %v724
    %v1478 = vpop.permute.xlu0 %1477
    %1481 = vset.pattern.permute.xlu0 0
    %1482 = vperm.xlu0 %1481, %v726
    %v1483 = vpop.permute.xlu0 %1482
    %1486 = vset.pattern.permute.xlu0 0
    %1487 = vperm.xlu0 %1486, %v728
    %v1488 = vpop.permute.xlu0 %1487
    %1491 = vset.pattern.permute.xlu0 0
    %1492 = vperm.xlu0 %1491, %v730
    %v1493 = vpop.permute.xlu0 %1492
    %1496 = vset.pattern.permute.xlu0 0
    %1497 = vperm.xlu0 %1496, %v732
    %v1498 = vpop.permute.xlu0 %1497
    %1501 = vset.pattern.permute.xlu0 0
    %1502 = vperm.xlu0 %1501, %v734
    %v1503 = vpop.permute.xlu0 %1502
    %1506 = vset.pattern.permute.xlu0 0
    %1507 = vperm.xlu0 %1506, %v736
    %v1508 = vpop.permute.xlu0 %1507
    %1511 = vset.pattern.permute.xlu0 0
    %1512 = vperm.xlu0 %1511, %v738
    %v1513 = vpop.permute.xlu0 %1512
    %1516 = vset.pattern.permute.xlu0 0
    %1517 = vperm.xlu0 %1516, %v740
    %v1518 = vpop.permute.xlu0 %1517
    %1521 = vset.pattern.permute.xlu0 0
    %1522 = vperm.xlu0 %1521, %v742
    %v1523 = vpop.permute.xlu0 %1522
    %1526 = vset.pattern.permute.xlu0 0
    %1527 = vperm.xlu0 %1526, %v744
    %v1528 = vpop.permute.xlu0 %1527
    %1531 = vset.pattern.permute.xlu0 0
    %1532 = vperm.xlu0 %1531, %v746
    %v1533 = vpop.permute.xlu0 %1532
    %1536 = vset.pattern.permute.xlu0 0
    %1537 = vperm.xlu0 %1536, %v748
    %v1538 = vpop.permute.xlu0 %1537
    %1541 = vset.pattern.permute.xlu0 0
    %1542 = vperm.xlu0 %1541, %v750
    %v1543 = vpop.permute.xlu0 %1542
    %1546 = vset.pattern.permute.xlu0 0
    %1547 = vperm.xlu0 %1546, %v752
    %v1548 = vpop.permute.xlu0 %1547
    %1551 = vset.pattern.permute.xlu0 0
    %1552 = vperm.xlu0 %1551, %v754
    %v1553 = vpop.permute.xlu0 %1552
    %1556 = vset.pattern.permute.xlu0 0
    %1557 = vperm.xlu0 %1556, %v756
    %v1558 = vpop.permute.xlu0 %1557
    %1561 = vset.pattern.permute.xlu0 0
    %1562 = vperm.xlu0 %1561, %v758
    %v1563 = vpop.permute.xlu0 %1562
    %1566 = vset.pattern.permute.xlu0 0
    %1567 = vperm.xlu0 %1566, %v760
    %v1568 = vpop.permute.xlu0 %1567
    %1571 = vset.pattern.permute.xlu0 0
    %1572 = vperm.xlu0 %1571, %v762
    %v1573 = vpop.permute.xlu0 %1572
    %1576 = vset.pattern.permute.xlu0 0
    %1577 = vperm.xlu0 %1576, %v764
    %v1578 = vpop.permute.xlu0 %1577
    %1581 = vset.pattern.permute.xlu0 0
    %1582 = vperm.xlu0 %1581, %v766
    %v1583 = vpop.permute.xlu0 %1582
    %1586 = vset.pattern.permute.xlu0 0
    %1587 = vperm.xlu0 %1586, %v768
    %v1588 = vpop.permute.xlu0 %1587
    %1591 = vset.pattern.permute.xlu0 0
    %1592 = vperm.xlu0 %1591, %v770
    %v1593 = vpop.permute.xlu0 %1592
    %1596 = vset.pattern.permute.xlu0 0
    %1597 = vperm.xlu0 %1596, %v772
    %v1598 = vpop.permute.xlu0 %1597
    %1601 = vset.pattern.permute.xlu0 0
    %1602 = vperm.xlu0 %1601, %v774
    %v1603 = vpop.permute.xlu0 %1602
    %1606 = vset.pattern.permute.xlu0 0
    %1607 = vperm.xlu0 %1606, %v776
    %v1608 = vpop.permute.xlu0 %1607
    %1611 = vset.pattern.permute.xlu0 0
    %1612 = vperm.xlu0 %1611, %v778
    %v1613 = vpop.permute.xlu0 %1612
    %1616 = vset.pattern.permute.xlu0 0
    %1617 = vperm.xlu0 %1616, %v780
    %v1618 = vpop.permute.xlu0 %1617
    %1621 = vset.pattern.permute.xlu0 0
    %1622 = vperm.xlu0 %1621, %v782
    %v1623 = vpop.permute.xlu0 %1622
    %1626 = vset.pattern.permute.xlu0 0
    %1627 = vperm.xlu0 %1626, %v784
    %v1628 = vpop.permute.xlu0 %1627
    %1631 = vset.pattern.permute.xlu0 0
    %1632 = vperm.xlu0 %1631, %v786
    %v1633 = vpop.permute.xlu0 %1632
    %1636 = vset.pattern.permute.xlu0 0
    %1637 = vperm.xlu0 %1636, %v788
    %v1638 = vpop.permute.xlu0 %1637
    %1641 = vset.pattern.permute.xlu0 0
    %1642 = vperm.xlu0 %1641, %v790
    %v1643 = vpop.permute.xlu0 %1642
    %1646 = vset.pattern.permute.xlu0 0
    %1647 = vperm.xlu0 %1646, %v792
    %v1648 = vpop.permute.xlu0 %1647
    %1651 = vset.pattern.permute.xlu0 0
    %1652 = vperm.xlu0 %1651, %v794
    %v1653 = vpop.permute.xlu0 %1652
    %1656 = vset.pattern.permute.xlu0 0
    %1657 = vperm.xlu0 %1656, %v796
    %v1658 = vpop.permute.xlu0 %1657
    %1661 = vset.pattern.permute.xlu0 0
    %1662 = vperm.xlu0 %1661, %v798
    %v1663 = vpop.permute.xlu0 %1662
    %1666 = vset.pattern.permute.xlu0 0
    %1667 = vperm.xlu0 %1666, %v800
    %v1668 = vpop.permute.xlu0 %1667
    %1671 = vset.pattern.permute.xlu0 0
    %1672 = vperm.xlu0 %1671, %v802
    %v1673 = vpop.permute.xlu0 %1672
    %1676 = vset.pattern.permute.xlu0 0
    %1677 = vperm.xlu0 %1676, %v804
    %v1678 = vpop.permute.xlu0 %1677
    %1681 = vset.pattern.permute.xlu0 0
    %1682 = vperm.xlu0 %1681, %v806
    %v1683 = vpop.permute.xlu0 %1682
    %1686 = vset.pattern.permute.xlu0 0
    %1687 = vperm.xlu0 %1686, %v808
    %v1688 = vpop.permute.xlu0 %1687
    %1691 = vset.pattern.permute.xlu0 0
    %1692 = vperm.xlu0 %1691, %v810
    %v1693 = vpop.permute.xlu0 %1692
    %1696 = vset.pattern.permute.xlu0 0
    %1697 = vperm.xlu0 %1696, %v812
    %v1698 = vpop.permute.xlu0 %1697
    %1701 = vset.pattern.permute.xlu0 0
    %1702 = vperm.xlu0 %1701, %v814
    %v1703 = vpop.permute.xlu0 %1702
    %1706 = vset.pattern.permute.xlu0 0
    %1707 = vperm.xlu0 %1706, %v816
    %v1708 = vpop.permute.xlu0 %1707
    %1711 = vset.pattern.permute.xlu0 0
    %1712 = vperm.xlu0 %1711, %v818
    %v1713 = vpop.permute.xlu0 %1712
    %1716 = vset.pattern.permute.xlu0 0
    %1717 = vperm.xlu0 %1716, %v820
    %v1718 = vpop.permute.xlu0 %1717
    %1721 = vset.pattern.permute.xlu0 0
    %1722 = vperm.xlu0 %1721, %v822
    %v1723 = vpop.permute.xlu0 %1722
    %1726 = vset.pattern.permute.xlu0 0
    %1727 = vperm.xlu0 %1726, %v824
    %v1728 = vpop.permute.xlu0 %1727
    %1731 = vset.pattern.permute.xlu0 0
    %1732 = vperm.xlu0 %1731, %v826
    %v1733 = vpop.permute.xlu0 %1732
    %1736 = vset.pattern.permute.xlu0 0
    %1737 = vperm.xlu0 %1736, %v828
    %v1738 = vpop.permute.xlu0 %1737
    %1741 = vset.pattern.permute.xlu0 0
    %1742 = vperm.xlu0 %1741, %v830
    %v1743 = vpop.permute.xlu0 %1742
    %1746 = vset.pattern.permute.xlu0 0
    %1747 = vperm.xlu0 %1746, %v832
    %v1748 = vpop.permute.xlu0 %1747
    %1751 = vset.pattern.permute.xlu0 0
    %1752 = vperm.xlu0 %1751, %v834
    %v1753 = vpop.permute.xlu0 %1752
    %1756 = vset.pattern.permute.xlu0 0
    %1757 = vperm.xlu0 %1756, %v836
    %v1758 = vpop.permute.xlu0 %1757
    %1761 = vset.pattern.permute.xlu0 0
    %1762 = vperm.xlu0 %1761, %v838
    %v1763 = vpop.permute.xlu0 %1762
    %1766 = vset.pattern.permute.xlu0 0
    %1767 = vperm.xlu0 %1766, %v840
    %v1768 = vpop.permute.xlu0 %1767
    %1771 = vset.pattern.permute.xlu0 0
    %1772 = vperm.xlu0 %1771, %v842
    %v1773 = vpop.permute.xlu0 %1772
    %1776 = vset.pattern.permute.xlu0 0
    %1777 = vperm.xlu0 %1776, %v844
    %v1778 = vpop.permute.xlu0 %1777
    %1781 = vset.pattern.permute.xlu0 0
    %1782 = vperm.xlu0 %1781, %v846
    %v1783 = vpop.permute.xlu0 %1782
    %1786 = vset.pattern.permute.xlu0 0
    %1787 = vperm.xlu0 %1786, %v848
    %v1788 = vpop.permute.xlu0 %1787
    %1791 = vset.pattern.permute.xlu0 0
    %1792 = vperm.xlu0 %1791, %v850
    %v1793 = vpop.permute.xlu0 %1792
    %1796 = vset.pattern.permute.xlu0 0
    %1797 = vperm.xlu0 %1796, %v852
    %v1798 = vpop.permute.xlu0 %1797
    %1801 = vset.pattern.permute.xlu0 0
    %1802 = vperm.xlu0 %1801, %v854
    %v1803 = vpop.permute.xlu0 %1802
    %1806 = vset.pattern.permute.xlu0 0
    %1807 = vperm.xlu0 %1806, %v856
    %v1808 = vpop.permute.xlu0 %1807
    %1811 = vset.pattern.permute.xlu0 0
    %1812 = vperm.xlu0 %1811, %v858
    %v1813 = vpop.permute.xlu0 %1812
    %1816 = vset.pattern.permute.xlu0 0
    %1817 = vperm.xlu0 %1816, %v860
    %v1818 = vpop.permute.xlu0 %1817
    %1821 = vset.pattern.permute.xlu0 0
    %1822 = vperm.xlu0 %1821, %v862
    %v1823 = vpop.permute.xlu0 %1822
    %1826 = vset.pattern.permute.xlu0 0
    %1827 = vperm.xlu0 %1826, %v864
    %v1828 = vpop.permute.xlu0 %1827
    %1831 = vset.pattern.permute.xlu0 0
    %1832 = vperm.xlu0 %1831, %v866
    %v1833 = vpop.permute.xlu0 %1832
    %1836 = vset.pattern.permute.xlu0 0
    %1837 = vperm.xlu0 %1836, %v868
    %v1838 = vpop.permute.xlu0 %1837
    %1841 = vset.pattern.permute.xlu0 0
    %1842 = vperm.xlu0 %1841, %v870
    %v1843 = vpop.permute.xlu0 %1842
    %1846 = vset.pattern.permute.xlu0 0
    %1847 = vperm.xlu0 %1846, %v872
    %v1848 = vpop.permute.xlu0 %1847
    %1851 = vset.pattern.permute.xlu0 0
    %1852 = vperm.xlu0 %1851, %v874
    %v1853 = vpop.permute.xlu0 %1852
    %1856 = vset.pattern.permute.xlu0 0
    %1857 = vperm.xlu0 %1856, %v876
    %v1858 = vpop.permute.xlu0 %1857
    %1861 = vset.pattern.permute.xlu0 0
    %1862 = vperm.xlu0 %1861, %v878
    %v1863 = vpop.permute.xlu0 %1862
    %1866 = vset.pattern.permute.xlu0 0
    %1867 = vperm.xlu0 %1866, %v880
    %v1868 = vpop.permute.xlu0 %1867
    %1871 = vset.pattern.permute.xlu0 0
    %1872 = vperm.xlu0 %1871, %v882
    %v1873 = vpop.permute.xlu0 %1872
    %1876 = vset.pattern.permute.xlu0 0
    %1877 = vperm.xlu0 %1876, %v884
    %v1878 = vpop.permute.xlu0 %1877
    %1881 = vset.pattern.permute.xlu0 0
    %1882 = vperm.xlu0 %1881, %v886
    %v1883 = vpop.permute.xlu0 %1882
    %1886 = vset.pattern.permute.xlu0 0
    %1887 = vperm.xlu0 %1886, %v888
    %v1888 = vpop.permute.xlu0 %1887
    %1891 = vset.pattern.permute.xlu0 0
    %1892 = vperm.xlu0 %1891, %v890
    %v1893 = vpop.permute.xlu0 %1892
    %1896 = vset.pattern.permute.xlu0 0
    %1897 = vperm.xlu0 %1896, %v892
    %v1898 = vpop.permute.xlu0 %1897
    %1901 = vset.pattern.permute.xlu0 0
    %1902 = vperm.xlu0 %1901, %v894
    %v1903 = vpop.permute.xlu0 %1902
    %1906 = vset.pattern.permute.xlu0 0
    %1907 = vperm.xlu0 %1906, %v896
    %v1908 = vpop.permute.xlu0 %1907
    %1911 = vset.pattern.permute.xlu0 0
    %1912 = vperm.xlu0 %1911, %v898
    %v1913 = vpop.permute.xlu0 %1912
    %1916 = vset.pattern.permute.xlu0 0
    %1917 = vperm.xlu0 %1916, %v900
    %v1918 = vpop.permute.xlu0 %1917
    %1921 = vset.pattern.permute.xlu0 0
    %1922 = vperm.xlu0 %1921, %v902
    %v1923 = vpop.permute.xlu0 %1922
    %1926 = vset.pattern.permute.xlu0 0
    %1927 = vperm.xlu0 %1926, %v904
    %v1928 = vpop.permute.xlu0 %1927
    %1931 = vset.pattern.permute.xlu0 0
    %1932 = vperm.xlu0 %1931, %v906
    %v1933 = vpop.permute.xlu0 %1932
    %1936 = vset.pattern.permute.xlu0 0
    %1937 = vperm.xlu0 %1936, %v908
    %v1938 = vpop.permute.xlu0 %1937
    %1941 = vset.pattern.permute.xlu0 0
    %1942 = vperm.xlu0 %1941, %v910
    %v1943 = vpop.permute.xlu0 %1942
    %1946 = vset.pattern.permute.xlu0 0
    %1947 = vperm.xlu0 %1946, %v912
    %v1948 = vpop.permute.xlu0 %1947
    %1951 = vset.pattern.permute.xlu0 0
    %1952 = vperm.xlu0 %1951, %v914
    %v1953 = vpop.permute.xlu0 %1952
    %1956 = vset.pattern.permute.xlu0 0
    %1957 = vperm.xlu0 %1956, %v916
    %v1958 = vpop.permute.xlu0 %1957
    %1961 = vset.pattern.permute.xlu0 0
    %1962 = vperm.xlu0 %1961, %v918
    %v1963 = vpop.permute.xlu0 %1962
    %1966 = vset.pattern.permute.xlu0 0
    %1967 = vperm.xlu0 %1966, %v920
    %v1968 = vpop.permute.xlu0 %1967
    %1971 = vset.pattern.permute.xlu0 0
    %1972 = vperm.xlu0 %1971, %v922
    %v1973 = vpop.permute.xlu0 %1972
    %1976 = vset.pattern.permute.xlu0 0
    %1977 = vperm.xlu0 %1976, %v924
    %v1978 = vpop.permute.xlu0 %1977
    %1981 = vset.pattern.permute.xlu0 0
    %1982 = vperm.xlu0 %1981, %v926
    %v1983 = vpop.permute.xlu0 %1982
    %1986 = vset.pattern.permute.xlu0 0
    %1987 = vperm.xlu0 %1986, %v928
    %v1988 = vpop.permute.xlu0 %1987
    %1991 = vset.pattern.permute.xlu0 0
    %1992 = vperm.xlu0 %1991, %v930
    %v1993 = vpop.permute.xlu0 %1992
    %1996 = vset.pattern.permute.xlu0 0
    %1997 = vperm.xlu0 %1996, %v932
    %v1998 = vpop.permute.xlu0 %1997
    %2001 = vset.pattern.permute.xlu0 0
    %2002 = vperm.xlu0 %2001, %v934
    %v2003 = vpop.permute.xlu0 %2002
    %2006 = vset.pattern.permute.xlu0 0
    %2007 = vperm.xlu0 %2006, %v936
    %v2008 = vpop.permute.xlu0 %2007
    %2011 = vset.pattern.permute.xlu0 0
    %2012 = vperm.xlu0 %2011, %v938
    %v2013 = vpop.permute.xlu0 %2012
    %2016 = vset.pattern.permute.xlu0 0
    %2017 = vperm.xlu0 %2016, %v940
    %v2018 = vpop.permute.xlu0 %2017
    %2021 = vset.pattern.permute.xlu0 0
    %2022 = vperm.xlu0 %2021, %v942
    %v2023 = vpop.permute.xlu0 %2022
    %2026 = vset.pattern.permute.xlu0 0
    %2027 = vperm.xlu0 %2026, %v944
    %v2028 = vpop.permute.xlu0 %2027
    %2031 = vset.pattern.permute.xlu0 0
    %2032 = vperm.xlu0 %2031, %v946
    %v2033 = vpop.permute.xlu0 %2032
    %2036 = vset.pattern.permute.xlu0 0
    %2037 = vperm.xlu0 %2036, %v948
    %v2038 = vpop.permute.xlu0 %2037
    %2041 = vset.pattern.permute.xlu0 0
    %2042 = vperm.xlu0 %2041, %v950
    %v2043 = vpop.permute.xlu0 %2042
    %2046 = vset.pattern.permute.xlu0 0
    %2047 = vperm.xlu0 %2046, %v952
    %v2048 = vpop.permute.xlu0 %2047
    %2051 = vset.pattern.permute.xlu0 0
    %2052 = vperm.xlu0 %2051, %v954
    %v2053 = vpop.permute.xlu0 %2052
    %2056 = vset.pattern.permute.xlu0 0
    %2057 = vperm.xlu0 %2056, %v956
    %v2058 = vpop.permute.xlu0 %2057
    %2061 = vset.pattern.permute.xlu0 0
    %2062 = vperm.xlu0 %2061, %v958
    %v2063 = vpop.permute.xlu0 %2062
    %2066 = vset.pattern.permute.xlu0 0
    %2067 = vperm.xlu0 %2066, %v960
    %v2068 = vpop.permute.xlu0 %2067
    %2071 = vset.pattern.permute.xlu0 0
    %2072 = vperm.xlu0 %2071, %v962
    %v2073 = vpop.permute.xlu0 %2072
    %2076 = vset.pattern.permute.xlu0 0
    %2077 = vperm.xlu0 %2076, %v964
    %v2078 = vpop.permute.xlu0 %2077
    %2081 = vset.pattern.permute.xlu0 0
    %2082 = vperm.xlu0 %2081, %v966
    %v2083 = vpop.permute.xlu0 %2082
    %2086 = vset.pattern.permute.xlu0 0
    %2087 = vperm.xlu0 %2086, %v968
    %v2088 = vpop.permute.xlu0 %2087
    %2091 = vset.pattern.permute.xlu0 0
    %2092 = vperm.xlu0 %2091, %v970
    %v2093 = vpop.permute.xlu0 %2092
    %2096 = vset.pattern.permute.xlu0 0
    %2097 = vperm.xlu0 %2096, %v972
    %v2098 = vpop.permute.xlu0 %2097
    %2101 = vset.pattern.permute.xlu0 0
    %2102 = vperm.xlu0 %2101, %v974
    %v2103 = vpop.permute.xlu0 %2102
    %2106 = vset.pattern.permute.xlu0 0
    %2107 = vperm.xlu0 %2106, %v976
    %v2108 = vpop.permute.xlu0 %2107
    %2111 = vset.pattern.permute.xlu0 0
    %2112 = vperm.xlu0 %2111, %v978
    %v2113 = vpop.permute.xlu0 %2112
    %2116 = vset.pattern.permute.xlu0 0
    %2117 = vperm.xlu0 %2116, %v980
    %v2118 = vpop.permute.xlu0 %2117
    %2121 = vset.pattern.permute.xlu0 0
    %2122 = vperm.xlu0 %2121, %v982
    %v2123 = vpop.permute.xlu0 %2122
    %2126 = vset.pattern.permute.xlu0 0
    %2127 = vperm.xlu0 %2126, %v984
    %v2128 = vpop.permute.xlu0 %2127
    %2131 = vset.pattern.permute.xlu0 0
    %2132 = vperm.xlu0 %2131, %v986
    %v2133 = vpop.permute.xlu0 %2132
    %2136 = vset.pattern.permute.xlu0 0
    %2137 = vperm.xlu0 %2136, %v988
    %v2138 = vpop.permute.xlu0 %2137
    %2141 = vset.pattern.permute.xlu0 0
    %2142 = vperm.xlu0 %2141, %v990
    %v2143 = vpop.permute.xlu0 %2142
    %2146 = vset.pattern.permute.xlu0 0
    %2147 = vperm.xlu0 %2146, %v992
    %v2148 = vpop.permute.xlu0 %2147
    %2151 = vset.pattern.permute.xlu0 0
    %2152 = vperm.xlu0 %2151, %v994
    %v2153 = vpop.permute.xlu0 %2152
    %2156 = vset.pattern.permute.xlu0 0
    %2157 = vperm.xlu0 %2156, %v996
    %v2158 = vpop.permute.xlu0 %2157
    %2161 = vset.pattern.permute.xlu0 0
    %2162 = vperm.xlu0 %2161, %v998
    %v2163 = vpop.permute.xlu0 %2162
    %2166 = vset.pattern.permute.xlu0 0
    %2167 = vperm.xlu0 %2166, %v1000
    %v2168 = vpop.permute.xlu0 %2167
    %2171 = vset.pattern.permute.xlu0 0
    %2172 = vperm.xlu0 %2171, %v1002
    %v2173 = vpop.permute.xlu0 %2172
    %2176 = vset.pattern.permute.xlu0 0
    %2177 = vperm.xlu0 %2176, %v1004
    %v2178 = vpop.permute.xlu0 %2177
    %2181 = vset.pattern.permute.xlu0 0
    %2182 = vperm.xlu0 %2181, %v1006
    %v2183 = vpop.permute.xlu0 %2182
    %2186 = vset.pattern.permute.xlu0 0
    %2187 = vperm.xlu0 %2186, %v1008
    %v2188 = vpop.permute.xlu0 %2187
    %2191 = vset.pattern.permute.xlu0 0
    %2192 = vperm.xlu0 %2191, %v1010
    %v2193 = vpop.permute.xlu0 %2192
    %2196 = vset.pattern.permute.xlu0 0
    %2197 = vperm.xlu0 %2196, %v1012
    %v2198 = vpop.permute.xlu0 %2197
    %2201 = vset.pattern.permute.xlu0 0
    %2202 = vperm.xlu0 %2201, %v1014
    %v2203 = vpop.permute.xlu0 %2202
    %2206 = vset.pattern.permute.xlu0 0
    %2207 = vperm.xlu0 %2206, %v1016
    %v2208 = vpop.permute.xlu0 %2207
    %2211 = vset.pattern.permute.xlu0 0
    %2212 = vperm.xlu0 %2211, %v1018
    %v2213 = vpop.permute.xlu0 %2212
    %2216 = vset.pattern.permute.xlu0 0
    %2217 = vperm.xlu0 %2216, %v1020
    %v2218 = vpop.permute.xlu0 %2217
    %2221 = vset.pattern.permute.xlu0 0
    %2222 = vperm.xlu0 %2221, %v1022
    %v2223 = vpop.permute.xlu0 %2222
    %2226 = vset.pattern.permute.xlu0 0
    %2227 = vperm.xlu0 %2226, %v1024
    %v2228 = vpop.permute.xlu0 %2227
    %2231 = vset.pattern.permute.xlu0 0
    %2232 = vperm.xlu0 %2231, %v1026
    %v2233 = vpop.permute.xlu0 %2232
    %2236 = vset.pattern.permute.xlu0 0
    %2237 = vperm.xlu0 %2236, %v1028
    %v2238 = vpop.permute.xlu0 %2237
    %2241 = vset.pattern.permute.xlu0 0
    %2242 = vperm.xlu0 %2241, %v1030
    %v2243 = vpop.permute.xlu0 %2242
    %2246 = vset.pattern.permute.xlu0 0
    %2247 = vperm.xlu0 %2246, %v1032
    %v2248 = vpop.permute.xlu0 %2247
    %2251 = vset.pattern.permute.xlu0 0
    %2252 = vperm.xlu0 %2251, %v1034
    %v2253 = vpop.permute.xlu0 %2252
    %2256 = vset.pattern.permute.xlu0 0
    %2257 = vperm.xlu0 %2256, %v1036
    %v2258 = vpop.permute.xlu0 %2257
    %2261 = vset.pattern.permute.xlu0 0
    %2262 = vperm.xlu0 %2261, %v1038
    %v2263 = vpop.permute.xlu0 %2262
    %2266 = vset.pattern.permute.xlu0 0
    %2267 = vperm.xlu0 %2266, %v1040
    %v2268 = vpop.permute.xlu0 %2267
    %2271 = vset.pattern.permute.xlu0 0
    %2272 = vperm.xlu0 %2271, %v1042
    %v2273 = vpop.permute.xlu0 %2272
    %2276 = vset.pattern.permute.xlu0 0
    %2277 = vperm.xlu0 %2276, %v1044
    %v2278 = vpop.permute.xlu0 %2277
    %2281 = vset.pattern.permute.xlu0 0
    %2282 = vperm.xlu0 %2281, %v1046
    %v2283 = vpop.permute.xlu0 %2282
    %2286 = vset.pattern.permute.xlu0 0
    %2287 = vperm.xlu0 %2286, %v1048
    %v2288 = vpop.permute.xlu0 %2287
    %2291 = vset.pattern.permute.xlu0 0
    %2292 = vperm.xlu0 %2291, %v1050
    %v2293 = vpop.permute.xlu0 %2292
    %2296 = vset.pattern.permute.xlu0 0
    %2297 = vperm.xlu0 %2296, %v1052
    %v2298 = vpop.permute.xlu0 %2297
    %2301 = vset.pattern.permute.xlu0 0
    %2302 = vperm.xlu0 %2301, %v1054
    %v2303 = vpop.permute.xlu0 %2302
    %2306 = vset.pattern.permute.xlu0 0
    %2307 = vperm.xlu0 %2306, %v1056
    %v2308 = vpop.permute.xlu0 %2307
    %2311 = vset.pattern.permute.xlu0 0
    %2312 = vperm.xlu0 %2311, %v1058
    %v2313 = vpop.permute.xlu0 %2312
    %2316 = vset.pattern.permute.xlu0 0
    %2317 = vperm.xlu0 %2316, %v1060
    %v2318 = vpop.permute.xlu0 %2317
    %2321 = vset.pattern.permute.xlu0 0
    %2322 = vperm.xlu0 %2321, %v1062
    %v2323 = vpop.permute.xlu0 %2322
    %2326 = vset.pattern.permute.xlu0 0
    %2327 = vperm.xlu0 %2326, %v1064
    %v2328 = vpop.permute.xlu0 %2327
    %2331 = vset.pattern.permute.xlu0 0
    %2332 = vperm.xlu0 %2331, %v1066
    %v2333 = vpop.permute.xlu0 %2332
    %2336 = vset.pattern.permute.xlu0 0
    %2337 = vperm.xlu0 %2336, %v1068
    %v2338 = vpop.permute.xlu0 %2337
    %2341 = vset.pattern.permute.xlu0 0
    %2342 = vperm.xlu0 %2341, %v1070
    %v2343 = vpop.permute.xlu0 %2342
    %2346 = vset.pattern.permute.xlu0 0
    %2347 = vperm.xlu0 %2346, %v1072
    %v2348 = vpop.permute.xlu0 %2347
    %2351 = vset.pattern.permute.xlu0 0
    %2352 = vperm.xlu0 %2351, %v1074
    %v2353 = vpop.permute.xlu0 %2352
    %2356 = vset.pattern.permute.xlu0 0
    %2357 = vperm.xlu0 %2356, %v1076
    %v2358 = vpop.permute.xlu0 %2357
    %2361 = vset.pattern.permute.xlu0 0
    %2362 = vperm.xlu0 %2361, %v1078
    %v2363 = vpop.permute.xlu0 %2362
    %2366 = vset.pattern.permute.xlu0 0
    %2367 = vperm.xlu0 %2366, %v1080
    %v2368 = vpop.permute.xlu0 %2367
    %2371 = vset.pattern.permute.xlu0 0
    %2372 = vperm.xlu0 %2371, %v1082
    %v2373 = vpop.permute.xlu0 %2372
    %2376 = vset.pattern.permute.xlu0 0
    %2377 = vperm.xlu0 %2376, %v1084
    %v2378 = vpop.permute.xlu0 %2377
    %2381 = vset.pattern.permute.xlu0 0
    %2382 = vperm.xlu0 %2381, %v1086
    %v2383 = vpop.permute.xlu0 %2382
    %2386 = vset.pattern.permute.xlu0 0
    %2387 = vperm.xlu0 %2386, %v1088
    %v2388 = vpop.permute.xlu0 %2387
    %2391 = vset.pattern.permute.xlu0 0
    %2392 = vperm.xlu0 %2391, %v1090
    %v2393 = vpop.permute.xlu0 %2392
    %2396 = vset.pattern.permute.xlu0 0
    %2397 = vperm.xlu0 %2396, %v1092
    %v2398 = vpop.permute.xlu0 %2397
    %2401 = vset.pattern.permute.xlu0 0
    %2402 = vperm.xlu0 %2401, %v1094
    %v2403 = vpop.permute.xlu0 %2402
    %2406 = vset.pattern.permute.xlu0 0
    %2407 = vperm.xlu0 %2406, %v1096
    %v2408 = vpop.permute.xlu0 %2407
    %2411 = vset.pattern.permute.xlu0 0
    %2412 = vperm.xlu0 %2411, %v1098
    %v2413 = vpop.permute.xlu0 %2412
    %2416 = vset.pattern.permute.xlu0 0
    %2417 = vperm.xlu0 %2416, %v1100
    %v2418 = vpop.permute.xlu0 %2417
    %2421 = vset.pattern.permute.xlu0 0
    %2422 = vperm.xlu0 %2421, %v1102
    %v2423 = vpop.permute.xlu0 %2422
    %2426 = vset.pattern.permute.xlu0 0
    %2427 = vperm.xlu0 %2426, %v1104
    %v2428 = vpop.permute.xlu0 %2427
    %2431 = vset.pattern.permute.xlu0 0
    %2432 = vperm.xlu0 %2431, %v1106
    %v2433 = vpop.permute.xlu0 %2432
    %2436 = vset.pattern.permute.xlu0 0
    %2437 = vperm.xlu0 %2436, %v1108
    %v2438 = vpop.permute.xlu0 %2437
    %2441 = vset.pattern.permute.xlu0 0
    %2442 = vperm.xlu0 %2441, %v1110
    %v2443 = vpop.permute.xlu0 %2442
    %2446 = vset.pattern.permute.xlu0 0
    %2447 = vperm.xlu0 %2446, %v1112
    %v2448 = vpop.permute.xlu0 %2447
    %2451 = vset.pattern.permute.xlu0 0
    %2452 = vperm.xlu0 %2451, %v1114
    %v2453 = vpop.permute.xlu0 %2452
    %2456 = vset.pattern.permute.xlu0 0
    %2457 = vperm.xlu0 %2456, %v1116
    %v2458 = vpop.permute.xlu0 %2457
    %2461 = vset.pattern.permute.xlu0 0
    %2462 = vperm.xlu0 %2461, %v1118
    %v2463 = vpop.permute.xlu0 %2462
    %2466 = vset.pattern.permute.xlu0 0
    %2467 = vperm.xlu0 %2466, %v1120
    %v2468 = vpop.permute.xlu0 %2467
    %2471 = vset.pattern.permute.xlu0 0
    %2472 = vperm.xlu0 %2471, %v1122
    %v2473 = vpop.permute.xlu0 %2472
    %2476 = vset.pattern.permute.xlu0 0
    %2477 = vperm.xlu0 %2476, %v1124
    %v2478 = vpop.permute.xlu0 %2477
    %2481 = vset.pattern.permute.xlu0 0
    %2482 = vperm.xlu0 %2481, %v1126
    %v2483 = vpop.permute.xlu0 %2482
    %2486 = vset.pattern.permute.xlu0 0
    %2487 = vperm.xlu0 %2486, %v1128
    %v2488 = vpop.permute.xlu0 %2487
    %2491 = vset.pattern.permute.xlu0 0
    %2492 = vperm.xlu0 %2491, %v1130
    %v2493 = vpop.permute.xlu0 %2492
    %2496 = vset.pattern.permute.xlu0 0
    %2497 = vperm.xlu0 %2496, %v1132
    %v2498 = vpop.permute.xlu0 %2497
    %2501 = vset.pattern.permute.xlu0 0
    %2502 = vperm.xlu0 %2501, %v1134
    %v2503 = vpop.permute.xlu0 %2502
    %2506 = vset.pattern.permute.xlu0 0
    %2507 = vperm.xlu0 %2506, %v1136
    %v2508 = vpop.permute.xlu0 %2507
    %2511 = vset.pattern.permute.xlu0 0
    %2512 = vperm.xlu0 %2511, %v1138
    %v2513 = vpop.permute.xlu0 %2512
    %2516 = vset.pattern.permute.xlu0 0
    %2517 = vperm.xlu0 %2516, %v1140
    %v2518 = vpop.permute.xlu0 %2517
    %2521 = vset.pattern.permute.xlu0 0
    %2522 = vperm.xlu0 %2521, %v1142
    %v2523 = vpop.permute.xlu0 %2522
    %2526 = vset.pattern.permute.xlu0 0
    %2527 = vperm.xlu0 %2526, %v1144
    %v2528 = vpop.permute.xlu0 %2527
    %2531 = vset.pattern.permute.xlu0 0
    %2532 = vperm.xlu0 %2531, %v1146
    %v2533 = vpop.permute.xlu0 %2532
    %2536 = vset.pattern.permute.xlu0 0
    %2537 = vperm.xlu0 %2536, %v1148
    %v2538 = vpop.permute.xlu0 %2537
    %2541 = vset.pattern.permute.xlu0 0
    %2542 = vperm.xlu0 %2541, %v1150
    %v2543 = vpop.permute.xlu0 %2542
    %2546 = vset.pattern.permute.xlu0 0
    %2547 = vperm.xlu0 %2546, %v1152
    %v2548 = vpop.permute.xlu0 %2547
    %2551 = vset.pattern.permute.xlu0 0
    %2552 = vperm.xlu0 %2551, %v1154
    %v2553 = vpop.permute.xlu0 %2552
    %2556 = vset.pattern.permute.xlu0 0
    %2557 = vperm.xlu0 %2556, %v1156
    %v2558 = vpop.permute.xlu0 %2557
    %2561 = vset.pattern.permute.xlu0 0
    %2562 = vperm.xlu0 %2561, %v1158
    %v2563 = vpop.permute.xlu0 %2562
    %2566 = vset.pattern.permute.xlu0 0
    %2567 = vperm.xlu0 %2566, %v1160
    %v2568 = vpop.permute.xlu0 %2567
    %2571 = vset.pattern.permute.xlu0 0
    %2572 = vperm.xlu0 %2571, %v1162
    %v2573 = vpop.permute.xlu0 %2572
    %2576 = vset.pattern.permute.xlu0 0
    %2577 = vperm.xlu0 %2576, %v1164
    %v2578 = vpop.permute.xlu0 %2577
    %2581 = vset.pattern.permute.xlu0 0
    %2582 = vperm.xlu0 %2581, %v1166
    %v2583 = vpop.permute.xlu0 %2582
    %2586 = vset.pattern.permute.xlu0 0
    %2587 = vperm.xlu0 %2586, %v1168
    %v2588 = vpop.permute.xlu0 %2587
    %2591 = vset.pattern.permute.xlu0 0
    %2592 = vperm.xlu0 %2591, %v1170
    %v2593 = vpop.permute.xlu0 %2592
    %2596 = vset.pattern.permute.xlu0 0
    %2597 = vperm.xlu0 %2596, %v1172
    %v2598 = vpop.permute.xlu0 %2597
    %2601 = vset.pattern.permute.xlu0 0
    %2602 = vperm.xlu0 %2601, %v1174
    %v2603 = vpop.permute.xlu0 %2602
    %2606 = vset.pattern.permute.xlu0 0
    %2607 = vperm.xlu0 %2606, %v1176
    %v2608 = vpop.permute.xlu0 %2607
    %2611 = vset.pattern.permute.xlu0 0
    %2612 = vperm.xlu0 %2611, %v1178
    %v2613 = vpop.permute.xlu0 %2612
    %2616 = vset.pattern.permute.xlu0 0
    %2617 = vperm.xlu0 %2616, %v1180
    %v2618 = vpop.permute.xlu0 %2617
    %2621 = vset.pattern.permute.xlu0 0
    %2622 = vperm.xlu0 %2621, %v1182
    %v2623 = vpop.permute.xlu0 %2622
    %2626 = vset.pattern.permute.xlu0 0
    %2627 = vperm.xlu0 %2626, %v1184
    %v2628 = vpop.permute.xlu0 %2627
    %2631 = vset.pattern.permute.xlu0 0
    %2632 = vperm.xlu0 %2631, %v1186
    %v2633 = vpop.permute.xlu0 %2632
    %2636 = vset.pattern.permute.xlu0 0
    %2637 = vperm.xlu0 %2636, %v1188
    %v2638 = vpop.permute.xlu0 %2637
    %2641 = vset.pattern.permute.xlu0 0
    %2642 = vperm.xlu0 %2641, %v1190
    %v2643 = vpop.permute.xlu0 %2642
    %2646 = vset.pattern.permute.xlu0 0
    %2647 = vperm.xlu0 %2646, %v1192
    %v2648 = vpop.permute.xlu0 %2647
    %2651 = vset.pattern.permute.xlu0 0
    %2652 = vperm.xlu0 %2651, %v1194
    %v2653 = vpop.permute.xlu0 %2652
    %2656 = vset.pattern.permute.xlu0 0
    %2657 = vperm.xlu0 %2656, %v1196
    %v2658 = vpop.permute.xlu0 %2657
    %2661 = vset.pattern.permute.xlu0 0
    %2662 = vperm.xlu0 %2661, %v1198
    %v2663 = vpop.permute.xlu0 %2662
    %2666 = vset.pattern.permute.xlu0 0
    %2667 = vperm.xlu0 %2666, %v1200
    %v2668 = vpop.permute.xlu0 %2667
    %2671 = vset.pattern.permute.xlu0 0
    %2672 = vperm.xlu0 %2671, %v1202
    %v2673 = vpop.permute.xlu0 %2672
    %2676 = vset.pattern.permute.xlu0 0
    %2677 = vperm.xlu0 %2676, %v1204
    %v2678 = vpop.permute.xlu0 %2677
    %2681 = vset.pattern.permute.xlu0 0
    %2682 = vperm.xlu0 %2681, %v1206
    %v2683 = vpop.permute.xlu0 %2682
    %2686 = vset.pattern.permute.xlu0 0
    %2687 = vperm.xlu0 %2686, %v1208
    %v2688 = vpop.permute.xlu0 %2687
    %2691 = vset.pattern.permute.xlu0 0
    %2692 = vperm.xlu0 %2691, %v1210
    %v2693 = vpop.permute.xlu0 %2692
    %2696 = vset.pattern.permute.xlu0 0
    %2697 = vperm.xlu0 %2696, %v1212
    %v2698 = vpop.permute.xlu0 %2697
    %2701 = vset.pattern.permute.xlu0 0
    %2702 = vperm.xlu0 %2701, %v1214
    %v2703 = vpop.permute.xlu0 %2702
    %2706 = vset.pattern.permute.xlu0 0
    %2707 = vperm.xlu0 %2706, %v1216
    %v2708 = vpop.permute.xlu0 %2707
    %2711 = vset.pattern.permute.xlu0 0
    %2712 = vperm.xlu0 %2711, %v1218
    %v2713 = vpop.permute.xlu0 %2712
    %2716 = vset.pattern.permute.xlu0 0
    %2717 = vperm.xlu0 %2716, %v1220
    %v2718 = vpop.permute.xlu0 %2717
    %2721 = vset.pattern.permute.xlu0 0
    %2722 = vperm.xlu0 %2721, %v1222
    %v2723 = vpop.permute.xlu0 %2722
    %2726 = vset.pattern.permute.xlu0 0
    %2727 = vperm.xlu0 %2726, %v1224
    %v2728 = vpop.permute.xlu0 %2727
    %2731 = vset.pattern.permute.xlu0 0
    %2732 = vperm.xlu0 %2731, %v1226
    %v2733 = vpop.permute.xlu0 %2732
    %2736 = vset.pattern.permute.xlu0 0
    %2737 = vperm.xlu0 %2736, %v1228
    %v2738 = vpop.permute.xlu0 %2737
    %2741 = vset.pattern.permute.xlu0 0
    %2742 = vperm.xlu0 %2741, %v1230
    %v2743 = vpop.permute.xlu0 %2742
    %2746 = vset.pattern.permute.xlu0 0
    %2747 = vperm.xlu0 %2746, %v1232
    %v2748 = vpop.permute.xlu0 %2747
    %2751 = vset.pattern.permute.xlu0 0
    %2752 = vperm.xlu0 %2751, %v1234
    %v2753 = vpop.permute.xlu0 %2752
    %2756 = vset.pattern.permute.xlu0 0
    %2757 = vperm.xlu0 %2756, %v1236
    %v2758 = vpop.permute.xlu0 %2757
    %2761 = vset.pattern.permute.xlu0 0
    %2762 = vperm.xlu0 %2761, %v1238
    %v2763 = vpop.permute.xlu0 %2762
    %2766 = vset.pattern.permute.xlu0 0
    %2767 = vperm.xlu0 %2766, %v1240
    %v2768 = vpop.permute.xlu0 %2767
    %2771 = vset.pattern.permute.xlu0 0
    %2772 = vperm.xlu0 %2771, %v1242
    %v2773 = vpop.permute.xlu0 %2772
    %2776 = vset.pattern.permute.xlu0 0
    %2777 = vperm.xlu0 %2776, %v1244
    %v2778 = vpop.permute.xlu0 %2777
    %2781 = vset.pattern.permute.xlu0 0
    %2782 = vperm.xlu0 %2781, %v1246
    %v2783 = vpop.permute.xlu0 %2782
    %2786 = vset.pattern.permute.xlu0 0
    %2787 = vperm.xlu0 %2786, %v1248
    %v2788 = vpop.permute.xlu0 %2787
    %2791 = vset.pattern.permute.xlu0 0
    %2792 = vperm.xlu0 %2791, %v1250
    %v2793 = vpop.permute.xlu0 %2792
    %2796 = vset.pattern.permute.xlu0 0
    %2797 = vperm.xlu0 %2796, %v1252
    %v2798 = vpop.permute.xlu0 %2797
    %2801 = vset.pattern.permute.xlu0 0
    %2802 = vperm.xlu0 %2801, %v1254
    %v2803 = vpop.permute.xlu0 %2802
    %2806 = vset.pattern.permute.xlu0 0
    %2807 = vperm.xlu0 %2806, %v1256
    %v2808 = vpop.permute.xlu0 %2807
    %2811 = vset.pattern.permute.xlu0 0
    %2812 = vperm.xlu0 %2811, %v1258
    %v2813 = vpop.permute.xlu0 %2812
    %2816 = vset.pattern.permute.xlu0 0
    %2817 = vperm.xlu0 %2816, %v1260
    %v2818 = vpop.permute.xlu0 %2817
    %2821 = vset.pattern.permute.xlu0 0
    %2822 = vperm.xlu0 %2821, %v1262
    %v2823 = vpop.permute.xlu0 %2822
    %2826 = vset.pattern.permute.xlu0 0
    %2827 = vperm.xlu0 %2826, %v1264
    %v2828 = vpop.permute.xlu0 %2827
    %v2830 = vlaneseq
    %v2831 = vshrl.u32 %v2830, 7
    %v2832 = vsub.s32 0, %v2831
    %v2833 = vrot.slane %v325, %v2832
    %v2834 = vsub.f32 %v1268, %v2833
    %v2835 = vsub.f32 %v1273, %v2833
    %v2836 = vsub.f32 %v1278, %v2833
    %v2837 = vsub.f32 %v1283, %v2833
    %v2838 = vsub.f32 %v1288, %v2833
    %v2839 = vsub.f32 %v1293, %v2833
    %v2840 = vsub.f32 %v1298, %v2833
    %v2841 = vsub.f32 %v1303, %v2833
    %v2842 = vsub.f32 %v1308, %v2833
    %v2843 = vsub.f32 %v1313, %v2833
    %v2844 = vsub.f32 %v1318, %v2833
    %v2845 = vsub.f32 %v1323, %v2833
    %v2846 = vsub.f32 %v1328, %v2833
    %v2847 = vsub.f32 %v1333, %v2833
    %v2848 = vsub.f32 %v1338, %v2833
    %v2849 = vsub.f32 %v1343, %v2833
    %v2850 = vsub.f32 %v1348, %v2833
    %v2851 = vsub.f32 %v1353, %v2833
    %v2852 = vsub.f32 %v1358, %v2833
    %v2853 = vsub.f32 %v1363, %v2833
    %v2854 = vsub.f32 %v1368, %v2833
    %v2855 = vsub.f32 %v1373, %v2833
    %v2856 = vsub.f32 %v1378, %v2833
    %v2857 = vsub.f32 %v1383, %v2833
    %v2858 = vsub.f32 %v1388, %v2833
    %v2859 = vsub.f32 %v1393, %v2833
    %v2860 = vsub.f32 %v1398, %v2833
    %v2861 = vsub.f32 %v1403, %v2833
    %v2862 = vsub.f32 %v1408, %v2833
    %v2863 = vsub.f32 %v1413, %v2833
    %v2864 = vsub.f32 %v1418, %v2833
    %v2865 = vsub.f32 %v1423, %v2833
    %v2866 = vsub.f32 %v1428, %v2833
    %v2867 = vsub.f32 %v1433, %v2833
    %v2868 = vsub.f32 %v1438, %v2833
    %v2869 = vsub.f32 %v1443, %v2833
    %v2870 = vsub.f32 %v1448, %v2833
    %v2871 = vsub.f32 %v1453, %v2833
    %v2872 = vsub.f32 %v1458, %v2833
    %v2873 = vsub.f32 %v1463, %v2833
    %v2874 = vsub.f32 %v1468, %v2833
    %v2875 = vsub.f32 %v1473, %v2833
    %v2876 = vsub.f32 %v1478, %v2833
    %v2877 = vsub.f32 %v1483, %v2833
    %v2878 = vsub.f32 %v1488, %v2833
    %v2879 = vsub.f32 %v1493, %v2833
    %v2880 = vsub.f32 %v1498, %v2833
    %v2881 = vsub.f32 %v1503, %v2833
    %v2882 = vsub.f32 %v1508, %v2833
    %v2883 = vsub.f32 %v1513, %v2833
    %v2884 = vsub.f32 %v1518, %v2833
    %v2885 = vsub.f32 %v1523, %v2833
    %v2886 = vsub.f32 %v1528, %v2833
    %v2887 = vsub.f32 %v1533, %v2833
    %v2888 = vsub.f32 %v1538, %v2833
    %v2889 = vsub.f32 %v1543, %v2833
    %v2890 = vsub.f32 %v1548, %v2833
    %v2891 = vsub.f32 %v1553, %v2833
    %v2892 = vsub.f32 %v1558, %v2833
    %v2893 = vsub.f32 %v1563, %v2833
    %v2894 = vsub.f32 %v1568, %v2833
    %v2895 = vsub.f32 %v1573, %v2833
    %v2896 = vsub.f32 %v1578, %v2833
    %v2897 = vsub.f32 %v1583, %v2833
    %v2898 = vsub.f32 %v1588, %v2833
    %v2899 = vsub.f32 %v1593, %v2833
    %v2900 = vsub.f32 %v1598, %v2833
    %v2901 = vsub.f32 %v1603, %v2833
    %v2902 = vsub.f32 %v1608, %v2833
    %v2903 = vsub.f32 %v1613, %v2833
    %v2904 = vsub.f32 %v1618, %v2833
    %v2905 = vsub.f32 %v1623, %v2833
    %v2906 = vsub.f32 %v1628, %v2833
    %v2907 = vsub.f32 %v1633, %v2833
    %v2908 = vsub.f32 %v1638, %v2833
    %v2909 = vsub.f32 %v1643, %v2833
    %v2910 = vsub.f32 %v1648, %v2833
    %v2911 = vsub.f32 %v1653, %v2833
    %v2912 = vsub.f32 %v1658, %v2833
    %v2913 = vsub.f32 %v1663, %v2833
    %v2914 = vsub.f32 %v1668, %v2833
    %v2915 = vsub.f32 %v1673, %v2833
    %v2916 = vsub.f32 %v1678, %v2833
    %v2917 = vsub.f32 %v1683, %v2833
    %v2918 = vsub.f32 %v1688, %v2833
    %v2919 = vsub.f32 %v1693, %v2833
    %v2920 = vsub.f32 %v1698, %v2833
    %v2921 = vsub.f32 %v1703, %v2833
    %v2922 = vsub.f32 %v1708, %v2833
    %v2923 = vsub.f32 %v1713, %v2833
    %v2924 = vsub.f32 %v1718, %v2833
    %v2925 = vsub.f32 %v1723, %v2833
    %v2926 = vsub.f32 %v1728, %v2833
    %v2927 = vsub.f32 %v1733, %v2833
    %v2928 = vsub.f32 %v1738, %v2833
    %v2929 = vsub.f32 %v1743, %v2833
    %v2930 = vsub.f32 %v1748, %v2833
    %v2931 = vsub.f32 %v1753, %v2833
    %v2932 = vsub.f32 %v1758, %v2833
    %v2933 = vsub.f32 %v1763, %v2833
    %v2934 = vsub.f32 %v1768, %v2833
    %v2935 = vsub.f32 %v1773, %v2833
    %v2936 = vsub.f32 %v1778, %v2833
    %v2937 = vsub.f32 %v1783, %v2833
    %v2938 = vsub.f32 %v1788, %v2833
    %v2939 = vsub.f32 %v1793, %v2833
    %v2940 = vsub.f32 %v1798, %v2833
    %v2941 = vsub.f32 %v1803, %v2833
    %v2942 = vsub.f32 %v1808, %v2833
    %v2943 = vsub.f32 %v1813, %v2833
    %v2944 = vsub.f32 %v1818, %v2833
    %v2945 = vsub.f32 %v1823, %v2833
    %v2946 = vsub.f32 %v1828, %v2833
    %v2947 = vsub.f32 %v1833, %v2833
    %v2948 = vsub.f32 %v1838, %v2833
    %v2949 = vsub.f32 %v1843, %v2833
    %v2950 = vsub.f32 %v1848, %v2833
    %v2951 = vsub.f32 %v1853, %v2833
    %v2952 = vsub.f32 %v1858, %v2833
    %v2953 = vsub.f32 %v1863, %v2833
    %v2954 = vsub.f32 %v1868, %v2833
    %v2955 = vsub.f32 %v1873, %v2833
    %v2956 = vsub.f32 %v1878, %v2833
    %v2957 = vsub.f32 %v1883, %v2833
    %v2958 = vsub.f32 %v1888, %v2833
    %v2959 = vsub.f32 %v1893, %v2833
    %v2960 = vsub.f32 %v1898, %v2833
    %v2961 = vsub.f32 %v1903, %v2833
    %v2962 = vsub.f32 %v1908, %v2833
    %v2963 = vsub.f32 %v1913, %v2833
    %v2964 = vsub.f32 %v1918, %v2833
    %v2965 = vsub.f32 %v1923, %v2833
    %v2966 = vsub.f32 %v1928, %v2833
    %v2967 = vsub.f32 %v1933, %v2833
    %v2968 = vsub.f32 %v1938, %v2833
    %v2969 = vsub.f32 %v1943, %v2833
    %v2970 = vsub.f32 %v1948, %v2833
    %v2971 = vsub.f32 %v1953, %v2833
    %v2972 = vsub.f32 %v1958, %v2833
    %v2973 = vsub.f32 %v1963, %v2833
    %v2974 = vsub.f32 %v1968, %v2833
    %v2975 = vsub.f32 %v1973, %v2833
    %v2976 = vsub.f32 %v1978, %v2833
    %v2977 = vsub.f32 %v1983, %v2833
    %v2978 = vsub.f32 %v1988, %v2833
    %v2979 = vsub.f32 %v1993, %v2833
    %v2980 = vsub.f32 %v1998, %v2833
    %v2981 = vsub.f32 %v2003, %v2833
    %v2982 = vsub.f32 %v2008, %v2833
    %v2983 = vsub.f32 %v2013, %v2833
    %v2984 = vsub.f32 %v2018, %v2833
    %v2985 = vsub.f32 %v2023, %v2833
    %v2986 = vsub.f32 %v2028, %v2833
    %v2987 = vsub.f32 %v2033, %v2833
    %v2988 = vsub.f32 %v2038, %v2833
    %v2989 = vsub.f32 %v2043, %v2833
    %v2990 = vsub.f32 %v2048, %v2833
    %v2991 = vsub.f32 %v2053, %v2833
    %v2992 = vsub.f32 %v2058, %v2833
    %v2993 = vsub.f32 %v2063, %v2833
    %v2994 = vsub.f32 %v2068, %v2833
    %v2995 = vsub.f32 %v2073, %v2833
    %v2996 = vsub.f32 %v2078, %v2833
    %v2997 = vsub.f32 %v2083, %v2833
    %v2998 = vsub.f32 %v2088, %v2833
    %v2999 = vsub.f32 %v2093, %v2833
    %v3000 = vsub.f32 %v2098, %v2833
    %v3001 = vsub.f32 %v2103, %v2833
    %v3002 = vsub.f32 %v2108, %v2833
    %v3003 = vsub.f32 %v2113, %v2833
    %v3004 = vsub.f32 %v2118, %v2833
    %v3005 = vsub.f32 %v2123, %v2833
    %v3006 = vsub.f32 %v2128, %v2833
    %v3007 = vsub.f32 %v2133, %v2833
    %v3008 = vsub.f32 %v2138, %v2833
    %v3009 = vsub.f32 %v2143, %v2833
    %v3010 = vsub.f32 %v2148, %v2833
    %v3011 = vsub.f32 %v2153, %v2833
    %v3012 = vsub.f32 %v2158, %v2833
    %v3013 = vsub.f32 %v2163, %v2833
    %v3014 = vsub.f32 %v2168, %v2833
    %v3015 = vsub.f32 %v2173, %v2833
    %v3016 = vsub.f32 %v2178, %v2833
    %v3017 = vsub.f32 %v2183, %v2833
    %v3018 = vsub.f32 %v2188, %v2833
    %v3019 = vsub.f32 %v2193, %v2833
    %v3020 = vsub.f32 %v2198, %v2833
    %v3021 = vsub.f32 %v2203, %v2833
    %v3022 = vsub.f32 %v2208, %v2833
    %v3023 = vsub.f32 %v2213, %v2833
    %v3024 = vsub.f32 %v2218, %v2833
    %v3025 = vsub.f32 %v2223, %v2833
    %v3026 = vsub.f32 %v2228, %v2833
    %v3027 = vsub.f32 %v2233, %v2833
    %v3028 = vsub.f32 %v2238, %v2833
    %v3029 = vsub.f32 %v2243, %v2833
    %v3030 = vsub.f32 %v2248, %v2833
    %v3031 = vsub.f32 %v2253, %v2833
    %v3032 = vsub.f32 %v2258, %v2833
    %v3033 = vsub.f32 %v2263, %v2833
    %v3034 = vsub.f32 %v2268, %v2833
    %v3035 = vsub.f32 %v2273, %v2833
    %v3036 = vsub.f32 %v2278, %v2833
    %v3037 = vsub.f32 %v2283, %v2833
    %v3038 = vsub.f32 %v2288, %v2833
    %v3039 = vsub.f32 %v2293, %v2833
    %v3040 = vsub.f32 %v2298, %v2833
    %v3041 = vsub.f32 %v2303, %v2833
    %v3042 = vsub.f32 %v2308, %v2833
    %v3043 = vsub.f32 %v2313, %v2833
    %v3044 = vsub.f32 %v2318, %v2833
    %v3045 = vsub.f32 %v2323, %v2833
    %v3046 = vsub.f32 %v2328, %v2833
    %v3047 = vsub.f32 %v2333, %v2833
    %v3048 = vsub.f32 %v2338, %v2833
    %v3049 = vsub.f32 %v2343, %v2833
    %v3050 = vsub.f32 %v2348, %v2833
    %v3051 = vsub.f32 %v2353, %v2833
    %v3052 = vsub.f32 %v2358, %v2833
    %v3053 = vsub.f32 %v2363, %v2833
    %v3054 = vsub.f32 %v2368, %v2833
    %v3055 = vsub.f32 %v2373, %v2833
    %v3056 = vsub.f32 %v2378, %v2833
    %v3057 = vsub.f32 %v2383, %v2833
    %v3058 = vsub.f32 %v2388, %v2833
    %v3059 = vsub.f32 %v2393, %v2833
    %v3060 = vsub.f32 %v2398, %v2833
    %v3061 = vsub.f32 %v2403, %v2833
    %v3062 = vsub.f32 %v2408, %v2833
    %v3063 = vsub.f32 %v2413, %v2833
    %v3064 = vsub.f32 %v2418, %v2833
    %v3065 = vsub.f32 %v2423, %v2833
    %v3066 = vsub.f32 %v2428, %v2833
    %v3067 = vsub.f32 %v2433, %v2833
    %v3068 = vsub.f32 %v2438, %v2833
    %v3069 = vsub.f32 %v2443, %v2833
    %v3070 = vsub.f32 %v2448, %v2833
    %v3071 = vsub.f32 %v2453, %v2833
    %v3072 = vsub.f32 %v2458, %v2833
    %v3073 = vsub.f32 %v2463, %v2833
    %v3074 = vsub.f32 %v2468, %v2833
    %v3075 = vsub.f32 %v2473, %v2833
    %v3076 = vsub.f32 %v2478, %v2833
    %v3077 = vsub.f32 %v2483, %v2833
    %v3078 = vsub.f32 %v2488, %v2833
    %v3079 = vsub.f32 %v2493, %v2833
    %v3080 = vsub.f32 %v2498, %v2833
    %v3081 = vsub.f32 %v2503, %v2833
    %v3082 = vsub.f32 %v2508, %v2833
    %v3083 = vsub.f32 %v2513, %v2833
    %v3084 = vsub.f32 %v2518, %v2833
    %v3085 = vsub.f32 %v2523, %v2833
    %v3086 = vsub.f32 %v2528, %v2833
    %v3087 = vsub.f32 %v2533, %v2833
    %v3088 = vsub.f32 %v2538, %v2833
    %v3089 = vsub.f32 %v2543, %v2833
    %v3090 = vsub.f32 %v2548, %v2833
    %v3091 = vsub.f32 %v2553, %v2833
    %v3092 = vsub.f32 %v2558, %v2833
    %v3093 = vsub.f32 %v2563, %v2833
    %v3094 = vsub.f32 %v2568, %v2833
    %v3095 = vsub.f32 %v2573, %v2833
    %v3096 = vsub.f32 %v2578, %v2833
    %v3097 = vsub.f32 %v2583, %v2833
    %v3098 = vsub.f32 %v2588, %v2833
    %v3099 = vsub.f32 %v2593, %v2833
    %v3100 = vsub.f32 %v2598, %v2833
    %v3101 = vsub.f32 %v2603, %v2833
    %v3102 = vsub.f32 %v2608, %v2833
    %v3103 = vsub.f32 %v2613, %v2833
    %v3104 = vsub.f32 %v2618, %v2833
    %v3105 = vsub.f32 %v2623, %v2833
    %v3106 = vsub.f32 %v2628, %v2833
    %v3107 = vsub.f32 %v2633, %v2833
    %v3108 = vsub.f32 %v2638, %v2833
    %v3109 = vsub.f32 %v2643, %v2833
    %v3110 = vsub.f32 %v2648, %v2833
    %v3111 = vsub.f32 %v2653, %v2833
    %v3112 = vsub.f32 %v2658, %v2833
    %v3113 = vsub.f32 %v2663, %v2833
    %v3114 = vsub.f32 %v2668, %v2833
    %v3115 = vsub.f32 %v2673, %v2833
    %v3116 = vsub.f32 %v2678, %v2833
    %v3117 = vsub.f32 %v2683, %v2833
    %v3118 = vsub.f32 %v2688, %v2833
    %v3119 = vsub.f32 %v2693, %v2833
    %v3120 = vsub.f32 %v2698, %v2833
    %v3121 = vsub.f32 %v2703, %v2833
    %v3122 = vsub.f32 %v2708, %v2833
    %v3123 = vsub.f32 %v2713, %v2833
    %v3124 = vsub.f32 %v2718, %v2833
    %v3125 = vsub.f32 %v2723, %v2833
    %v3126 = vsub.f32 %v2728, %v2833
    %v3127 = vsub.f32 %v2733, %v2833
    %v3128 = vsub.f32 %v2738, %v2833
    %v3129 = vsub.f32 %v2743, %v2833
    %v3130 = vsub.f32 %v2748, %v2833
    %v3131 = vsub.f32 %v2753, %v2833
    %v3132 = vsub.f32 %v2758, %v2833
    %v3133 = vsub.f32 %v2763, %v2833
    %v3134 = vsub.f32 %v2768, %v2833
    %v3135 = vsub.f32 %v2773, %v2833
    %v3136 = vsub.f32 %v2778, %v2833
    %v3137 = vsub.f32 %v2783, %v2833
    %v3138 = vsub.f32 %v2788, %v2833
    %v3139 = vsub.f32 %v2793, %v2833
    %v3140 = vsub.f32 %v2798, %v2833
    %v3141 = vsub.f32 %v2803, %v2833
    %v3142 = vsub.f32 %v2808, %v2833
    %v3143 = vsub.f32 %v2813, %v2833
    %v3144 = vsub.f32 %v2818, %v2833
    %v3145 = vsub.f32 %v2823, %v2833
    %v3146 = vsub.f32 %v2828, %v2833
    %v3147 = vlaneseq
    %v3148 = vshrl.u32 %v3147, 7
    %v3149 = vsub.s32 1, %v3148
    %v3150 = vrot.slane %v325, %v3149
    %v3151 = vmul.f32 %v3150, %v2834
    %v3152 = vmul.f32 %v3150, %v2835
    %v3153 = vmul.f32 %v3150, %v2836
    %v3154 = vmul.f32 %v3150, %v2837
    %v3155 = vmul.f32 %v3150, %v2838
    %v3156 = vmul.f32 %v3150, %v2839
    %v3157 = vmul.f32 %v3150, %v2840
    %v3158 = vmul.f32 %v3150, %v2841
    %v3159 = vmul.f32 %v3150, %v2842
    %v3160 = vmul.f32 %v3150, %v2843
    %v3161 = vmul.f32 %v3150, %v2844
    %v3162 = vmul.f32 %v3150, %v2845
    %v3163 = vmul.f32 %v3150, %v2846
    %v3164 = vmul.f32 %v3150, %v2847
    %v3165 = vmul.f32 %v3150, %v2848
    %v3166 = vmul.f32 %v3150, %v2849
    %v3167 = vmul.f32 %v3150, %v2850
    %v3168 = vmul.f32 %v3150, %v2851
    %v3169 = vmul.f32 %v3150, %v2852
    %v3170 = vmul.f32 %v3150, %v2853
    %v3171 = vmul.f32 %v3150, %v2854
    %v3172 = vmul.f32 %v3150, %v2855
    %v3173 = vmul.f32 %v3150, %v2856
    %v3174 = vmul.f32 %v3150, %v2857
    %v3175 = vmul.f32 %v3150, %v2858
    %v3176 = vmul.f32 %v3150, %v2859
    %v3177 = vmul.f32 %v3150, %v2860
    %v3178 = vmul.f32 %v3150, %v2861
    %v3179 = vmul.f32 %v3150, %v2862
    %v3180 = vmul.f32 %v3150, %v2863
    %v3181 = vmul.f32 %v3150, %v2864
    %v3182 = vmul.f32 %v3150, %v2865
    %v3183 = vmul.f32 %v3150, %v2866
    %v3184 = vmul.f32 %v3150, %v2867
    %v3185 = vmul.f32 %v3150, %v2868
    %v3186 = vmul.f32 %v3150, %v2869
    %v3187 = vmul.f32 %v3150, %v2870
    %v3188 = vmul.f32 %v3150, %v2871
    %v3189 = vmul.f32 %v3150, %v2872
    %v3190 = vmul.f32 %v3150, %v2873
    %v3191 = vmul.f32 %v3150, %v2874
    %v3192 = vmul.f32 %v3150, %v2875
    %v3193 = vmul.f32 %v3150, %v2876
    %v3194 = vmul.f32 %v3150, %v2877
    %v3195 = vmul.f32 %v3150, %v2878
    %v3196 = vmul.f32 %v3150, %v2879
    %v3197 = vmul.f32 %v3150, %v2880
    %v3198 = vmul.f32 %v3150, %v2881
    %v3199 = vmul.f32 %v3150, %v2882
    %v3200 = vmul.f32 %v3150, %v2883
    %v3201 = vmul.f32 %v3150, %v2884
    %v3202 = vmul.f32 %v3150, %v2885
    %v3203 = vmul.f32 %v3150, %v2886
    %v3204 = vmul.f32 %v3150, %v2887
    %v3205 = vmul.f32 %v3150, %v2888
    %v3206 = vmul.f32 %v3150, %v2889
    %v3207 = vmul.f32 %v3150, %v2890
    %v3208 = vmul.f32 %v3150, %v2891
    %v3209 = vmul.f32 %v3150, %v2892
    %v3210 = vmul.f32 %v3150, %v2893
    %v3211 = vmul.f32 %v3150, %v2894
    %v3212 = vmul.f32 %v3150, %v2895
    %v3213 = vmul.f32 %v3150, %v2896
    %v3214 = vmul.f32 %v3150, %v2897
    %v3215 = vmul.f32 %v3150, %v2898
    %v3216 = vmul.f32 %v3150, %v2899
    %v3217 = vmul.f32 %v3150, %v2900
    %v3218 = vmul.f32 %v3150, %v2901
    %v3219 = vmul.f32 %v3150, %v2902
    %v3220 = vmul.f32 %v3150, %v2903
    %v3221 = vmul.f32 %v3150, %v2904
    %v3222 = vmul.f32 %v3150, %v2905
    %v3223 = vmul.f32 %v3150, %v2906
    %v3224 = vmul.f32 %v3150, %v2907
    %v3225 = vmul.f32 %v3150, %v2908
    %v3226 = vmul.f32 %v3150, %v2909
    %v3227 = vmul.f32 %v3150, %v2910
    %v3228 = vmul.f32 %v3150, %v2911
    %v3229 = vmul.f32 %v3150, %v2912
    %v3230 = vmul.f32 %v3150, %v2913
    %v3231 = vmul.f32 %v3150, %v2914
    %v3232 = vmul.f32 %v3150, %v2915
    %v3233 = vmul.f32 %v3150, %v2916
    %v3234 = vmul.f32 %v3150, %v2917
    %v3235 = vmul.f32 %v3150, %v2918
    %v3236 = vmul.f32 %v3150, %v2919
    %v3237 = vmul.f32 %v3150, %v2920
    %v3238 = vmul.f32 %v3150, %v2921
    %v3239 = vmul.f32 %v3150, %v2922
    %v3240 = vmul.f32 %v3150, %v2923
    %v3241 = vmul.f32 %v3150, %v2924
    %v3242 = vmul.f32 %v3150, %v2925
    %v3243 = vmul.f32 %v3150, %v2926
    %v3244 = vmul.f32 %v3150, %v2927
    %v3245 = vmul.f32 %v3150, %v2928
    %v3246 = vmul.f32 %v3150, %v2929
    %v3247 = vmul.f32 %v3150, %v2930
    %v3248 = vmul.f32 %v3150, %v2931
    %v3249 = vmul.f32 %v3150, %v2932
    %v3250 = vmul.f32 %v3150, %v2933
    %v3251 = vmul.f32 %v3150, %v2934
    %v3252 = vmul.f32 %v3150, %v2935
    %v3253 = vmul.f32 %v3150, %v2936
    %v3254 = vmul.f32 %v3150, %v2937
    %v3255 = vmul.f32 %v3150, %v2938
    %v3256 = vmul.f32 %v3150, %v2939
    %v3257 = vmul.f32 %v3150, %v2940
    %v3258 = vmul.f32 %v3150, %v2941
    %v3259 = vmul.f32 %v3150, %v2942
    %v3260 = vmul.f32 %v3150, %v2943
    %v3261 = vmul.f32 %v3150, %v2944
    %v3262 = vmul.f32 %v3150, %v2945
    %v3263 = vmul.f32 %v3150, %v2946
    %v3264 = vmul.f32 %v3150, %v2947
    %v3265 = vmul.f32 %v3150, %v2948
    %v3266 = vmul.f32 %v3150, %v2949
    %v3267 = vmul.f32 %v3150, %v2950
    %v3268 = vmul.f32 %v3150, %v2951
    %v3269 = vmul.f32 %v3150, %v2952
    %v3270 = vmul.f32 %v3150, %v2953
    %v3271 = vmul.f32 %v3150, %v2954
    %v3272 = vmul.f32 %v3150, %v2955
    %v3273 = vmul.f32 %v3150, %v2956
    %v3274 = vmul.f32 %v3150, %v2957
    %v3275 = vmul.f32 %v3150, %v2958
    %v3276 = vmul.f32 %v3150, %v2959
    %v3277 = vmul.f32 %v3150, %v2960
    %v3278 = vmul.f32 %v3150, %v2961
    %v3279 = vmul.f32 %v3150, %v2962
    %v3280 = vmul.f32 %v3150, %v2963
    %v3281 = vmul.f32 %v3150, %v2964
    %v3282 = vmul.f32 %v3150, %v2965
    %v3283 = vmul.f32 %v3150, %v2966
    %v3284 = vmul.f32 %v3150, %v2967
    %v3285 = vmul.f32 %v3150, %v2968
    %v3286 = vmul.f32 %v3150, %v2969
    %v3287 = vmul.f32 %v3150, %v2970
    %v3288 = vmul.f32 %v3150, %v2971
    %v3289 = vmul.f32 %v3150, %v2972
    %v3290 = vmul.f32 %v3150, %v2973
    %v3291 = vmul.f32 %v3150, %v2974
    %v3292 = vmul.f32 %v3150, %v2975
    %v3293 = vmul.f32 %v3150, %v2976
    %v3294 = vmul.f32 %v3150, %v2977
    %v3295 = vmul.f32 %v3150, %v2978
    %v3296 = vmul.f32 %v3150, %v2979
    %v3297 = vmul.f32 %v3150, %v2980
    %v3298 = vmul.f32 %v3150, %v2981
    %v3299 = vmul.f32 %v3150, %v2982
    %v3300 = vmul.f32 %v3150, %v2983
    %v3301 = vmul.f32 %v3150, %v2984
    %v3302 = vmul.f32 %v3150, %v2985
    %v3303 = vmul.f32 %v3150, %v2986
    %v3304 = vmul.f32 %v3150, %v2987
    %v3305 = vmul.f32 %v3150, %v2988
    %v3306 = vmul.f32 %v3150, %v2989
    %v3307 = vmul.f32 %v3150, %v2990
    %v3308 = vmul.f32 %v3150, %v2991
    %v3309 = vmul.f32 %v3150, %v2992
    %v3310 = vmul.f32 %v3150, %v2993
    %v3311 = vmul.f32 %v3150, %v2994
    %v3312 = vmul.f32 %v3150, %v2995
    %v3313 = vmul.f32 %v3150, %v2996
    %v3314 = vmul.f32 %v3150, %v2997
    %v3315 = vmul.f32 %v3150, %v2998
    %v3316 = vmul.f32 %v3150, %v2999
    %v3317 = vmul.f32 %v3150, %v3000
    %v3318 = vmul.f32 %v3150, %v3001
    %v3319 = vmul.f32 %v3150, %v3002
    %v3320 = vmul.f32 %v3150, %v3003
    %v3321 = vmul.f32 %v3150, %v3004
    %v3322 = vmul.f32 %v3150, %v3005
    %v3323 = vmul.f32 %v3150, %v3006
    %v3324 = vmul.f32 %v3150, %v3007
    %v3325 = vmul.f32 %v3150, %v3008
    %v3326 = vmul.f32 %v3150, %v3009
    %v3327 = vmul.f32 %v3150, %v3010
    %v3328 = vmul.f32 %v3150, %v3011
    %v3329 = vmul.f32 %v3150, %v3012
    %v3330 = vmul.f32 %v3150, %v3013
    %v3331 = vmul.f32 %v3150, %v3014
    %v3332 = vmul.f32 %v3150, %v3015
    %v3333 = vmul.f32 %v3150, %v3016
    %v3334 = vmul.f32 %v3150, %v3017
    %v3335 = vmul.f32 %v3150, %v3018
    %v3336 = vmul.f32 %v3150, %v3019
    %v3337 = vmul.f32 %v3150, %v3020
    %v3338 = vmul.f32 %v3150, %v3021
    %v3339 = vmul.f32 %v3150, %v3022
    %v3340 = vmul.f32 %v3150, %v3023
    %v3341 = vmul.f32 %v3150, %v3024
    %v3342 = vmul.f32 %v3150, %v3025
    %v3343 = vmul.f32 %v3150, %v3026
    %v3344 = vmul.f32 %v3150, %v3027
    %v3345 = vmul.f32 %v3150, %v3028
    %v3346 = vmul.f32 %v3150, %v3029
    %v3347 = vmul.f32 %v3150, %v3030
    %v3348 = vmul.f32 %v3150, %v3031
    %v3349 = vmul.f32 %v3150, %v3032
    %v3350 = vmul.f32 %v3150, %v3033
    %v3351 = vmul.f32 %v3150, %v3034
    %v3352 = vmul.f32 %v3150, %v3035
    %v3353 = vmul.f32 %v3150, %v3036
    %v3354 = vmul.f32 %v3150, %v3037
    %v3355 = vmul.f32 %v3150, %v3038
    %v3356 = vmul.f32 %v3150, %v3039
    %v3357 = vmul.f32 %v3150, %v3040
    %v3358 = vmul.f32 %v3150, %v3041
    %v3359 = vmul.f32 %v3150, %v3042
    %v3360 = vmul.f32 %v3150, %v3043
    %v3361 = vmul.f32 %v3150, %v3044
    %v3362 = vmul.f32 %v3150, %v3045
    %v3363 = vmul.f32 %v3150, %v3046
    %v3364 = vmul.f32 %v3150, %v3047
    %v3365 = vmul.f32 %v3150, %v3048
    %v3366 = vmul.f32 %v3150, %v3049
    %v3367 = vmul.f32 %v3150, %v3050
    %v3368 = vmul.f32 %v3150, %v3051
    %v3369 = vmul.f32 %v3150, %v3052
    %v3370 = vmul.f32 %v3150, %v3053
    %v3371 = vmul.f32 %v3150, %v3054
    %v3372 = vmul.f32 %v3150, %v3055
    %v3373 = vmul.f32 %v3150, %v3056
    %v3374 = vmul.f32 %v3150, %v3057
    %v3375 = vmul.f32 %v3150, %v3058
    %v3376 = vmul.f32 %v3150, %v3059
    %v3377 = vmul.f32 %v3150, %v3060
    %v3378 = vmul.f32 %v3150, %v3061
    %v3379 = vmul.f32 %v3150, %v3062
    %v3380 = vmul.f32 %v3150, %v3063
    %v3381 = vmul.f32 %v3150, %v3064
    %v3382 = vmul.f32 %v3150, %v3065
    %v3383 = vmul.f32 %v3150, %v3066
    %v3384 = vmul.f32 %v3150, %v3067
    %v3385 = vmul.f32 %v3150, %v3068
    %v3386 = vmul.f32 %v3150, %v3069
    %v3387 = vmul.f32 %v3150, %v3070
    %v3388 = vmul.f32 %v3150, %v3071
    %v3389 = vmul.f32 %v3150, %v3072
    %v3390 = vmul.f32 %v3150, %v3073
    %v3391 = vmul.f32 %v3150, %v3074
    %v3392 = vmul.f32 %v3150, %v3075
    %v3393 = vmul.f32 %v3150, %v3076
    %v3394 = vmul.f32 %v3150, %v3077
    %v3395 = vmul.f32 %v3150, %v3078
    %v3396 = vmul.f32 %v3150, %v3079
    %v3397 = vmul.f32 %v3150, %v3080
    %v3398 = vmul.f32 %v3150, %v3081
    %v3399 = vmul.f32 %v3150, %v3082
    %v3400 = vmul.f32 %v3150, %v3083
    %v3401 = vmul.f32 %v3150, %v3084
    %v3402 = vmul.f32 %v3150, %v3085
    %v3403 = vmul.f32 %v3150, %v3086
    %v3404 = vmul.f32 %v3150, %v3087
    %v3405 = vmul.f32 %v3150, %v3088
    %v3406 = vmul.f32 %v3150, %v3089
    %v3407 = vmul.f32 %v3150, %v3090
    %v3408 = vmul.f32 %v3150, %v3091
    %v3409 = vmul.f32 %v3150, %v3092
    %v3410 = vmul.f32 %v3150, %v3093
    %v3411 = vmul.f32 %v3150, %v3094
    %v3412 = vmul.f32 %v3150, %v3095
    %v3413 = vmul.f32 %v3150, %v3096
    %v3414 = vmul.f32 %v3150, %v3097
    %v3415 = vmul.f32 %v3150, %v3098
    %v3416 = vmul.f32 %v3150, %v3099
    %v3417 = vmul.f32 %v3150, %v3100
    %v3418 = vmul.f32 %v3150, %v3101
    %v3419 = vmul.f32 %v3150, %v3102
    %v3420 = vmul.f32 %v3150, %v3103
    %v3421 = vmul.f32 %v3150, %v3104
    %v3422 = vmul.f32 %v3150, %v3105
    %v3423 = vmul.f32 %v3150, %v3106
    %v3424 = vmul.f32 %v3150, %v3107
    %v3425 = vmul.f32 %v3150, %v3108
    %v3426 = vmul.f32 %v3150, %v3109
    %v3427 = vmul.f32 %v3150, %v3110
    %v3428 = vmul.f32 %v3150, %v3111
    %v3429 = vmul.f32 %v3150, %v3112
    %v3430 = vmul.f32 %v3150, %v3113
    %v3431 = vmul.f32 %v3150, %v3114
    %v3432 = vmul.f32 %v3150, %v3115
    %v3433 = vmul.f32 %v3150, %v3116
    %v3434 = vmul.f32 %v3150, %v3117
    %v3435 = vmul.f32 %v3150, %v3118
    %v3436 = vmul.f32 %v3150, %v3119
    %v3437 = vmul.f32 %v3150, %v3120
    %v3438 = vmul.f32 %v3150, %v3121
    %v3439 = vmul.f32 %v3150, %v3122
    %v3440 = vmul.f32 %v3150, %v3123
    %v3441 = vmul.f32 %v3150, %v3124
    %v3442 = vmul.f32 %v3150, %v3125
    %v3443 = vmul.f32 %v3150, %v3126
    %v3444 = vmul.f32 %v3150, %v3127
    %v3445 = vmul.f32 %v3150, %v3128
    %v3446 = vmul.f32 %v3150, %v3129
    %v3447 = vmul.f32 %v3150, %v3130
    %v3448 = vmul.f32 %v3150, %v3131
    %v3449 = vmul.f32 %v3150, %v3132
    %v3450 = vmul.f32 %v3150, %v3133
    %v3451 = vmul.f32 %v3150, %v3134
    %v3452 = vmul.f32 %v3150, %v3135
    %v3453 = vmul.f32 %v3150, %v3136
    %v3454 = vmul.f32 %v3150, %v3137
    %v3455 = vmul.f32 %v3150, %v3138
    %v3456 = vmul.f32 %v3150, %v3139
    %v3457 = vmul.f32 %v3150, %v3140
    %v3458 = vmul.f32 %v3150, %v3141
    %v3459 = vmul.f32 %v3150, %v3142
    %v3460 = vmul.f32 %v3150, %v3143
    %v3461 = vmul.f32 %v3150, %v3144
    %v3462 = vmul.f32 %v3150, %v3145
    %v3463 = vmul.f32 %v3150, %v3146
    %v3464 = vmul.f32 %v3151, %v2834
    %v3465 = vmul.f32 %v3152, %v2835
    %v3466 = vmul.f32 %v3153, %v2836
    %v3467 = vmul.f32 %v3154, %v2837
    %v3468 = vmul.f32 %v3155, %v2838
    %v3469 = vmul.f32 %v3156, %v2839
    %v3470 = vmul.f32 %v3157, %v2840
    %v3471 = vmul.f32 %v3158, %v2841
    %v3472 = vmul.f32 %v3159, %v2842
    %v3473 = vmul.f32 %v3160, %v2843
    %v3474 = vmul.f32 %v3161, %v2844
    %v3475 = vmul.f32 %v3162, %v2845
    %v3476 = vmul.f32 %v3163, %v2846
    %v3477 = vmul.f32 %v3164, %v2847
    %v3478 = vmul.f32 %v3165, %v2848
    %v3479 = vmul.f32 %v3166, %v2849
    %v3480 = vmul.f32 %v3167, %v2850
    %v3481 = vmul.f32 %v3168, %v2851
    %v3482 = vmul.f32 %v3169, %v2852
    %v3483 = vmul.f32 %v3170, %v2853
    %v3484 = vmul.f32 %v3171, %v2854
    %v3485 = vmul.f32 %v3172, %v2855
    %v3486 = vmul.f32 %v3173, %v2856
    %v3487 = vmul.f32 %v3174, %v2857
    %v3488 = vmul.f32 %v3175, %v2858
    %v3489 = vmul.f32 %v3176, %v2859
    %v3490 = vmul.f32 %v3177, %v2860
    %v3491 = vmul.f32 %v3178, %v2861
    %v3492 = vmul.f32 %v3179, %v2862
    %v3493 = vmul.f32 %v3180, %v2863
    %v3494 = vmul.f32 %v3181, %v2864
    %v3495 = vmul.f32 %v3182, %v2865
    %v3496 = vmul.f32 %v3183, %v2866
    %v3497 = vmul.f32 %v3184, %v2867
    %v3498 = vmul.f32 %v3185, %v2868
    %v3499 = vmul.f32 %v3186, %v2869
    %v3500 = vmul.f32 %v3187, %v2870
    %v3501 = vmul.f32 %v3188, %v2871
    %v3502 = vmul.f32 %v3189, %v2872
    %v3503 = vmul.f32 %v3190, %v2873
    %v3504 = vmul.f32 %v3191, %v2874
    %v3505 = vmul.f32 %v3192, %v2875
    %v3506 = vmul.f32 %v3193, %v2876
    %v3507 = vmul.f32 %v3194, %v2877
    %v3508 = vmul.f32 %v3195, %v2878
    %v3509 = vmul.f32 %v3196, %v2879
    %v3510 = vmul.f32 %v3197, %v2880
    %v3511 = vmul.f32 %v3198, %v2881
    %v3512 = vmul.f32 %v3199, %v2882
    %v3513 = vmul.f32 %v3200, %v2883
    %v3514 = vmul.f32 %v3201, %v2884
    %v3515 = vmul.f32 %v3202, %v2885
    %v3516 = vmul.f32 %v3203, %v2886
    %v3517 = vmul.f32 %v3204, %v2887
    %v3518 = vmul.f32 %v3205, %v2888
    %v3519 = vmul.f32 %v3206, %v2889
    %v3520 = vmul.f32 %v3207, %v2890
    %v3521 = vmul.f32 %v3208, %v2891
    %v3522 = vmul.f32 %v3209, %v2892
    %v3523 = vmul.f32 %v3210, %v2893
    %v3524 = vmul.f32 %v3211, %v2894
    %v3525 = vmul.f32 %v3212, %v2895
    %v3526 = vmul.f32 %v3213, %v2896
    %v3527 = vmul.f32 %v3214, %v2897
    %v3528 = vmul.f32 %v3215, %v2898
    %v3529 = vmul.f32 %v3216, %v2899
    %v3530 = vmul.f32 %v3217, %v2900
    %v3531 = vmul.f32 %v3218, %v2901
    %v3532 = vmul.f32 %v3219, %v2902
    %v3533 = vmul.f32 %v3220, %v2903
    %v3534 = vmul.f32 %v3221, %v2904
    %v3535 = vmul.f32 %v3222, %v2905
    %v3536 = vmul.f32 %v3223, %v2906
    %v3537 = vmul.f32 %v3224, %v2907
    %v3538 = vmul.f32 %v3225, %v2908
    %v3539 = vmul.f32 %v3226, %v2909
    %v3540 = vmul.f32 %v3227, %v2910
    %v3541 = vmul.f32 %v3228, %v2911
    %v3542 = vmul.f32 %v3229, %v2912
    %v3543 = vmul.f32 %v3230, %v2913
    %v3544 = vmul.f32 %v3231, %v2914
    %v3545 = vmul.f32 %v3232, %v2915
    %v3546 = vmul.f32 %v3233, %v2916
    %v3547 = vmul.f32 %v3234, %v2917
    %v3548 = vmul.f32 %v3235, %v2918
    %v3549 = vmul.f32 %v3236, %v2919
    %v3550 = vmul.f32 %v3237, %v2920
    %v3551 = vmul.f32 %v3238, %v2921
    %v3552 = vmul.f32 %v3239, %v2922
    %v3553 = vmul.f32 %v3240, %v2923
    %v3554 = vmul.f32 %v3241, %v2924
    %v3555 = vmul.f32 %v3242, %v2925
    %v3556 = vmul.f32 %v3243, %v2926
    %v3557 = vmul.f32 %v3244, %v2927
    %v3558 = vmul.f32 %v3245, %v2928
    %v3559 = vmul.f32 %v3246, %v2929
    %v3560 = vmul.f32 %v3247, %v2930
    %v3561 = vmul.f32 %v3248, %v2931
    %v3562 = vmul.f32 %v3249, %v2932
    %v3563 = vmul.f32 %v3250, %v2933
    %v3564 = vmul.f32 %v3251, %v2934
    %v3565 = vmul.f32 %v3252, %v2935
    %v3566 = vmul.f32 %v3253, %v2936
    %v3567 = vmul.f32 %v3254, %v2937
    %v3568 = vmul.f32 %v3255, %v2938
    %v3569 = vmul.f32 %v3256, %v2939
    %v3570 = vmul.f32 %v3257, %v2940
    %v3571 = vmul.f32 %v3258, %v2941
    %v3572 = vmul.f32 %v3259, %v2942
    %v3573 = vmul.f32 %v3260, %v2943
    %v3574 = vmul.f32 %v3261, %v2944
    %v3575 = vmul.f32 %v3262, %v2945
    %v3576 = vmul.f32 %v3263, %v2946
    %v3577 = vmul.f32 %v3264, %v2947
    %v3578 = vmul.f32 %v3265, %v2948
    %v3579 = vmul.f32 %v3266, %v2949
    %v3580 = vmul.f32 %v3267, %v2950
    %v3581 = vmul.f32 %v3268, %v2951
    %v3582 = vmul.f32 %v3269, %v2952
    %v3583 = vmul.f32 %v3270, %v2953
    %v3584 = vmul.f32 %v3271, %v2954
    %v3585 = vmul.f32 %v3272, %v2955
    %v3586 = vmul.f32 %v3273, %v2956
    %v3587 = vmul.f32 %v3274, %v2957
    %v3588 = vmul.f32 %v3275, %v2958
    %v3589 = vmul.f32 %v3276, %v2959
    %v3590 = vmul.f32 %v3277, %v2960
    %v3591 = vmul.f32 %v3278, %v2961
    %v3592 = vmul.f32 %v3279, %v2962
    %v3593 = vmul.f32 %v3280, %v2963
    %v3594 = vmul.f32 %v3281, %v2964
    %v3595 = vmul.f32 %v3282, %v2965
    %v3596 = vmul.f32 %v3283, %v2966
    %v3597 = vmul.f32 %v3284, %v2967
    %v3598 = vmul.f32 %v3285, %v2968
    %v3599 = vmul.f32 %v3286, %v2969
    %v3600 = vmul.f32 %v3287, %v2970
    %v3601 = vmul.f32 %v3288, %v2971
    %v3602 = vmul.f32 %v3289, %v2972
    %v3603 = vmul.f32 %v3290, %v2973
    %v3604 = vmul.f32 %v3291, %v2974
    %v3605 = vmul.f32 %v3292, %v2975
    %v3606 = vmul.f32 %v3293, %v2976
    %v3607 = vmul.f32 %v3294, %v2977
    %v3608 = vmul.f32 %v3295, %v2978
    %v3609 = vmul.f32 %v3296, %v2979
    %v3610 = vmul.f32 %v3297, %v2980
    %v3611 = vmul.f32 %v3298, %v2981
    %v3612 = vmul.f32 %v3299, %v2982
    %v3613 = vmul.f32 %v3300, %v2983
    %v3614 = vmul.f32 %v3301, %v2984
    %v3615 = vmul.f32 %v3302, %v2985
    %v3616 = vmul.f32 %v3303, %v2986
    %v3617 = vmul.f32 %v3304, %v2987
    %v3618 = vmul.f32 %v3305, %v2988
    %v3619 = vmul.f32 %v3306, %v2989
    %v3620 = vmul.f32 %v3307, %v2990
    %v3621 = vmul.f32 %v3308, %v2991
    %v3622 = vmul.f32 %v3309, %v2992
    %v3623 = vmul.f32 %v3310, %v2993
    %v3624 = vmul.f32 %v3311, %v2994
    %v3625 = vmul.f32 %v3312, %v2995
    %v3626 = vmul.f32 %v3313, %v2996
    %v3627 = vmul.f32 %v3314, %v2997
    %v3628 = vmul.f32 %v3315, %v2998
    %v3629 = vmul.f32 %v3316, %v2999
    %v3630 = vmul.f32 %v3317, %v3000
    %v3631 = vmul.f32 %v3318, %v3001
    %v3632 = vmul.f32 %v3319, %v3002
    %v3633 = vmul.f32 %v3320, %v3003
    %v3634 = vmul.f32 %v3321, %v3004
    %v3635 = vmul.f32 %v3322, %v3005
    %v3636 = vmul.f32 %v3323, %v3006
    %v3637 = vmul.f32 %v3324, %v3007
    %v3638 = vmul.f32 %v3325, %v3008
    %v3639 = vmul.f32 %v3326, %v3009
    %v3640 = vmul.f32 %v3327, %v3010
    %v3641 = vmul.f32 %v3328, %v3011
    %v3642 = vmul.f32 %v3329, %v3012
    %v3643 = vmul.f32 %v3330, %v3013
    %v3644 = vmul.f32 %v3331, %v3014
    %v3645 = vmul.f32 %v3332, %v3015
    %v3646 = vmul.f32 %v3333, %v3016
    %v3647 = vmul.f32 %v3334, %v3017
    %v3648 = vmul.f32 %v3335, %v3018
    %v3649 = vmul.f32 %v3336, %v3019
    %v3650 = vmul.f32 %v3337, %v3020
    %v3651 = vmul.f32 %v3338, %v3021
    %v3652 = vmul.f32 %v3339, %v3022
    %v3653 = vmul.f32 %v3340, %v3023
    %v3654 = vmul.f32 %v3341, %v3024
    %v3655 = vmul.f32 %v3342, %v3025
    %v3656 = vmul.f32 %v3343, %v3026
    %v3657 = vmul.f32 %v3344, %v3027
    %v3658 = vmul.f32 %v3345, %v3028
    %v3659 = vmul.f32 %v3346, %v3029
    %v3660 = vmul.f32 %v3347, %v3030
    %v3661 = vmul.f32 %v3348, %v3031
    %v3662 = vmul.f32 %v3349, %v3032
    %v3663 = vmul.f32 %v3350, %v3033
    %v3664 = vmul.f32 %v3351, %v3034
    %v3665 = vmul.f32 %v3352, %v3035
    %v3666 = vmul.f32 %v3353, %v3036
    %v3667 = vmul.f32 %v3354, %v3037
    %v3668 = vmul.f32 %v3355, %v3038
    %v3669 = vmul.f32 %v3356, %v3039
    %v3670 = vmul.f32 %v3357, %v3040
    %v3671 = vmul.f32 %v3358, %v3041
    %v3672 = vmul.f32 %v3359, %v3042
    %v3673 = vmul.f32 %v3360, %v3043
    %v3674 = vmul.f32 %v3361, %v3044
    %v3675 = vmul.f32 %v3362, %v3045
    %v3676 = vmul.f32 %v3363, %v3046
    %v3677 = vmul.f32 %v3364, %v3047
    %v3678 = vmul.f32 %v3365, %v3048
    %v3679 = vmul.f32 %v3366, %v3049
    %v3680 = vmul.f32 %v3367, %v3050
    %v3681 = vmul.f32 %v3368, %v3051
    %v3682 = vmul.f32 %v3369, %v3052
    %v3683 = vmul.f32 %v3370, %v3053
    %v3684 = vmul.f32 %v3371, %v3054
    %v3685 = vmul.f32 %v3372, %v3055
    %v3686 = vmul.f32 %v3373, %v3056
    %v3687 = vmul.f32 %v3374, %v3057
    %v3688 = vmul.f32 %v3375, %v3058
    %v3689 = vmul.f32 %v3376, %v3059
    %v3690 = vmul.f32 %v3377, %v3060
    %v3691 = vmul.f32 %v3378, %v3061
    %v3692 = vmul.f32 %v3379, %v3062
    %v3693 = vmul.f32 %v3380, %v3063
    %v3694 = vmul.f32 %v3381, %v3064
    %v3695 = vmul.f32 %v3382, %v3065
    %v3696 = vmul.f32 %v3383, %v3066
    %v3697 = vmul.f32 %v3384, %v3067
    %v3698 = vmul.f32 %v3385, %v3068
    %v3699 = vmul.f32 %v3386, %v3069
    %v3700 = vmul.f32 %v3387, %v3070
    %v3701 = vmul.f32 %v3388, %v3071
    %v3702 = vmul.f32 %v3389, %v3072
    %v3703 = vmul.f32 %v3390, %v3073
    %v3704 = vmul.f32 %v3391, %v3074
    %v3705 = vmul.f32 %v3392, %v3075
    %v3706 = vmul.f32 %v3393, %v3076
    %v3707 = vmul.f32 %v3394, %v3077
    %v3708 = vmul.f32 %v3395, %v3078
    %v3709 = vmul.f32 %v3396, %v3079
    %v3710 = vmul.f32 %v3397, %v3080
    %v3711 = vmul.f32 %v3398, %v3081
    %v3712 = vmul.f32 %v3399, %v3082
    %v3713 = vmul.f32 %v3400, %v3083
    %v3714 = vmul.f32 %v3401, %v3084
    %v3715 = vmul.f32 %v3402, %v3085
    %v3716 = vmul.f32 %v3403, %v3086
    %v3717 = vmul.f32 %v3404, %v3087
    %v3718 = vmul.f32 %v3405, %v3088
    %v3719 = vmul.f32 %v3406, %v3089
    %v3720 = vmul.f32 %v3407, %v3090
    %v3721 = vmul.f32 %v3408, %v3091
    %v3722 = vmul.f32 %v3409, %v3092
    %v3723 = vmul.f32 %v3410, %v3093
    %v3724 = vmul.f32 %v3411, %v3094
    %v3725 = vmul.f32 %v3412, %v3095
    %v3726 = vmul.f32 %v3413, %v3096
    %v3727 = vmul.f32 %v3414, %v3097
    %v3728 = vmul.f32 %v3415, %v3098
    %v3729 = vmul.f32 %v3416, %v3099
    %v3730 = vmul.f32 %v3417, %v3100
    %v3731 = vmul.f32 %v3418, %v3101
    %v3732 = vmul.f32 %v3419, %v3102
    %v3733 = vmul.f32 %v3420, %v3103
    %v3734 = vmul.f32 %v3421, %v3104
    %v3735 = vmul.f32 %v3422, %v3105
    %v3736 = vmul.f32 %v3423, %v3106
    %v3737 = vmul.f32 %v3424, %v3107
    %v3738 = vmul.f32 %v3425, %v3108
    %v3739 = vmul.f32 %v3426, %v3109
    %v3740 = vmul.f32 %v3427, %v3110
    %v3741 = vmul.f32 %v3428, %v3111
    %v3742 = vmul.f32 %v3429, %v3112
    %v3743 = vmul.f32 %v3430, %v3113
    %v3744 = vmul.f32 %v3431, %v3114
    %v3745 = vmul.f32 %v3432, %v3115
    %v3746 = vmul.f32 %v3433, %v3116
    %v3747 = vmul.f32 %v3434, %v3117
    %v3748 = vmul.f32 %v3435, %v3118
    %v3749 = vmul.f32 %v3436, %v3119
    %v3750 = vmul.f32 %v3437, %v3120
    %v3751 = vmul.f32 %v3438, %v3121
    %v3752 = vmul.f32 %v3439, %v3122
    %v3753 = vmul.f32 %v3440, %v3123
    %v3754 = vmul.f32 %v3441, %v3124
    %v3755 = vmul.f32 %v3442, %v3125
    %v3756 = vmul.f32 %v3443, %v3126
    %v3757 = vmul.f32 %v3444, %v3127
    %v3758 = vmul.f32 %v3445, %v3128
    %v3759 = vmul.f32 %v3446, %v3129
    %v3760 = vmul.f32 %v3447, %v3130
    %v3761 = vmul.f32 %v3448, %v3131
    %v3762 = vmul.f32 %v3449, %v3132
    %v3763 = vmul.f32 %v3450, %v3133
    %v3764 = vmul.f32 %v3451, %v3134
    %v3765 = vmul.f32 %v3452, %v3135
    %v3766 = vmul.f32 %v3453, %v3136
    %v3767 = vmul.f32 %v3454, %v3137
    %v3768 = vmul.f32 %v3455, %v3138
    %v3769 = vmul.f32 %v3456, %v3139
    %v3770 = vmul.f32 %v3457, %v3140
    %v3771 = vmul.f32 %v3458, %v3141
    %v3772 = vmul.f32 %v3459, %v3142
    %v3773 = vmul.f32 %v3460, %v3143
    %v3774 = vmul.f32 %v3461, %v3144
    %v3775 = vmul.f32 %v3462, %v3145
    %v3776 = vmul.f32 %v3463, %v3146
    %v3777 = vmul.f32 %v3464, 1.442695
    %v3778 = vpow.pop %v3777
    %v3779 = vmul.f32 %v3465, 1.442695
    %v3780 = vpow.pop %v3779
    %v3781 = vmul.f32 %v3466, 1.442695
    %v3782 = vpow.pop %v3781
    %v3783 = vmul.f32 %v3467, 1.442695
    %v3784 = vpow.pop %v3783
    %v3785 = vmul.f32 %v3468, 1.442695
    %v3786 = vpow.pop %v3785
    %v3787 = vmul.f32 %v3469, 1.442695
    %v3788 = vpow.pop %v3787
    %v3789 = vmul.f32 %v3470, 1.442695
    %v3790 = vpow.pop %v3789
    %v3791 = vmul.f32 %v3471, 1.442695
    %v3792 = vpow.pop %v3791
    %v3793 = vmul.f32 %v3472, 1.442695
    %v3794 = vpow.pop %v3793
    %v3795 = vmul.f32 %v3473, 1.442695
    %v3796 = vpow.pop %v3795
    %v3797 = vmul.f32 %v3474, 1.442695
    %v3798 = vpow.pop %v3797
    %v3799 = vmul.f32 %v3475, 1.442695
    %v3800 = vpow.pop %v3799
    %v3801 = vmul.f32 %v3476, 1.442695
    %v3802 = vpow.pop %v3801
    %v3803 = vmul.f32 %v3477, 1.442695
    %v3804 = vpow.pop %v3803
    %v3805 = vmul.f32 %v3478, 1.442695
    %v3806 = vpow.pop %v3805
    %v3807 = vmul.f32 %v3479, 1.442695
    %v3808 = vpow.pop %v3807
    %v3809 = vmul.f32 %v3480, 1.442695
    %v3810 = vpow.pop %v3809
    %v3811 = vmul.f32 %v3481, 1.442695
    %v3812 = vpow.pop %v3811
    %v3813 = vmul.f32 %v3482, 1.442695
    %v3814 = vpow.pop %v3813
    %v3815 = vmul.f32 %v3483, 1.442695
    %v3816 = vpow.pop %v3815
    %v3817 = vmul.f32 %v3484, 1.442695
    %v3818 = vpow.pop %v3817
    %v3819 = vmul.f32 %v3485, 1.442695
    %v3820 = vpow.pop %v3819
    %v3821 = vmul.f32 %v3486, 1.442695
    %v3822 = vpow.pop %v3821
    %v3823 = vmul.f32 %v3487, 1.442695
    %v3824 = vpow.pop %v3823
    %v3825 = vmul.f32 %v3488, 1.442695
    %v3826 = vpow.pop %v3825
    %v3827 = vmul.f32 %v3489, 1.442695
    %v3828 = vpow.pop %v3827
    %v3829 = vmul.f32 %v3490, 1.442695
    %v3830 = vpow.pop %v3829
    %v3831 = vmul.f32 %v3491, 1.442695
    %v3832 = vpow.pop %v3831
    %v3833 = vmul.f32 %v3492, 1.442695
    %v3834 = vpow.pop %v3833
    %v3835 = vmul.f32 %v3493, 1.442695
    %v3836 = vpow.pop %v3835
    %v3837 = vmul.f32 %v3494, 1.442695
    %v3838 = vpow.pop %v3837
    %v3839 = vmul.f32 %v3495, 1.442695
    %v3840 = vpow.pop %v3839
    %v3841 = vmul.f32 %v3496, 1.442695
    %v3842 = vpow.pop %v3841
    %v3843 = vmul.f32 %v3497, 1.442695
    %v3844 = vpow.pop %v3843
    %v3845 = vmul.f32 %v3498, 1.442695
    %v3846 = vpow.pop %v3845
    %v3847 = vmul.f32 %v3499, 1.442695
    %v3848 = vpow.pop %v3847
    %v3849 = vmul.f32 %v3500, 1.442695
    %v3850 = vpow.pop %v3849
    %v3851 = vmul.f32 %v3501, 1.442695
    %v3852 = vpow.pop %v3851
    %v3853 = vmul.f32 %v3502, 1.442695
    %v3854 = vpow.pop %v3853
    %v3855 = vmul.f32 %v3503, 1.442695
    %v3856 = vpow.pop %v3855
    %v3857 = vmul.f32 %v3504, 1.442695
    %v3858 = vpow.pop %v3857
    %v3859 = vmul.f32 %v3505, 1.442695
    %v3860 = vpow.pop %v3859
    %v3861 = vmul.f32 %v3506, 1.442695
    %v3862 = vpow.pop %v3861
    %v3863 = vmul.f32 %v3507, 1.442695
    %v3864 = vpow.pop %v3863
    %v3865 = vmul.f32 %v3508, 1.442695
    %v3866 = vpow.pop %v3865
    %v3867 = vmul.f32 %v3509, 1.442695
    %v3868 = vpow.pop %v3867
    %v3869 = vmul.f32 %v3510, 1.442695
    %v3870 = vpow.pop %v3869
    %v3871 = vmul.f32 %v3511, 1.442695
    %v3872 = vpow.pop %v3871
    %v3873 = vmul.f32 %v3512, 1.442695
    %v3874 = vpow.pop %v3873
    %v3875 = vmul.f32 %v3513, 1.442695
    %v3876 = vpow.pop %v3875
    %v3877 = vmul.f32 %v3514, 1.442695
    %v3878 = vpow.pop %v3877
    %v3879 = vmul.f32 %v3515, 1.442695
    %v3880 = vpow.pop %v3879
    %v3881 = vmul.f32 %v3516, 1.442695
    %v3882 = vpow.pop %v3881
    %v3883 = vmul.f32 %v3517, 1.442695
    %v3884 = vpow.pop %v3883
    %v3885 = vmul.f32 %v3518, 1.442695
    %v3886 = vpow.pop %v3885
    %v3887 = vmul.f32 %v3519, 1.442695
    %v3888 = vpow.pop %v3887
    %v3889 = vmul.f32 %v3520, 1.442695
    %v3890 = vpow.pop %v3889
    %v3891 = vmul.f32 %v3521, 1.442695
    %v3892 = vpow.pop %v3891
    %v3893 = vmul.f32 %v3522, 1.442695
    %v3894 = vpow.pop %v3893
    %v3895 = vmul.f32 %v3523, 1.442695
    %v3896 = vpow.pop %v3895
    %v3897 = vmul.f32 %v3524, 1.442695
    %v3898 = vpow.pop %v3897
    %v3899 = vmul.f32 %v3525, 1.442695
    %v3900 = vpow.pop %v3899
    %v3901 = vmul.f32 %v3526, 1.442695
    %v3902 = vpow.pop %v3901
    %v3903 = vmul.f32 %v3527, 1.442695
    %v3904 = vpow.pop %v3903
    %v3905 = vmul.f32 %v3528, 1.442695
    %v3906 = vpow.pop %v3905
    %v3907 = vmul.f32 %v3529, 1.442695
    %v3908 = vpow.pop %v3907
    %v3909 = vmul.f32 %v3530, 1.442695
    %v3910 = vpow.pop %v3909
    %v3911 = vmul.f32 %v3531, 1.442695
    %v3912 = vpow.pop %v3911
    %v3913 = vmul.f32 %v3532, 1.442695
    %v3914 = vpow.pop %v3913
    %v3915 = vmul.f32 %v3533, 1.442695
    %v3916 = vpow.pop %v3915
    %v3917 = vmul.f32 %v3534, 1.442695
    %v3918 = vpow.pop %v3917
    %v3919 = vmul.f32 %v3535, 1.442695
    %v3920 = vpow.pop %v3919
    %v3921 = vmul.f32 %v3536, 1.442695
    %v3922 = vpow.pop %v3921
    %v3923 = vmul.f32 %v3537, 1.442695
    %v3924 = vpow.pop %v3923
    %v3925 = vmul.f32 %v3538, 1.442695
    %v3926 = vpow.pop %v3925
    %v3927 = vmul.f32 %v3539, 1.442695
    %v3928 = vpow.pop %v3927
    %v3929 = vmul.f32 %v3540, 1.442695
    %v3930 = vpow.pop %v3929
    %v3931 = vmul.f32 %v3541, 1.442695
    %v3932 = vpow.pop %v3931
    %v3933 = vmul.f32 %v3542, 1.442695
    %v3934 = vpow.pop %v3933
    %v3935 = vmul.f32 %v3543, 1.442695
    %v3936 = vpow.pop %v3935
    %v3937 = vmul.f32 %v3544, 1.442695
    %v3938 = vpow.pop %v3937
    %v3939 = vmul.f32 %v3545, 1.442695
    %v3940 = vpow.pop %v3939
    %v3941 = vmul.f32 %v3546, 1.442695
    %v3942 = vpow.pop %v3941
    %v3943 = vmul.f32 %v3547, 1.442695
    %v3944 = vpow.pop %v3943
    %v3945 = vmul.f32 %v3548, 1.442695
    %v3946 = vpow.pop %v3945
    %v3947 = vmul.f32 %v3549, 1.442695
    %v3948 = vpow.pop %v3947
    %v3949 = vmul.f32 %v3550, 1.442695
    %v3950 = vpow.pop %v3949
    %v3951 = vmul.f32 %v3551, 1.442695
    %v3952 = vpow.pop %v3951
    %v3953 = vmul.f32 %v3552, 1.442695
    %v3954 = vpow.pop %v3953
    %v3955 = vmul.f32 %v3553, 1.442695
    %v3956 = vpow.pop %v3955
    %v3957 = vmul.f32 %v3554, 1.442695
    %v3958 = vpow.pop %v3957
    %v3959 = vmul.f32 %v3555, 1.442695
    %v3960 = vpow.pop %v3959
    %v3961 = vmul.f32 %v3556, 1.442695
    %v3962 = vpow.pop %v3961
    %v3963 = vmul.f32 %v3557, 1.442695
    %v3964 = vpow.pop %v3963
    %v3965 = vmul.f32 %v3558, 1.442695
    %v3966 = vpow.pop %v3965
    %v3967 = vmul.f32 %v3559, 1.442695
    %v3968 = vpow.pop %v3967
    %v3969 = vmul.f32 %v3560, 1.442695
    %v3970 = vpow.pop %v3969
    %v3971 = vmul.f32 %v3561, 1.442695
    %v3972 = vpow.pop %v3971
    %v3973 = vmul.f32 %v3562, 1.442695
    %v3974 = vpow.pop %v3973
    %v3975 = vmul.f32 %v3563, 1.442695
    %v3976 = vpow.pop %v3975
    %v3977 = vmul.f32 %v3564, 1.442695
    %v3978 = vpow.pop %v3977
    %v3979 = vmul.f32 %v3565, 1.442695
    %v3980 = vpow.pop %v3979
    %v3981 = vmul.f32 %v3566, 1.442695
    %v3982 = vpow.pop %v3981
    %v3983 = vmul.f32 %v3567, 1.442695
    %v3984 = vpow.pop %v3983
    %v3985 = vmul.f32 %v3568, 1.442695
    %v3986 = vpow.pop %v3985
    %v3987 = vmul.f32 %v3569, 1.442695
    %v3988 = vpow.pop %v3987
    %v3989 = vmul.f32 %v3570, 1.442695
    %v3990 = vpow.pop %v3989
    %v3991 = vmul.f32 %v3571, 1.442695
    %v3992 = vpow.pop %v3991
    %v3993 = vmul.f32 %v3572, 1.442695
    %v3994 = vpow.pop %v3993
    %v3995 = vmul.f32 %v3573, 1.442695
    %v3996 = vpow.pop %v3995
    %v3997 = vmul.f32 %v3574, 1.442695
    %v3998 = vpow.pop %v3997
    %v3999 = vmul.f32 %v3575, 1.442695
    %v4000 = vpow.pop %v3999
    %v4001 = vmul.f32 %v3576, 1.442695
    %v4002 = vpow.pop %v4001
    %v4003 = vmul.f32 %v3577, 1.442695
    %v4004 = vpow.pop %v4003
    %v4005 = vmul.f32 %v3578, 1.442695
    %v4006 = vpow.pop %v4005
    %v4007 = vmul.f32 %v3579, 1.442695
    %v4008 = vpow.pop %v4007
    %v4009 = vmul.f32 %v3580, 1.442695
    %v4010 = vpow.pop %v4009
    %v4011 = vmul.f32 %v3581, 1.442695
    %v4012 = vpow.pop %v4011
    %v4013 = vmul.f32 %v3582, 1.442695
    %v4014 = vpow.pop %v4013
    %v4015 = vmul.f32 %v3583, 1.442695
    %v4016 = vpow.pop %v4015
    %v4017 = vmul.f32 %v3584, 1.442695
    %v4018 = vpow.pop %v4017
    %v4019 = vmul.f32 %v3585, 1.442695
    %v4020 = vpow.pop %v4019
    %v4021 = vmul.f32 %v3586, 1.442695
    %v4022 = vpow.pop %v4021
    %v4023 = vmul.f32 %v3587, 1.442695
    %v4024 = vpow.pop %v4023
    %v4025 = vmul.f32 %v3588, 1.442695
    %v4026 = vpow.pop %v4025
    %v4027 = vmul.f32 %v3589, 1.442695
    %v4028 = vpow.pop %v4027
    %v4029 = vmul.f32 %v3590, 1.442695
    %v4030 = vpow.pop %v4029
    %v4031 = vmul.f32 %v3591, 1.442695
    %v4032 = vpow.pop %v4031
    %v4033 = vmul.f32 %v3592, 1.442695
    %v4034 = vpow.pop %v4033
    %v4035 = vmul.f32 %v3593, 1.442695
    %v4036 = vpow.pop %v4035
    %v4037 = vmul.f32 %v3594, 1.442695
    %v4038 = vpow.pop %v4037
    %v4039 = vmul.f32 %v3595, 1.442695
    %v4040 = vpow.pop %v4039
    %v4041 = vmul.f32 %v3596, 1.442695
    %v4042 = vpow.pop %v4041
    %v4043 = vmul.f32 %v3597, 1.442695
    %v4044 = vpow.pop %v4043
    %v4045 = vmul.f32 %v3598, 1.442695
    %v4046 = vpow.pop %v4045
    %v4047 = vmul.f32 %v3599, 1.442695
    %v4048 = vpow.pop %v4047
    %v4049 = vmul.f32 %v3600, 1.442695
    %v4050 = vpow.pop %v4049
    %v4051 = vmul.f32 %v3601, 1.442695
    %v4052 = vpow.pop %v4051
    %v4053 = vmul.f32 %v3602, 1.442695
    %v4054 = vpow.pop %v4053
    %v4055 = vmul.f32 %v3603, 1.442695
    %v4056 = vpow.pop %v4055
    %v4057 = vmul.f32 %v3604, 1.442695
    %v4058 = vpow.pop %v4057
    %v4059 = vmul.f32 %v3605, 1.442695
    %v4060 = vpow.pop %v4059
    %v4061 = vmul.f32 %v3606, 1.442695
    %v4062 = vpow.pop %v4061
    %v4063 = vmul.f32 %v3607, 1.442695
    %v4064 = vpow.pop %v4063
    %v4065 = vmul.f32 %v3608, 1.442695
    %v4066 = vpow.pop %v4065
    %v4067 = vmul.f32 %v3609, 1.442695
    %v4068 = vpow.pop %v4067
    %v4069 = vmul.f32 %v3610, 1.442695
    %v4070 = vpow.pop %v4069
    %v4071 = vmul.f32 %v3611, 1.442695
    %v4072 = vpow.pop %v4071
    %v4073 = vmul.f32 %v3612, 1.442695
    %v4074 = vpow.pop %v4073
    %v4075 = vmul.f32 %v3613, 1.442695
    %v4076 = vpow.pop %v4075
    %v4077 = vmul.f32 %v3614, 1.442695
    %v4078 = vpow.pop %v4077
    %v4079 = vmul.f32 %v3615, 1.442695
    %v4080 = vpow.pop %v4079
    %v4081 = vmul.f32 %v3616, 1.442695
    %v4082 = vpow.pop %v4081
    %v4083 = vmul.f32 %v3617, 1.442695
    %v4084 = vpow.pop %v4083
    %v4085 = vmul.f32 %v3618, 1.442695
    %v4086 = vpow.pop %v4085
    %v4087 = vmul.f32 %v3619, 1.442695
    %v4088 = vpow.pop %v4087
    %v4089 = vmul.f32 %v3620, 1.442695
    %v4090 = vpow.pop %v4089
    %v4091 = vmul.f32 %v3621, 1.442695
    %v4092 = vpow.pop %v4091
    %v4093 = vmul.f32 %v3622, 1.442695
    %v4094 = vpow.pop %v4093
    %v4095 = vmul.f32 %v3623, 1.442695
    %v4096 = vpow.pop %v4095
    %v4097 = vmul.f32 %v3624, 1.442695
    %v4098 = vpow.pop %v4097
    %v4099 = vmul.f32 %v3625, 1.442695
    %v4100 = vpow.pop %v4099
    %v4101 = vmul.f32 %v3626, 1.442695
    %v4102 = vpow.pop %v4101
    %v4103 = vmul.f32 %v3627, 1.442695
    %v4104 = vpow.pop %v4103
    %v4105 = vmul.f32 %v3628, 1.442695
    %v4106 = vpow.pop %v4105
    %v4107 = vmul.f32 %v3629, 1.442695
    %v4108 = vpow.pop %v4107
    %v4109 = vmul.f32 %v3630, 1.442695
    %v4110 = vpow.pop %v4109
    %v4111 = vmul.f32 %v3631, 1.442695
    %v4112 = vpow.pop %v4111
    %v4113 = vmul.f32 %v3632, 1.442695
    %v4114 = vpow.pop %v4113
    %v4115 = vmul.f32 %v3633, 1.442695
    %v4116 = vpow.pop %v4115
    %v4117 = vmul.f32 %v3634, 1.442695
    %v4118 = vpow.pop %v4117
    %v4119 = vmul.f32 %v3635, 1.442695
    %v4120 = vpow.pop %v4119
    %v4121 = vmul.f32 %v3636, 1.442695
    %v4122 = vpow.pop %v4121
    %v4123 = vmul.f32 %v3637, 1.442695
    %v4124 = vpow.pop %v4123
    %v4125 = vmul.f32 %v3638, 1.442695
    %v4126 = vpow.pop %v4125
    %v4127 = vmul.f32 %v3639, 1.442695
    %v4128 = vpow.pop %v4127
    %v4129 = vmul.f32 %v3640, 1.442695
    %v4130 = vpow.pop %v4129
    %v4131 = vmul.f32 %v3641, 1.442695
    %v4132 = vpow.pop %v4131
    %v4133 = vmul.f32 %v3642, 1.442695
    %v4134 = vpow.pop %v4133
    %v4135 = vmul.f32 %v3643, 1.442695
    %v4136 = vpow.pop %v4135
    %v4137 = vmul.f32 %v3644, 1.442695
    %v4138 = vpow.pop %v4137
    %v4139 = vmul.f32 %v3645, 1.442695
    %v4140 = vpow.pop %v4139
    %v4141 = vmul.f32 %v3646, 1.442695
    %v4142 = vpow.pop %v4141
    %v4143 = vmul.f32 %v3647, 1.442695
    %v4144 = vpow.pop %v4143
    %v4145 = vmul.f32 %v3648, 1.442695
    %v4146 = vpow.pop %v4145
    %v4147 = vmul.f32 %v3649, 1.442695
    %v4148 = vpow.pop %v4147
    %v4149 = vmul.f32 %v3650, 1.442695
    %v4150 = vpow.pop %v4149
    %v4151 = vmul.f32 %v3651, 1.442695
    %v4152 = vpow.pop %v4151
    %v4153 = vmul.f32 %v3652, 1.442695
    %v4154 = vpow.pop %v4153
    %v4155 = vmul.f32 %v3653, 1.442695
    %v4156 = vpow.pop %v4155
    %v4157 = vmul.f32 %v3654, 1.442695
    %v4158 = vpow.pop %v4157
    %v4159 = vmul.f32 %v3655, 1.442695
    %v4160 = vpow.pop %v4159
    %v4161 = vmul.f32 %v3656, 1.442695
    %v4162 = vpow.pop %v4161
    %v4163 = vmul.f32 %v3657, 1.442695
    %v4164 = vpow.pop %v4163
    %v4165 = vmul.f32 %v3658, 1.442695
    %v4166 = vpow.pop %v4165
    %v4167 = vmul.f32 %v3659, 1.442695
    %v4168 = vpow.pop %v4167
    %v4169 = vmul.f32 %v3660, 1.442695
    %v4170 = vpow.pop %v4169
    %v4171 = vmul.f32 %v3661, 1.442695
    %v4172 = vpow.pop %v4171
    %v4173 = vmul.f32 %v3662, 1.442695
    %v4174 = vpow.pop %v4173
    %v4175 = vmul.f32 %v3663, 1.442695
    %v4176 = vpow.pop %v4175
    %v4177 = vmul.f32 %v3664, 1.442695
    %v4178 = vpow.pop %v4177
    %v4179 = vmul.f32 %v3665, 1.442695
    %v4180 = vpow.pop %v4179
    %v4181 = vmul.f32 %v3666, 1.442695
    %v4182 = vpow.pop %v4181
    %v4183 = vmul.f32 %v3667, 1.442695
    %v4184 = vpow.pop %v4183
    %v4185 = vmul.f32 %v3668, 1.442695
    %v4186 = vpow.pop %v4185
    %v4187 = vmul.f32 %v3669, 1.442695
    %v4188 = vpow.pop %v4187
    %v4189 = vmul.f32 %v3670, 1.442695
    %v4190 = vpow.pop %v4189
    %v4191 = vmul.f32 %v3671, 1.442695
    %v4192 = vpow.pop %v4191
    %v4193 = vmul.f32 %v3672, 1.442695
    %v4194 = vpow.pop %v4193
    %v4195 = vmul.f32 %v3673, 1.442695
    %v4196 = vpow.pop %v4195
    %v4197 = vmul.f32 %v3674, 1.442695
    %v4198 = vpow.pop %v4197
    %v4199 = vmul.f32 %v3675, 1.442695
    %v4200 = vpow.pop %v4199
    %v4201 = vmul.f32 %v3676, 1.442695
    %v4202 = vpow.pop %v4201
    %v4203 = vmul.f32 %v3677, 1.442695
    %v4204 = vpow.pop %v4203
    %v4205 = vmul.f32 %v3678, 1.442695
    %v4206 = vpow.pop %v4205
    %v4207 = vmul.f32 %v3679, 1.442695
    %v4208 = vpow.pop %v4207
    %v4209 = vmul.f32 %v3680, 1.442695
    %v4210 = vpow.pop %v4209
    %v4211 = vmul.f32 %v3681, 1.442695
    %v4212 = vpow.pop %v4211
    %v4213 = vmul.f32 %v3682, 1.442695
    %v4214 = vpow.pop %v4213
    %v4215 = vmul.f32 %v3683, 1.442695
    %v4216 = vpow.pop %v4215
    %v4217 = vmul.f32 %v3684, 1.442695
    %v4218 = vpow.pop %v4217
    %v4219 = vmul.f32 %v3685, 1.442695
    %v4220 = vpow.pop %v4219
    %v4221 = vmul.f32 %v3686, 1.442695
    %v4222 = vpow.pop %v4221
    %v4223 = vmul.f32 %v3687, 1.442695
    %v4224 = vpow.pop %v4223
    %v4225 = vmul.f32 %v3688, 1.442695
    %v4226 = vpow.pop %v4225
    %v4227 = vmul.f32 %v3689, 1.442695
    %v4228 = vpow.pop %v4227
    %v4229 = vmul.f32 %v3690, 1.442695
    %v4230 = vpow.pop %v4229
    %v4231 = vmul.f32 %v3691, 1.442695
    %v4232 = vpow.pop %v4231
    %v4233 = vmul.f32 %v3692, 1.442695
    %v4234 = vpow.pop %v4233
    %v4235 = vmul.f32 %v3693, 1.442695
    %v4236 = vpow.pop %v4235
    %v4237 = vmul.f32 %v3694, 1.442695
    %v4238 = vpow.pop %v4237
    %v4239 = vmul.f32 %v3695, 1.442695
    %v4240 = vpow.pop %v4239
    %v4241 = vmul.f32 %v3696, 1.442695
    %v4242 = vpow.pop %v4241
    %v4243 = vmul.f32 %v3697, 1.442695
    %v4244 = vpow.pop %v4243
    %v4245 = vmul.f32 %v3698, 1.442695
    %v4246 = vpow.pop %v4245
    %v4247 = vmul.f32 %v3699, 1.442695
    %v4248 = vpow.pop %v4247
    %v4249 = vmul.f32 %v3700, 1.442695
    %v4250 = vpow.pop %v4249
    %v4251 = vmul.f32 %v3701, 1.442695
    %v4252 = vpow.pop %v4251
    %v4253 = vmul.f32 %v3702, 1.442695
    %v4254 = vpow.pop %v4253
    %v4255 = vmul.f32 %v3703, 1.442695
    %v4256 = vpow.pop %v4255
    %v4257 = vmul.f32 %v3704, 1.442695
    %v4258 = vpow.pop %v4257
    %v4259 = vmul.f32 %v3705, 1.442695
    %v4260 = vpow.pop %v4259
    %v4261 = vmul.f32 %v3706, 1.442695
    %v4262 = vpow.pop %v4261
    %v4263 = vmul.f32 %v3707, 1.442695
    %v4264 = vpow.pop %v4263
    %v4265 = vmul.f32 %v3708, 1.442695
    %v4266 = vpow.pop %v4265
    %v4267 = vmul.f32 %v3709, 1.442695
    %v4268 = vpow.pop %v4267
    %v4269 = vmul.f32 %v3710, 1.442695
    %v4270 = vpow.pop %v4269
    %v4271 = vmul.f32 %v3711, 1.442695
    %v4272 = vpow.pop %v4271
    %v4273 = vmul.f32 %v3712, 1.442695
    %v4274 = vpow.pop %v4273
    %v4275 = vmul.f32 %v3713, 1.442695
    %v4276 = vpow.pop %v4275
    %v4277 = vmul.f32 %v3714, 1.442695
    %v4278 = vpow.pop %v4277
    %v4279 = vmul.f32 %v3715, 1.442695
    %v4280 = vpow.pop %v4279
    %v4281 = vmul.f32 %v3716, 1.442695
    %v4282 = vpow.pop %v4281
    %v4283 = vmul.f32 %v3717, 1.442695
    %v4284 = vpow.pop %v4283
    %v4285 = vmul.f32 %v3718, 1.442695
    %v4286 = vpow.pop %v4285
    %v4287 = vmul.f32 %v3719, 1.442695
    %v4288 = vpow.pop %v4287
    %v4289 = vmul.f32 %v3720, 1.442695
    %v4290 = vpow.pop %v4289
    %v4291 = vmul.f32 %v3721, 1.442695
    %v4292 = vpow.pop %v4291
    %v4293 = vmul.f32 %v3722, 1.442695
    %v4294 = vpow.pop %v4293
    %v4295 = vmul.f32 %v3723, 1.442695
    %v4296 = vpow.pop %v4295
    %v4297 = vmul.f32 %v3724, 1.442695
    %v4298 = vpow.pop %v4297
    %v4299 = vmul.f32 %v3725, 1.442695
    %v4300 = vpow.pop %v4299
    %v4301 = vmul.f32 %v3726, 1.442695
    %v4302 = vpow.pop %v4301
    %v4303 = vmul.f32 %v3727, 1.442695
    %v4304 = vpow.pop %v4303
    %v4305 = vmul.f32 %v3728, 1.442695
    %v4306 = vpow.pop %v4305
    %v4307 = vmul.f32 %v3729, 1.442695
    %v4308 = vpow.pop %v4307
    %v4309 = vmul.f32 %v3730, 1.442695
    %v4310 = vpow.pop %v4309
    %v4311 = vmul.f32 %v3731, 1.442695
    %v4312 = vpow.pop %v4311
    %v4313 = vmul.f32 %v3732, 1.442695
    %v4314 = vpow.pop %v4313
    %v4315 = vmul.f32 %v3733, 1.442695
    %v4316 = vpow.pop %v4315
    %v4317 = vmul.f32 %v3734, 1.442695
    %v4318 = vpow.pop %v4317
    %v4319 = vmul.f32 %v3735, 1.442695
    %v4320 = vpow.pop %v4319
    %v4321 = vmul.f32 %v3736, 1.442695
    %v4322 = vpow.pop %v4321
    %v4323 = vmul.f32 %v3737, 1.442695
    %v4324 = vpow.pop %v4323
    %v4325 = vmul.f32 %v3738, 1.442695
    %v4326 = vpow.pop %v4325
    %v4327 = vmul.f32 %v3739, 1.442695
    %v4328 = vpow.pop %v4327
    %v4329 = vmul.f32 %v3740, 1.442695
    %v4330 = vpow.pop %v4329
    %v4331 = vmul.f32 %v3741, 1.442695
    %v4332 = vpow.pop %v4331
    %v4333 = vmul.f32 %v3742, 1.442695
    %v4334 = vpow.pop %v4333
    %v4335 = vmul.f32 %v3743, 1.442695
    %v4336 = vpow.pop %v4335
    %v4337 = vmul.f32 %v3744, 1.442695
    %v4338 = vpow.pop %v4337
    %v4339 = vmul.f32 %v3745, 1.442695
    %v4340 = vpow.pop %v4339
    %v4341 = vmul.f32 %v3746, 1.442695
    %v4342 = vpow.pop %v4341
    %v4343 = vmul.f32 %v3747, 1.442695
    %v4344 = vpow.pop %v4343
    %v4345 = vmul.f32 %v3748, 1.442695
    %v4346 = vpow.pop %v4345
    %v4347 = vmul.f32 %v3749, 1.442695
    %v4348 = vpow.pop %v4347
    %v4349 = vmul.f32 %v3750, 1.442695
    %v4350 = vpow.pop %v4349
    %v4351 = vmul.f32 %v3751, 1.442695
    %v4352 = vpow.pop %v4351
    %v4353 = vmul.f32 %v3752, 1.442695
    %v4354 = vpow.pop %v4353
    %v4355 = vmul.f32 %v3753, 1.442695
    %v4356 = vpow.pop %v4355
    %v4357 = vmul.f32 %v3754, 1.442695
    %v4358 = vpow.pop %v4357
    %v4359 = vmul.f32 %v3755, 1.442695
    %v4360 = vpow.pop %v4359
    %v4361 = vmul.f32 %v3756, 1.442695
    %v4362 = vpow.pop %v4361
    %v4363 = vmul.f32 %v3757, 1.442695
    %v4364 = vpow.pop %v4363
    %v4365 = vmul.f32 %v3758, 1.442695
    %v4366 = vpow.pop %v4365
    %v4367 = vmul.f32 %v3759, 1.442695
    %v4368 = vpow.pop %v4367
    %v4369 = vmul.f32 %v3760, 1.442695
    %v4370 = vpow.pop %v4369
    %v4371 = vmul.f32 %v3761, 1.442695
    %v4372 = vpow.pop %v4371
    %v4373 = vmul.f32 %v3762, 1.442695
    %v4374 = vpow.pop %v4373
    %v4375 = vmul.f32 %v3763, 1.442695
    %v4376 = vpow.pop %v4375
    %v4377 = vmul.f32 %v3764, 1.442695
    %v4378 = vpow.pop %v4377
    %v4379 = vmul.f32 %v3765, 1.442695
    %v4380 = vpow.pop %v4379
    %v4381 = vmul.f32 %v3766, 1.442695
    %v4382 = vpow.pop %v4381
    %v4383 = vmul.f32 %v3767, 1.442695
    %v4384 = vpow.pop %v4383
    %v4385 = vmul.f32 %v3768, 1.442695
    %v4386 = vpow.pop %v4385
    %v4387 = vmul.f32 %v3769, 1.442695
    %v4388 = vpow.pop %v4387
    %v4389 = vmul.f32 %v3770, 1.442695
    %v4390 = vpow.pop %v4389
    %v4391 = vmul.f32 %v3771, 1.442695
    %v4392 = vpow.pop %v4391
    %v4393 = vmul.f32 %v3772, 1.442695
    %v4394 = vpow.pop %v4393
    %v4395 = vmul.f32 %v3773, 1.442695
    %v4396 = vpow.pop %v4395
    %v4397 = vmul.f32 %v3774, 1.442695
    %v4398 = vpow.pop %v4397
    %v4399 = vmul.f32 %v3775, 1.442695
    %v4400 = vpow.pop %v4399
    %v4401 = vmul.f32 %v3776, 1.442695
    %v4402 = vpow.pop %v4401
    %4403 = vst [vmem:[#allocation2] sm:$0xff] %v3778
    %4404 = vst [vmem:[#allocation2 + $0x8] sm:$0xff] %v3780
    %4405 = vst [vmem:[#allocation2 + $0x10] sm:$0xff] %v3782
    %4406 = vst [vmem:[#allocation2 + $0x18] sm:$0xff] %v3784
    %4407 = vst [vmem:[#allocation2 + $0x20] sm:$0xff] %v3786
    %4408 = vst [vmem:[#allocation2 + $0x28] sm:$0xff] %v3788
    %4409 = vst [vmem:[#allocation2 + $0x30] sm:$0xff] %v3790
    %4410 = vst [vmem:[#allocation2 + $0x38] sm:$0xff] %v3792
    %4411 = vst [vmem:[#allocation2 + $0x40] sm:$0xff] %v3794
    %4412 = vst [vmem:[#allocation2 + $0x48] sm:$0xff] %v3796
    %4413 = vst [vmem:[#allocation2 + $0x50] sm:$0xff] %v3798
    %4414 = vst [vmem:[#allocation2 + $0x58] sm:$0xff] %v3800
    %4415 = vst [vmem:[#allocation2 + $0x60] sm:$0xff] %v3802
    %4416 = vst [vmem:[#allocation2 + $0x68] sm:$0xff] %v3804
    %4417 = vst [vmem:[#allocation2 + $0x70] sm:$0xff] %v3806
    %4418 = vst [vmem:[#allocation2 + $0x78] sm:$0xff] %v3808
    %4419 = vst [vmem:[#allocation2 + $0x80] sm:$0xff] %v3810
    %4420 = vst [vmem:[#allocation2 + $0x88] sm:$0xff] %v3812
    %4421 = vst [vmem:[#allocation2 + $0x90] sm:$0xff] %v3814
    %4422 = vst [vmem:[#allocation2 + $0x98] sm:$0xff] %v3816
    %4423 = vst [vmem:[#allocation2 + $0xa0] sm:$0xff] %v3818
    %4424 = vst [vmem:[#allocation2 + $0xa8] sm:$0xff] %v3820
    %4425 = vst [vmem:[#allocation2 + $0xb0] sm:$0xff] %v3822
    %4426 = vst [vmem:[#allocation2 + $0xb8] sm:$0xff] %v3824
    %4427 = vst [vmem:[#allocation2 + $0xc0] sm:$0xff] %v3826
    %4428 = vst [vmem:[#allocation2 + $0xc8] sm:$0xff] %v3828
    %4429 = vst [vmem:[#allocation2 + $0xd0] sm:$0xff] %v3830
    %4430 = vst [vmem:[#allocation2 + $0xd8] sm:$0xff] %v3832
    %4431 = vst [vmem:[#allocation2 + $0xe0] sm:$0xff] %v3834
    %4432 = vst [vmem:[#allocation2 + $0xe8] sm:$0xff] %v3836
    %4433 = vst [vmem:[#allocation2 + $0xf0] sm:$0xff] %v3838
    %4434 = vst [vmem:[#allocation2 + $0xf8] sm:$0xff] %v3840
    %4435 = vst [vmem:[#allocation2 + $0x100] sm:$0xff] %v3842
    %4436 = vst [vmem:[#allocation2 + $0x108] sm:$0xff] %v3844
    %4437 = vst [vmem:[#allocation2 + $0x110] sm:$0xff] %v3846
    %4438 = vst [vmem:[#allocation2 + $0x118] sm:$0xff] %v3848
    %4439 = vst [vmem:[#allocation2 + $0x120] sm:$0xff] %v3850
    %4440 = vst [vmem:[#allocation2 + $0x128] sm:$0xff] %v3852
    %4441 = vst [vmem:[#allocation2 + $0x130] sm:$0xff] %v3854
    %4442 = vst [vmem:[#allocation2 + $0x138] sm:$0xff] %v3856
    %4443 = vst [vmem:[#allocation2 + $0x140] sm:$0xff] %v3858
    %4444 = vst [vmem:[#allocation2 + $0x148] sm:$0xff] %v3860
    %4445 = vst [vmem:[#allocation2 + $0x150] sm:$0xff] %v3862
    %4446 = vst [vmem:[#allocation2 + $0x158] sm:$0xff] %v3864
    %4447 = vst [vmem:[#allocation2 + $0x160] sm:$0xff] %v3866
    %4448 = vst [vmem:[#allocation2 + $0x168] sm:$0xff] %v3868
    %4449 = vst [vmem:[#allocation2 + $0x170] sm:$0xff] %v3870
    %4450 = vst [vmem:[#allocation2 + $0x178] sm:$0xff] %v3872
    %4451 = vst [vmem:[#allocation2 + $0x180] sm:$0xff] %v3874
    %4452 = vst [vmem:[#allocation2 + $0x188] sm:$0xff] %v3876
    %4453 = vst [vmem:[#allocation2 + $0x190] sm:$0xff] %v3878
    %4454 = vst [vmem:[#allocation2 + $0x198] sm:$0xff] %v3880
    %4455 = vst [vmem:[#allocation2 + $0x1a0] sm:$0xff] %v3882
    %4456 = vst [vmem:[#allocation2 + $0x1a8] sm:$0xff] %v3884
    %4457 = vst [vmem:[#allocation2 + $0x1b0] sm:$0xff] %v3886
    %4458 = vst [vmem:[#allocation2 + $0x1b8] sm:$0xff] %v3888
    %4459 = vst [vmem:[#allocation2 + $0x1c0] sm:$0xff] %v3890
    %4460 = vst [vmem:[#allocation2 + $0x1c8] sm:$0xff] %v3892
    %4461 = vst [vmem:[#allocation2 + $0x1d0] sm:$0xff] %v3894
    %4462 = vst [vmem:[#allocation2 + $0x1d8] sm:$0xff] %v3896
    %4463 = vst [vmem:[#allocation2 + $0x1e0] sm:$0xff] %v3898
    %4464 = vst [vmem:[#allocation2 + $0x1e8] sm:$0xff] %v3900
    %4465 = vst [vmem:[#allocation2 + $0x1f0] sm:$0xff] %v3902
    %4466 = vst [vmem:[#allocation2 + $0x1f8] sm:$0xff] %v3904
    %4467 = vst [vmem:[#allocation2 + $0x200] sm:$0xff] %v3906
    %4468 = vst [vmem:[#allocation2 + $0x208] sm:$0xff] %v3908
    %4469 = vst [vmem:[#allocation2 + $0x210] sm:$0xff] %v3910
    %4470 = vst [vmem:[#allocation2 + $0x218] sm:$0xff] %v3912
    %4471 = vst [vmem:[#allocation2 + $0x220] sm:$0xff] %v3914
    %4472 = vst [vmem:[#allocation2 + $0x228] sm:$0xff] %v3916
    %4473 = vst [vmem:[#allocation2 + $0x230] sm:$0xff] %v3918
    %4474 = vst [vmem:[#allocation2 + $0x238] sm:$0xff] %v3920
    %4475 = vst [vmem:[#allocation2 + $0x240] sm:$0xff] %v3922
    %4476 = vst [vmem:[#allocation2 + $0x248] sm:$0xff] %v3924
    %4477 = vst [vmem:[#allocation2 + $0x250] sm:$0xff] %v3926
    %4478 = vst [vmem:[#allocation2 + $0x258] sm:$0xff] %v3928
    %4479 = vst [vmem:[#allocation2 + $0x260] sm:$0xff] %v3930
    %4480 = vst [vmem:[#allocation2 + $0x268] sm:$0xff] %v3932
    %4481 = vst [vmem:[#allocation2 + $0x270] sm:$0xff] %v3934
    %4482 = vst [vmem:[#allocation2 + $0x278] sm:$0xff] %v3936
    %4483 = vst [vmem:[#allocation2 + $0x280] sm:$0xff] %v3938
    %4484 = vst [vmem:[#allocation2 + $0x288] sm:$0xff] %v3940
    %4485 = vst [vmem:[#allocation2 + $0x290] sm:$0xff] %v3942
    %4486 = vst [vmem:[#allocation2 + $0x298] sm:$0xff] %v3944
    %4487 = vst [vmem:[#allocation2 + $0x2a0] sm:$0xff] %v3946
    %4488 = vst [vmem:[#allocation2 + $0x2a8] sm:$0xff] %v3948
    %4489 = vst [vmem:[#allocation2 + $0x2b0] sm:$0xff] %v3950
    %4490 = vst [vmem:[#allocation2 + $0x2b8] sm:$0xff] %v3952
    %4491 = vst [vmem:[#allocation2 + $0x2c0] sm:$0xff] %v3954
    %4492 = vst [vmem:[#allocation2 + $0x2c8] sm:$0xff] %v3956
    %4493 = vst [vmem:[#allocation2 + $0x2d0] sm:$0xff] %v3958
    %4494 = vst [vmem:[#allocation2 + $0x2d8] sm:$0xff] %v3960
    %4495 = vst [vmem:[#allocation2 + $0x2e0] sm:$0xff] %v3962
    %4496 = vst [vmem:[#allocation2 + $0x2e8] sm:$0xff] %v3964
    %4497 = vst [vmem:[#allocation2 + $0x2f0] sm:$0xff] %v3966
    %4498 = vst [vmem:[#allocation2 + $0x2f8] sm:$0xff] %v3968
    %4499 = vst [vmem:[#allocation2 + $0x300] sm:$0xff] %v3970
    %4500 = vst [vmem:[#allocation2 + $0x308] sm:$0xff] %v3972
    %4501 = vst [vmem:[#allocation2 + $0x310] sm:$0xff] %v3974
    %4502 = vst [vmem:[#allocation2 + $0x318] sm:$0xff] %v3976
    %4503 = vst [vmem:[#allocation2 + $0x320] sm:$0xff] %v3978
    %4504 = vst [vmem:[#allocation2 + $0x328] sm:$0xff] %v3980
    %4505 = vst [vmem:[#allocation2 + $0x330] sm:$0xff] %v3982
    %4506 = vst [vmem:[#allocation2 + $0x338] sm:$0xff] %v3984
    %4507 = vst [vmem:[#allocation2 + $0x340] sm:$0xff] %v3986
    %4508 = vst [vmem:[#allocation2 + $0x348] sm:$0xff] %v3988
    %4509 = vst [vmem:[#allocation2 + $0x350] sm:$0xff] %v3990
    %4510 = vst [vmem:[#allocation2 + $0x358] sm:$0xff] %v3992
    %4511 = vst [vmem:[#allocation2 + $0x360] sm:$0xff] %v3994
    %4512 = vst [vmem:[#allocation2 + $0x368] sm:$0xff] %v3996
    %4513 = vst [vmem:[#allocation2 + $0x370] sm:$0xff] %v3998
    %4514 = vst [vmem:[#allocation2 + $0x378] sm:$0xff] %v4000
    %4515 = vst [vmem:[#allocation2 + $0x380] sm:$0xff] %v4002
    %4516 = vst [vmem:[#allocation2 + $0x388] sm:$0xff] %v4004
    %4517 = vst [vmem:[#allocation2 + $0x390] sm:$0xff] %v4006
    %4518 = vst [vmem:[#allocation2 + $0x398] sm:$0xff] %v4008
    %4519 = vst [vmem:[#allocation2 + $0x3a0] sm:$0xff] %v4010
    %4520 = vst [vmem:[#allocation2 + $0x3a8] sm:$0xff] %v4012
    %4521 = vst [vmem:[#allocation2 + $0x3b0] sm:$0xff] %v4014
    %4522 = vst [vmem:[#allocation2 + $0x3b8] sm:$0xff] %v4016
    %4523 = vst [vmem:[#allocation2 + $0x3c0] sm:$0xff] %v4018
    %4524 = vst [vmem:[#allocation2 + $0x3c8] sm:$0xff] %v4020
    %4525 = vst [vmem:[#allocation2 + $0x3d0] sm:$0xff] %v4022
    %4526 = vst [vmem:[#allocation2 + $0x3d8] sm:$0xff] %v4024
    %4527 = vst [vmem:[#allocation2 + $0x3e0] sm:$0xff] %v4026
    %4528 = vst [vmem:[#allocation2 + $0x3e8] sm:$0xff] %v4028
    %4529 = vst [vmem:[#allocation2 + $0x3f0] sm:$0xff] %v4030
    %4530 = vst [vmem:[#allocation2 + $0x3f8] sm:$0xff] %v4032
    %4531 = vst [vmem:[#allocation2 + $0x400] sm:$0xff] %v4034
    %4532 = vst [vmem:[#allocation2 + $0x408] sm:$0xff] %v4036
    %4533 = vst [vmem:[#allocation2 + $0x410] sm:$0xff] %v4038
    %4534 = vst [vmem:[#allocation2 + $0x418] sm:$0xff] %v4040
    %4535 = vst [vmem:[#allocation2 + $0x420] sm:$0xff] %v4042
    %4536 = vst [vmem:[#allocation2 + $0x428] sm:$0xff] %v4044
    %4537 = vst [vmem:[#allocation2 + $0x430] sm:$0xff] %v4046
    %4538 = vst [vmem:[#allocation2 + $0x438] sm:$0xff] %v4048
    %4539 = vst [vmem:[#allocation2 + $0x440] sm:$0xff] %v4050
    %4540 = vst [vmem:[#allocation2 + $0x448] sm:$0xff] %v4052
    %4541 = vst [vmem:[#allocation2 + $0x450] sm:$0xff] %v4054
    %4542 = vst [vmem:[#allocation2 + $0x458] sm:$0xff] %v4056
    %4543 = vst [vmem:[#allocation2 + $0x460] sm:$0xff] %v4058
    %4544 = vst [vmem:[#allocation2 + $0x468] sm:$0xff] %v4060
    %4545 = vst [vmem:[#allocation2 + $0x470] sm:$0xff] %v4062
    %4546 = vst [vmem:[#allocation2 + $0x478] sm:$0xff] %v4064
    %4547 = vst [vmem:[#allocation2 + $0x480] sm:$0xff] %v4066
    %4548 = vst [vmem:[#allocation2 + $0x488] sm:$0xff] %v4068
    %4549 = vst [vmem:[#allocation2 + $0x490] sm:$0xff] %v4070
    %4550 = vst [vmem:[#allocation2 + $0x498] sm:$0xff] %v4072
    %4551 = vst [vmem:[#allocation2 + $0x4a0] sm:$0xff] %v4074
    %4552 = vst [vmem:[#allocation2 + $0x4a8] sm:$0xff] %v4076
    %4553 = vst [vmem:[#allocation2 + $0x4b0] sm:$0xff] %v4078
    %4554 = vst [vmem:[#allocation2 + $0x4b8] sm:$0xff] %v4080
    %4555 = vst [vmem:[#allocation2 + $0x4c0] sm:$0xff] %v4082
    %4556 = vst [vmem:[#allocation2 + $0x4c8] sm:$0xff] %v4084
    %4557 = vst [vmem:[#allocation2 + $0x4d0] sm:$0xff] %v4086
    %4558 = vst [vmem:[#allocation2 + $0x4d8] sm:$0xff] %v4088
    %4559 = vst [vmem:[#allocation2 + $0x4e0] sm:$0xff] %v4090
    %4560 = vst [vmem:[#allocation2 + $0x4e8] sm:$0xff] %v4092
    %4561 = vst [vmem:[#allocation2 + $0x4f0] sm:$0xff] %v4094
    %4562 = vst [vmem:[#allocation2 + $0x4f8] sm:$0xff] %v4096
    %4563 = vst [vmem:[#allocation2 + $0x500] sm:$0xff] %v4098
    %4564 = vst [vmem:[#allocation2 + $0x508] sm:$0xff] %v4100
    %4565 = vst [vmem:[#allocation2 + $0x510] sm:$0xff] %v4102
    %4566 = vst [vmem:[#allocation2 + $0x518] sm:$0xff] %v4104
    %4567 = vst [vmem:[#allocation2 + $0x520] sm:$0xff] %v4106
    %4568 = vst [vmem:[#allocation2 + $0x528] sm:$0xff] %v4108
    %4569 = vst [vmem:[#allocation2 + $0x530] sm:$0xff] %v4110
    %4570 = vst [vmem:[#allocation2 + $0x538] sm:$0xff] %v4112
    %4571 = vst [vmem:[#allocation2 + $0x540] sm:$0xff] %v4114
    %4572 = vst [vmem:[#allocation2 + $0x548] sm:$0xff] %v4116
    %4573 = vst [vmem:[#allocation2 + $0x550] sm:$0xff] %v4118
    %4574 = vst [vmem:[#allocation2 + $0x558] sm:$0xff] %v4120
    %4575 = vst [vmem:[#allocation2 + $0x560] sm:$0xff] %v4122
    %4576 = vst [vmem:[#allocation2 + $0x568] sm:$0xff] %v4124
    %4577 = vst [vmem:[#allocation2 + $0x570] sm:$0xff] %v4126
    %4578 = vst [vmem:[#allocation2 + $0x578] sm:$0xff] %v4128
    %4579 = vst [vmem:[#allocation2 + $0x580] sm:$0xff] %v4130
    %4580 = vst [vmem:[#allocation2 + $0x588] sm:$0xff] %v4132
    %4581 = vst [vmem:[#allocation2 + $0x590] sm:$0xff] %v4134
    %4582 = vst [vmem:[#allocation2 + $0x598] sm:$0xff] %v4136
    %4583 = vst [vmem:[#allocation2 + $0x5a0] sm:$0xff] %v4138
    %4584 = vst [vmem:[#allocation2 + $0x5a8] sm:$0xff] %v4140
    %4585 = vst [vmem:[#allocation2 + $0x5b0] sm:$0xff] %v4142
    %4586 = vst [vmem:[#allocation2 + $0x5b8] sm:$0xff] %v4144
    %4587 = vst [vmem:[#allocation2 + $0x5c0] sm:$0xff] %v4146
    %4588 = vst [vmem:[#allocation2 + $0x5c8] sm:$0xff] %v4148
    %4589 = vst [vmem:[#allocation2 + $0x5d0] sm:$0xff] %v4150
    %4590 = vst [vmem:[#allocation2 + $0x5d8] sm:$0xff] %v4152
    %4591 = vst [vmem:[#allocation2 + $0x5e0] sm:$0xff] %v4154
    %4592 = vst [vmem:[#allocation2 + $0x5e8] sm:$0xff] %v4156
    %4593 = vst [vmem:[#allocation2 + $0x5f0] sm:$0xff] %v4158
    %4594 = vst [vmem:[#allocation2 + $0x5f8] sm:$0xff] %v4160
    %4595 = vst [vmem:[#allocation2 + $0x600] sm:$0xff] %v4162
    %4596 = vst [vmem:[#allocation2 + $0x608] sm:$0xff] %v4164
    %4597 = vst [vmem:[#allocation2 + $0x610] sm:$0xff] %v4166
    %4598 = vst [vmem:[#allocation2 + $0x618] sm:$0xff] %v4168
    %4599 = vst [vmem:[#allocation2 + $0x620] sm:$0xff] %v4170
    %4600 = vst [vmem:[#allocation2 + $0x628] sm:$0xff] %v4172
    %4601 = vst [vmem:[#allocation2 + $0x630] sm:$0xff] %v4174
    %4602 = vst [vmem:[#allocation2 + $0x638] sm:$0xff] %v4176
    %4603 = vst [vmem:[#allocation2 + $0x640] sm:$0xff] %v4178
    %4604 = vst [vmem:[#allocation2 + $0x648] sm:$0xff] %v4180
    %4605 = vst [vmem:[#allocation2 + $0x650] sm:$0xff] %v4182
    %4606 = vst [vmem:[#allocation2 + $0x658] sm:$0xff] %v4184
    %4607 = vst [vmem:[#allocation2 + $0x660] sm:$0xff] %v4186
    %4608 = vst [vmem:[#allocation2 + $0x668] sm:$0xff] %v4188
    %4609 = vst [vmem:[#allocation2 + $0x670] sm:$0xff] %v4190
    %4610 = vst [vmem:[#allocation2 + $0x678] sm:$0xff] %v4192
    %4611 = vst [vmem:[#allocation2 + $0x680] sm:$0xff] %v4194
    %4612 = vst [vmem:[#allocation2 + $0x688] sm:$0xff] %v4196
    %4613 = vst [vmem:[#allocation2 + $0x690] sm:$0xff] %v4198
    %4614 = vst [vmem:[#allocation2 + $0x698] sm:$0xff] %v4200
    %4615 = vst [vmem:[#allocation2 + $0x6a0] sm:$0xff] %v4202
    %4616 = vst [vmem:[#allocation2 + $0x6a8] sm:$0xff] %v4204
    %4617 = vst [vmem:[#allocation2 + $0x6b0] sm:$0xff] %v4206
    %4618 = vst [vmem:[#allocation2 + $0x6b8] sm:$0xff] %v4208
    %4619 = vst [vmem:[#allocation2 + $0x6c0] sm:$0xff] %v4210
    %4620 = vst [vmem:[#allocation2 + $0x6c8] sm:$0xff] %v4212
    %4621 = vst [vmem:[#allocation2 + $0x6d0] sm:$0xff] %v4214
    %4622 = vst [vmem:[#allocation2 + $0x6d8] sm:$0xff] %v4216
    %4623 = vst [vmem:[#allocation2 + $0x6e0] sm:$0xff] %v4218
    %4624 = vst [vmem:[#allocation2 + $0x6e8] sm:$0xff] %v4220
    %4625 = vst [vmem:[#allocation2 + $0x6f0] sm:$0xff] %v4222
    %4626 = vst [vmem:[#allocation2 + $0x6f8] sm:$0xff] %v4224
    %4627 = vst [vmem:[#allocation2 + $0x700] sm:$0xff] %v4226
    %4628 = vst [vmem:[#allocation2 + $0x708] sm:$0xff] %v4228
    %4629 = vst [vmem:[#allocation2 + $0x710] sm:$0xff] %v4230
    %4630 = vst [vmem:[#allocation2 + $0x718] sm:$0xff] %v4232
    %4631 = vst [vmem:[#allocation2 + $0x720] sm:$0xff] %v4234
    %4632 = vst [vmem:[#allocation2 + $0x728] sm:$0xff] %v4236
    %4633 = vst [vmem:[#allocation2 + $0x730] sm:$0xff] %v4238
    %4634 = vst [vmem:[#allocation2 + $0x738] sm:$0xff] %v4240
    %4635 = vst [vmem:[#allocation2 + $0x740] sm:$0xff] %v4242
    %4636 = vst [vmem:[#allocation2 + $0x748] sm:$0xff] %v4244
    %4637 = vst [vmem:[#allocation2 + $0x750] sm:$0xff] %v4246
    %4638 = vst [vmem:[#allocation2 + $0x758] sm:$0xff] %v4248
    %4639 = vst [vmem:[#allocation2 + $0x760] sm:$0xff] %v4250
    %4640 = vst [vmem:[#allocation2 + $0x768] sm:$0xff] %v4252
    %4641 = vst [vmem:[#allocation2 + $0x770] sm:$0xff] %v4254
    %4642 = vst [vmem:[#allocation2 + $0x778] sm:$0xff] %v4256
    %4643 = vst [vmem:[#allocation2 + $0x780] sm:$0xff] %v4258
    %4644 = vst [vmem:[#allocation2 + $0x788] sm:$0xff] %v4260
    %4645 = vst [vmem:[#allocation2 + $0x790] sm:$0xff] %v4262
    %4646 = vst [vmem:[#allocation2 + $0x798] sm:$0xff] %v4264
    %4647 = vst [vmem:[#allocation2 + $0x7a0] sm:$0xff] %v4266
    %4648 = vst [vmem:[#allocation2 + $0x7a8] sm:$0xff] %v4268
    %4649 = vst [vmem:[#allocation2 + $0x7b0] sm:$0xff] %v4270
    %4650 = vst [vmem:[#allocation2 + $0x7b8] sm:$0xff] %v4272
    %4651 = vst [vmem:[#allocation2 + $0x7c0] sm:$0xff] %v4274
    %4652 = vst [vmem:[#allocation2 + $0x7c8] sm:$0xff] %v4276
    %4653 = vst [vmem:[#allocation2 + $0x7d0] sm:$0xff] %v4278
    %4654 = vst [vmem:[#allocation2 + $0x7d8] sm:$0xff] %v4280
    %4655 = vst [vmem:[#allocation2 + $0x7e0] sm:$0xff] %v4282
    %4656 = vst [vmem:[#allocation2 + $0x7e8] sm:$0xff] %v4284
    %4657 = vst [vmem:[#allocation2 + $0x7f0] sm:$0xff] %v4286
    %4658 = vst [vmem:[#allocation2 + $0x7f8] sm:$0xff] %v4288
    %4659 = vst [vmem:[#allocation2 + $0x800] sm:$0xff] %v4290
    %4660 = vst [vmem:[#allocation2 + $0x808] sm:$0xff] %v4292
    %4661 = vst [vmem:[#allocation2 + $0x810] sm:$0xff] %v4294
    %4662 = vst [vmem:[#allocation2 + $0x818] sm:$0xff] %v4296
    %4663 = vst [vmem:[#allocation2 + $0x820] sm:$0xff] %v4298
    %4664 = vst [vmem:[#allocation2 + $0x828] sm:$0xff] %v4300
    %4665 = vst [vmem:[#allocation2 + $0x830] sm:$0xff] %v4302
    %4666 = vst [vmem:[#allocation2 + $0x838] sm:$0xff] %v4304
    %4667 = vst [vmem:[#allocation2 + $0x840] sm:$0xff] %v4306
    %4668 = vst [vmem:[#allocation2 + $0x848] sm:$0xff] %v4308
    %4669 = vst [vmem:[#allocation2 + $0x850] sm:$0xff] %v4310
    %4670 = vst [vmem:[#allocation2 + $0x858] sm:$0xff] %v4312
    %4671 = vst [vmem:[#allocation2 + $0x860] sm:$0xff] %v4314
    %4672 = vst [vmem:[#allocation2 + $0x868] sm:$0xff] %v4316
    %4673 = vst [vmem:[#allocation2 + $0x870] sm:$0xff] %v4318
    %4674 = vst [vmem:[#allocation2 + $0x878] sm:$0xff] %v4320
    %4675 = vst [vmem:[#allocation2 + $0x880] sm:$0xff] %v4322
    %4676 = vst [vmem:[#allocation2 + $0x888] sm:$0xff] %v4324
    %4677 = vst [vmem:[#allocation2 + $0x890] sm:$0xff] %v4326
    %4678 = vst [vmem:[#allocation2 + $0x898] sm:$0xff] %v4328
    %4679 = vst [vmem:[#allocation2 + $0x8a0] sm:$0xff] %v4330
    %4680 = vst [vmem:[#allocation2 + $0x8a8] sm:$0xff] %v4332
    %4681 = vst [vmem:[#allocation2 + $0x8b0] sm:$0xff] %v4334
    %4682 = vst [vmem:[#allocation2 + $0x8b8] sm:$0xff] %v4336
    %4683 = vst [vmem:[#allocation2 + $0x8c0] sm:$0xff] %v4338
    %4684 = vst [vmem:[#allocation2 + $0x8c8] sm:$0xff] %v4340
    %4685 = vst [vmem:[#allocation2 + $0x8d0] sm:$0xff] %v4342
    %4686 = vst [vmem:[#allocation2 + $0x8d8] sm:$0xff] %v4344
    %4687 = vst [vmem:[#allocation2 + $0x8e0] sm:$0xff] %v4346
    %4688 = vst [vmem:[#allocation2 + $0x8e8] sm:$0xff] %v4348
    %4689 = vst [vmem:[#allocation2 + $0x8f0] sm:$0xff] %v4350
    %4690 = vst [vmem:[#allocation2 + $0x8f8] sm:$0xff] %v4352
    %4691 = vst [vmem:[#allocation2 + $0x900] sm:$0xff] %v4354
    %4692 = vst [vmem:[#allocation2 + $0x908] sm:$0xff] %v4356
    %4693 = vst [vmem:[#allocation2 + $0x910] sm:$0xff] %v4358
    %4694 = vst [vmem:[#allocation2 + $0x918] sm:$0xff] %v4360
    %4695 = vst [vmem:[#allocation2 + $0x920] sm:$0xff] %v4362
    %4696 = vst [vmem:[#allocation2 + $0x928] sm:$0xff] %v4364
    %4697 = vst [vmem:[#allocation2 + $0x930] sm:$0xff] %v4366
    %4698 = vst [vmem:[#allocation2 + $0x938] sm:$0xff] %v4368
    %4699 = vst [vmem:[#allocation2 + $0x940] sm:$0xff] %v4370
    %4700 = vst [vmem:[#allocation2 + $0x948] sm:$0xff] %v4372
    %4701 = vst [vmem:[#allocation2 + $0x950] sm:$0xff] %v4374
    %4702 = vst [vmem:[#allocation2 + $0x958] sm:$0xff] %v4376
    %4703 = vst [vmem:[#allocation2 + $0x960] sm:$0xff] %v4378
    %4704 = vst [vmem:[#allocation2 + $0x968] sm:$0xff] %v4380
    %4705 = vst [vmem:[#allocation2 + $0x970] sm:$0xff] %v4382
    %4706 = vst [vmem:[#allocation2 + $0x978] sm:$0xff] %v4384
    %4707 = vst [vmem:[#allocation2 + $0x980] sm:$0xff] %v4386
    %4708 = vst [vmem:[#allocation2 + $0x988] sm:$0xff] %v4388
    %4709 = vst [vmem:[#allocation2 + $0x990] sm:$0xff] %v4390
    %4710 = vst [vmem:[#allocation2 + $0x998] sm:$0xff] %v4392
    %4711 = vst [vmem:[#allocation2 + $0x9a0] sm:$0xff] %v4394
    %4712 = vst [vmem:[#allocation2 + $0x9a8] sm:$0xff] %v4396
    %4713 = vst [vmem:[#allocation2 + $0x9b0] sm:$0xff] %v4398
    %4714 = vst [vmem:[#allocation2 + $0x9b8] sm:$0xff] %v4400
    %4715 = vst [vmem:[#allocation2 + $0x9c0] sm:$0xff] %v4402
    // Predicated region
    $region10: #{tpu_custom_call.1} parent=1 // pred_check
      _
    $region11: #{tpu_custom_call.1} parent=1 // pred_check_branch
      %4717 = sbr.rel (0) target = $region13
    $region12: #{tpu_custom_call.1} parent=1 // pred_region
      %s4719 = ssub.s32 40064, 40064
      %4720 = vsyncadd [#allocation3], %s4719
      %s4721 = sshll.u32 [#allocation2], 4
      %s4722 = int_to_ptr.vmem [resolvable:$true] %s4721
      %4727 = dma.vmem_to_hbm [thread:$0]  %s4722, 40064, %s2, [#allocation3], 128, 128, 8
    $region13: #{tpu_custom_call.1} parent=1 // pred_fallthru
      _
    // Predicated region
    $region14: #{tpu_custom_call.1} parent=1 // pred_check
      _
    $region15: #{tpu_custom_call.1} parent=1 // pred_check_branch
      %4729 = sbr.rel (0) target = $region17
    $region16: #{tpu_custom_call.1} parent=1 // pred_region
      %4730 = dma.done [#allocation3], 40064
    $region17: #{tpu_custom_call.1} parent=1 // pred_fallthru
      _
    %4731 = vsyncpa [#allocation3], 1

</llo_original>
